<compile_context>
chip_gen: v6e
topology: v6e:2x2x1
jax: 0.10.0
libtpu: 0.0.40
codegen_flags: <defaults>
</compile_context>

<pallas_src>
import functools

import jax
import jax.numpy as jnp
import numpy as np
from jax.experimental import pallas as pl
from jax.experimental.pallas import tpu as pltpu


def _round_up(x, m):
    return (x + m - 1) // m * m


# ----------------------------------------------------------------------------
# Kernel 1: GRU recurrence + NARM attention + `b` projection -> (Bb, E) per block
# ----------------------------------------------------------------------------
def _narm_core_kernel(embs_ref, len_ref, amask_ref, wih_ref, whh_ref,
                      bih_ref, bhh_ref, a1_ref, a2_ref, vt_ref,
                      bwl_ref, bwg_ref, ctp_ref, gout_ref, *, Bb, T, Hp):
    # (1) Input projection hoisted out of the recurrence: one big MXU matmul.
    #     embs_ref is time-major flat within this batch block: row = t*Bb + b.
    gi_all = jnp.dot(embs_ref[...], wih_ref[...],
                     preferred_element_type=jnp.float32) + bih_ref[...]   # (T*Bb, 3Hp)

    whh = whh_ref[...]                      # (Hp, 3Hp)
    bhh = bhh_ref[...]                      # (1, 3Hp)
    len_col = len_ref[...]                  # (Bb, 1) f32 lengths

    h = jnp.zeros((Bb, Hp), jnp.float32)
    # (2) Serial recurrence. Gate slices are 128-lane aligned (Hp % 128 == 0); the
    #     packing mask is derived in-kernel from the lengths column.
    # TODO(synk): switch to lax.fori_loop(..., unroll=2-4) if T grows beyond ~16.
    for t in range(T):
        lo = t * Bb                                             # sublane-aligned (Bb % 8 == 0)
        gi = gi_all[lo:lo + Bb, :]                              # (Bb, 3Hp)
        gh = jnp.dot(h, whh, preferred_element_type=jnp.float32) + bhh
        r = jax.nn.sigmoid(gi[:, :Hp] + gh[:, :Hp])
        z = jax.nn.sigmoid(gi[:, Hp:2 * Hp] + gh[:, Hp:2 * Hp])
        n = jnp.tanh(gi[:, 2 * Hp:] + r * gh[:, 2 * Hp:])
        h_new = (1.0 - z) * n + z * h
        m = (len_col > float(t)).astype(jnp.float32)            # pack_padded validity (Bb,1)
        h = m * h_new + (1.0 - m) * h                           # freeze state past length
        gout_ref[lo:lo + Bb, :] = m * h_new                     # pad_packed zeros past length

    ht = h                                                      # (Bb, Hp) == hidden[-1]

    # (3) Attention: q1 as ONE flat (T*Bb, Hp)@(Hp, Hp) matmul from the gout scratch.
    q1 = jnp.dot(gout_ref[...], a1_ref[...],
                 preferred_element_type=jnp.float32)            # (T*Bb, Hp)
    q2 = jnp.dot(ht, a2_ref[...],
                 preferred_element_type=jnp.float32)            # (Bb, Hp)
    vt = vt_ref[...]                                            # (1, Hp)
    amask = amask_ref[...]                                      # (Bb, T)  (seq > 0)

    # Mask-dependent epilogue stays per-step so the working set is (Bb, Hp), the
    # attention mask keeps its compact (Bb, T) layout, and no (T*Bb, 1) column is
    # ever materialized.  gru_out is read back from the scratch (no duplicate copy).
    c_local = jnp.zeros((Bb, Hp), jnp.float32)
    for t in range(T):
        lo = t * Bb
        m = amask[:, t:t + 1]                                             # (Bb, 1)
        sig = jax.nn.sigmoid(q1[lo:lo + Bb, :] + m * q2)                  # (Bb, Hp)
        alpha = jnp.sum(sig * vt, axis=-1, keepdims=True)                 # (Bb, 1)
        c_local = c_local + alpha * gout_ref[lo:lo + Bb, :]

    # (4) c_t = [c_local, ht]; fold the `b` projection (split weight halves to
    #     avoid a lane concat):  ct_proj = c_local @ W_b[:H] + ht @ W_b[H:]
    ctp_ref[...] = (jnp.dot(c_local, bwl_ref[...], preferred_element_type=jnp.float32)
                    + jnp.dot(ht, bwg_ref[...], preferred_element_type=jnp.float32))


# ----------------------------------------------------------------------------
# Kernel 2: scores tile = ct_proj @ item_T_tile   (tiled over the vocabulary axis)
# ----------------------------------------------------------------------------
def _score_kernel(ctp_ref, itemT_ref, out_ref):
    out_ref[...] = jnp.dot(ctp_ref[...], itemT_ref[...],
                           preferred_element_type=jnp.float32)


# ----------------------------------------------------------------------------
# One-time parameter / layout preparation (hoisted out of the request path).
# ----------------------------------------------------------------------------
def _pad_gate_cols(w, H, Hp):
    # w: (rows, 3H) -> (rows, 3Hp) with each gate's columns zero-padded to Hp.
    rows = w.shape[0]
    w3 = w.reshape(rows, 3, H)
    w3 = jnp.pad(w3, ((0, 0), (0, 0), (0, Hp - H)))
    return w3.reshape(rows, 3 * Hp)


def prepare_narm_params(params, *, n_items, hidden_size, embedding_dim,
                        item_tile=2048, score_dtype=jnp.bfloat16):
    H, E = hidden_size, embedding_dim
    Hp = _round_up(H, 128)
    N1 = n_items + 1
    TN = _round_up(min(item_tile, _round_up(N1, 128)), 128)
    N1p = _round_up(N1, TN)

    emb = params['emb'].astype(jnp.float32)                     # (N1, E), row 0 == 0
    b_w = params['b'].astype(jnp.float32)                       # (2H, E)

    item_T = emb.T.astype(score_dtype)                          # cached, pre-transposed
    if N1p != N1:
        item_T = jnp.pad(item_T, ((0, 0), (0, N1p - N1)))

    return {
        'emb': emb,
        'wih': _pad_gate_cols(params['gru_w_ih'].T.astype(jnp.float32), H, Hp),   # (E, 3Hp)
        'whh': jnp.pad(_pad_gate_cols(params['gru_w_hh'].T.astype(jnp.float32), H, Hp),
                       ((0, Hp - H), (0, 0))),                                     # (Hp, 3Hp)
        'bih': _pad_gate_cols(params['gru_b_ih'].astype(jnp.float32)[None, :], H, Hp),
        'bhh': _pad_gate_cols(params['gru_b_hh'].astype(jnp.float32)[None, :], H, Hp),
        'a1': jnp.pad(params['a1'].T.astype(jnp.float32), ((0, Hp - H), (0, Hp - H))),
        'a2': jnp.pad(params['a2'].T.astype(jnp.float32), ((0, Hp - H), (0, Hp - H))),
        'vt': jnp.pad(params['vt'].astype(jnp.float32), ((0, 0), (0, Hp - H))),
        'bwl': jnp.pad(b_w[:H, :], ((0, Hp - H), (0, 0))),                          # (Hp, E)
        'bwg': jnp.pad(b_w[H:, :], ((0, Hp - H), (0, 0))),                          # (Hp, E)
        'item_T': item_T,                                                            # (E, N1p)
        'H': H, 'Hp': Hp, 'E': E, 'N1': N1, 'N1p': N1p, 'TN': TN,
    }


def _core_vmem_limit(T, Bb, E, Hp):
    # Rough per-block residency estimate (double-buffered inputs + scratch + spills).
    f32, lane = 4, 128
    El = _round_up(E, lane)
    emb_blk = T * Bb * El * f32
    mask_blk = Bb * lane * f32 + Bb * _round_up(T, lane) * f32
    weights = (_round_up(E, 8) * 3 * Hp + Hp * 3 * Hp + 2 * 8 * 3 * Hp
               + 2 * Hp * Hp + 8 * Hp + 2 * Hp * El) * f32
    out_blk = Bb * El * f32
    scratch = T * Bb * Hp * f32
    interm = T * Bb * 4 * Hp * f32                 # gi_all + q1 value spills
    est = 2 * (emb_blk + mask_blk + out_blk + weights) + scratch + interm
    return int(min(64 * 2**20, max(32 * 2**20, 2 * est)))


# ----------------------------------------------------------------------------
# Forward pass.
# ----------------------------------------------------------------------------
def narm_forward(seq, lengths, prep, *, batch_block=128):
    B, T = seq.shape
    Hp, E = prep['Hp'], prep['E']
    N1, N1p, TN = prep['N1'], prep['N1p'], prep['TN']

    Bb = min(_round_up(batch_block, 8), _round_up(B, 8))
    Bp = _round_up(B, Bb)
    G = Bp // Bb

    # --- per-request JAX glue: pad batch, time-major embedding gather, masks ----
    seq_p = jnp.pad(seq, ((0, Bp - B), (0, 0)))
    len_col = jnp.pad(lengths.astype(jnp.float32), ((0, Bp - B),))[:, None]   # (Bp, 1)
    amask = (seq_p > 0).astype(jnp.float32)                                   # (Bp, T)

    embs_tbe = jnp.take(prep['emb'], seq_p.T, axis=0)                         # (T, Bp, E)
    embs_g = embs_tbe.reshape(T, G, Bb, E).transpose(1, 0, 2, 3).reshape(G, T * Bb, E)

    core = pl.pallas_call(
        functools.partial(_narm_core_kernel, Bb=Bb, T=T, Hp=Hp),
        grid=(G,),
        in_specs=[
            pl.BlockSpec((None, T * Bb, E), lambda g: (g, 0, 0)),   # embeddings (time-major)
            pl.BlockSpec((Bb, 1), lambda g: (g, 0)),                # lengths column
            pl.BlockSpec((Bb, T), lambda g: (g, 0)),                # attention mask (seq>0)
            pl.BlockSpec((E, 3 * Hp), lambda g: (0, 0)),            # W_ih^T (gate-padded)
            pl.BlockSpec((Hp, 3 * Hp), lambda g: (0, 0)),           # W_hh^T (gate-padded)
            pl.BlockSpec((1, 3 * Hp), lambda g: (0, 0)),            # b_ih
            pl.BlockSpec((1, 3 * Hp), lambda g: (0, 0)),            # b_hh
            pl.BlockSpec((Hp, Hp), lambda g: (0, 0)),               # a1^T
            pl.BlockSpec((Hp, Hp), lambda g: (0, 0)),               # a2^T
            pl.BlockSpec((1, Hp), lambda g: (0, 0)),                # v_t
            pl.BlockSpec((Hp, E), lambda g: (0, 0)),                # W_b[:H]
            pl.BlockSpec((Hp, E), lambda g: (0, 0)),                # W_b[H:]
        ],
        out_specs=pl.BlockSpec((Bb, E), lambda g: (g, 0)),
        out_shape=jax.ShapeDtypeStruct((Bp, E), jnp.float32),
        scratch_shapes=[pltpu.VMEM((T * Bb, Hp), jnp.float32)],
        compiler_params=pltpu.CompilerParams(
            dimension_semantics=("parallel",),
            vmem_limit_bytes=_core_vmem_limit(T, Bb, E, Hp)),
    )
    ctp = core(embs_g, len_col, amask, prep['wih'], prep['whh'], prep['bih'],
               prep['bhh'], prep['a1'], prep['a2'], prep['vt'],
               prep['bwl'], prep['bwg'])

    # TODO(synk): emb_dropout / ct_dropout are inference-mode identities here.

    # --- score GEMM, tiled over the vocabulary axis (bf16 table, f32 accumulate) ---
    ctp_s = ctp.astype(prep['item_T'].dtype)
    scores = pl.pallas_call(
        _score_kernel,
        grid=(N1p // TN,),
        in_specs=[pl.BlockSpec((Bp, E), lambda j: (0, 0)),
                  pl.BlockSpec((E, TN), lambda j: (0, j))],
        out_specs=pl.BlockSpec((Bp, TN), lambda j: (0, j)),
        out_shape=jax.ShapeDtypeStruct((Bp, N1p), jnp.float32),
        compiler_params=pltpu.CompilerParams(dimension_semantics=("parallel",)),
    )(ctp_s, prep['item_T'])

    return scores[:B, :N1]


# ----------------------------------------------------------------------------
# Pure-JAX reference (mirrors the PyTorch forward) for a sanity check.
# ----------------------------------------------------------------------------
def narm_reference(seq, lengths, params, *, hidden_size):
    B, T = seq.shape
    H = hidden_size
    emb_table = params['emb']
    embs = jnp.take(emb_table, seq, axis=0)
    valid = (jnp.arange(T)[None, :] < lengths[:, None]).astype(jnp.float32)
    pad_mask = (seq > 0).astype(jnp.float32)

    wih_t, whh_t = params['gru_w_ih'].T, params['gru_w_hh'].T
    bih, bhh = params['gru_b_ih'], params['gru_b_hh']

    h = jnp.zeros((B, H), jnp.float32)
    outs = []
    for t in range(T):
        x = embs[:, t, :]
        gi = x @ wih_t + bih
        gh = h @ whh_t + bhh
        r = jax.nn.sigmoid(gi[:, :H] + gh[:, :H])
        z = jax.nn.sigmoid(gi[:, H:2 * H] + gh[:, H:2 * H])
        n = jnp.tanh(gi[:, 2 * H:] + r * gh[:, 2 * H:])
        h_new = (1 - z) * n + z * h
        m = valid[:, t][:, None]               # pack_padded: freeze state past length
        h = m * h_new + (1 - m) * h
        outs.append(m * h_new)                 # pad_packed: zeros past length
    gru_out = jnp.stack(outs, axis=1)
    ht = h
    q1 = gru_out @ params['a1'].T
    q2 = ht @ params['a2'].T
    q2m = pad_mask[:, :, None] * q2[:, None, :]
    alpha = jax.nn.sigmoid(q1 + q2m) @ params['vt'].T            # (B, T, 1)
    c_local = jnp.sum(alpha * gru_out, axis=1)
    c_t = jnp.concatenate([c_local, ht], axis=1)
    item_proj = emb_table @ params['b'].T                        # (N+1, 2H)
    return c_t @ item_proj.T


if __name__ == "__main__":
    n_items, hidden_size, embedding_dim = 50, 32, 32
    B, T = 4, 8

    key = jax.random.PRNGKey(0)
    ks = jax.random.split(key, 9)
    H, E = hidden_size, embedding_dim

    emb = 0.1 * jax.random.normal(ks[0], (n_items + 1, E), jnp.float32)
    emb = emb.at[0].set(0.0)                                    # padding_idx=0
    params = {
        'emb': emb,
        'gru_w_ih': 0.1 * jax.random.normal(ks[1], (3 * H, E), jnp.float32),
        'gru_w_hh': 0.1 * jax.random.normal(ks[2], (3 * H, H), jnp.float32),
        'gru_b_ih': 0.1 * jax.random.normal(ks[3], (3 * H,), jnp.float32),
        'gru_b_hh': 0.1 * jax.random.normal(ks[4], (3 * H,), jnp.float32),
        'a1': 0.1 * jax.random.normal(ks[5], (H, H), jnp.float32),
        'a2': 0.1 * jax.random.normal(ks[6], (H, H), jnp.float32),
        'vt': 0.1 * jax.random.normal(ks[7], (1, H), jnp.float32),
        'b': 0.1 * jax.random.normal(ks[8], (2 * H, E), jnp.float32),
    }

    # Sorted-descending lengths (pack_padded_sequence default); 0 = padding id.
    lengths = jnp.array([8, 6, 5, 3], dtype=jnp.int32)
    tok_key = jax.random.PRNGKey(42)
    tokens = jax.random.randint(tok_key, (B, T), 1, n_items + 1, dtype=jnp.int32)
    seq = jnp.where(jnp.arange(T)[None, :] < lengths[:, None], tokens, 0)

    # One-time prep (cached out of the request path in real serving).
    prep = prepare_narm_params(params, n_items=n_items, hidden_size=hidden_size,
                               embedding_dim=embedding_dim,
                               item_tile=2048, score_dtype=jnp.bfloat16)

    scores = narm_forward(seq, lengths, prep)
    scores = jax.block_until_ready(scores)

    ref = narm_reference(seq, lengths, params, hidden_size=hidden_size)
    # bf16 item table shifts scores by ~1e-3 abs; tolerance loosened accordingly.
    np.testing.assert_allclose(np.asarray(scores), np.asarray(ref),
                               rtol=2e-2, atol=2e-2)
    assert scores.shape == (B, n_items + 1)
    print("KERNEL_OK")
</pallas_src>

<mosaic_0001>
module attributes {stable_mosaic.version = 11 : i64} {
  func.func @_narm_core_kernel(%arg0: i32, %arg1: memref<1x64x32xf32, #tpu.memory_space<vmem>>, %arg2: memref<8x1xf32, #tpu.memory_space<vmem>>, %arg3: memref<8x8xf32, #tpu.memory_space<vmem>>, %arg4: memref<32x384xf32, #tpu.memory_space<vmem>>, %arg5: memref<128x384xf32, #tpu.memory_space<vmem>>, %arg6: memref<1x384xf32, #tpu.memory_space<vmem>>, %arg7: memref<1x384xf32, #tpu.memory_space<vmem>>, %arg8: memref<128x128xf32, #tpu.memory_space<vmem>>, %arg9: memref<128x128xf32, #tpu.memory_space<vmem>>, %arg10: memref<1x128xf32, #tpu.memory_space<vmem>>, %arg11: memref<128x32xf32, #tpu.memory_space<vmem>>, %arg12: memref<128x32xf32, #tpu.memory_space<vmem>>, %arg13: memref<8x32xf32, #tpu.memory_space<vmem>>, %arg14: memref<64x128xf32, #tpu.memory_space<vmem>>) attributes {dimension_semantics = [#tpu.dimension_semantics<parallel>], iteration_bounds = array<i64: 1>, scalar_prefetch = 0 : i64, scratch_operands = 1 : i64, tpu.core_type = #tpu.core_type<tc>, window_params = [{transform_indices = @transform_0, window_bounds = array<i64: 1, 64, 32>}, {transform_indices = @transform_1, window_bounds = array<i64: 8, 1>}, {transform_indices = @transform_2, window_bounds = array<i64: 8, 8>}, {pipeline_mode = #tpu.pipeline_mode<synchronous>, transform_indices = @transform_3, window_bounds = array<i64: 32, 384>}, {pipeline_mode = #tpu.pipeline_mode<synchronous>, transform_indices = @transform_4, window_bounds = array<i64: 128, 384>}, {pipeline_mode = #tpu.pipeline_mode<synchronous>, transform_indices = @transform_5, window_bounds = array<i64: 1, 384>}, {pipeline_mode = #tpu.pipeline_mode<synchronous>, transform_indices = @transform_6, window_bounds = array<i64: 1, 384>}, {pipeline_mode = #tpu.pipeline_mode<synchronous>, transform_indices = @transform_7, window_bounds = array<i64: 128, 128>}, {pipeline_mode = #tpu.pipeline_mode<synchronous>, transform_indices = @transform_8, window_bounds = array<i64: 128, 128>}, {pipeline_mode = #tpu.pipeline_mode<synchronous>, transform_indices = @transform_9, window_bounds = array<i64: 1, 128>}, {pipeline_mode = #tpu.pipeline_mode<synchronous>, transform_indices = @transform_10, window_bounds = array<i64: 128, 32>}, {pipeline_mode = #tpu.pipeline_mode<synchronous>, transform_indices = @transform_11, window_bounds = array<i64: 128, 32>}, {transform_indices = @transform_12, window_bounds = array<i64: 8, 32>}]} {
    %c0 = arith.constant 0 : index
    %c0_0 = arith.constant 0 : index
    %c0_1 = arith.constant 0 : index
    %0 = vector.load %arg1[%c0, %c0_0, %c0_1] : memref<1x64x32xf32, #tpu.memory_space<vmem>>, vector<1x64x32xf32>
    %1 = vector.shape_cast %0 : vector<1x64x32xf32> to vector<64x32xf32>
    %c0_2 = arith.constant 0 : index
    %c0_3 = arith.constant 0 : index
    %2 = vector.load %arg4[%c0_2, %c0_3] : memref<32x384xf32, #tpu.memory_space<vmem>>, vector<32x384xf32>
    %cst = arith.constant dense<0.000000e+00> : vector<64x384xf32>
    %3 = tpu.matmul %1, %2, %cst {dimension_numbers = #tpu.dot_dimension_numbers<[1], [0], [0], [1], [0, 0, 1, 1], [], []>} : vector<64x32xf32>, vector<32x384xf32>, vector<64x384xf32> -> vector<64x384xf32>
    %c0_4 = arith.constant 0 : index
    %c0_5 = arith.constant 0 : index
    %4 = vector.load %arg6[%c0_4, %c0_5] : memref<1x384xf32, #tpu.memory_space<vmem>>, vector<1x384xf32>
    %5 = vector.broadcast %4 : vector<1x384xf32> to vector<64x384xf32>
    %6 = arith.addf %3, %5 : vector<64x384xf32>
    %c0_6 = arith.constant 0 : index
    %c0_7 = arith.constant 0 : index
    %7 = vector.load %arg5[%c0_6, %c0_7] : memref<128x384xf32, #tpu.memory_space<vmem>>, vector<128x384xf32>
    %c0_8 = arith.constant 0 : index
    %c0_9 = arith.constant 0 : index
    %8 = vector.load %arg7[%c0_8, %c0_9] : memref<1x384xf32, #tpu.memory_space<vmem>>, vector<1x384xf32>
    %c0_10 = arith.constant 0 : index
    %c0_11 = arith.constant 0 : index
    %9 = vector.load %arg2[%c0_10, %c0_11] : memref<8x1xf32, #tpu.memory_space<vmem>>, vector<8x1xf32>
    %cst_12 = arith.constant 0.000000e+00 : f32
    %10 = vector.broadcast %cst_12 : f32 to vector<8x128xf32>
    %11 = vector.extract_strided_slice %6 {offsets = [0, 0], sizes = [8, 384], strides = [1, 1]} : vector<64x384xf32> to vector<8x384xf32>
    %cst_13 = arith.constant dense<0.000000e+00> : vector<8x384xf32>
    %12 = tpu.matmul %10, %7, %cst_13 {dimension_numbers = #tpu.dot_dimension_numbers<[1], [0], [0], [1], [0, 0, 1, 1], [], []>} : vector<8x128xf32>, vector<128x384xf32>, vector<8x384xf32> -> vector<8x384xf32>
    %13 = vector.broadcast %8 : vector<1x384xf32> to vector<8x384xf32>
    %14 = arith.addf %12, %13 : vector<8x384xf32>
    %15 = vector.extract_strided_slice %11 {offsets = [0, 0], sizes = [8, 128], strides = [1, 1]} : vector<8x384xf32> to vector<8x128xf32>
    %16 = vector.extract_strided_slice %14 {offsets = [0, 0], sizes = [8, 128], strides = [1, 1]} : vector<8x384xf32> to vector<8x128xf32>
    %17 = arith.addf %15, %16 : vector<8x128xf32>
    %18 = arith.negf %17 : vector<8x128xf32>
    %19 = math.exp %18 : vector<8x128xf32>
    %cst_14 = arith.constant 1.000000e+00 : f32
    %20 = vector.broadcast %cst_14 : f32 to vector<8x128xf32>
    %21 = arith.addf %20, %19 : vector<8x128xf32>
    %22 = arith.divf %20, %21 : vector<8x128xf32>
    %23 = vector.extract_strided_slice %11 {offsets = [0, 128], sizes = [8, 128], strides = [1, 1]} : vector<8x384xf32> to vector<8x128xf32>
    %24 = vector.extract_strided_slice %14 {offsets = [0, 128], sizes = [8, 128], strides = [1, 1]} : vector<8x384xf32> to vector<8x128xf32>
    %25 = arith.addf %23, %24 : vector<8x128xf32>
    %26 = arith.negf %25 : vector<8x128xf32>
    %27 = math.exp %26 : vector<8x128xf32>
    %cst_15 = arith.constant 1.000000e+00 : f32
    %28 = vector.broadcast %cst_15 : f32 to vector<8x128xf32>
    %29 = arith.addf %28, %27 : vector<8x128xf32>
    %30 = arith.divf %28, %29 : vector<8x128xf32>
    %31 = vector.extract_strided_slice %11 {offsets = [0, 256], sizes = [8, 128], strides = [1, 1]} : vector<8x384xf32> to vector<8x128xf32>
    %32 = vector.extract_strided_slice %14 {offsets = [0, 256], sizes = [8, 128], strides = [1, 1]} : vector<8x384xf32> to vector<8x128xf32>
    %33 = arith.mulf %22, %32 : vector<8x128xf32>
    %34 = arith.addf %31, %33 : vector<8x128xf32>
    %35 = math.tanh %34 : vector<8x128xf32>
    %cst_16 = arith.constant 1.000000e+00 : f32
    %36 = vector.broadcast %cst_16 : f32 to vector<8x128xf32>
    %37 = arith.subf %36, %30 : vector<8x128xf32>
    %38 = arith.mulf %37, %35 : vector<8x128xf32>
    %39 = arith.mulf %30, %10 : vector<8x128xf32>
    %40 = arith.addf %38, %39 : vector<8x128xf32>
    %cst_17 = arith.constant 0.000000e+00 : f32
    %41 = vector.broadcast %cst_17 : f32 to vector<8x1xf32>
    %42 = arith.cmpf ogt, %9, %41 : vector<8x1xf32>
    %43 = arith.extui %42 : vector<8x1xi1> to vector<8x1xi32>
    %44 = arith.sitofp %43 : vector<8x1xi32> to vector<8x1xf32>
    %45 = vector.broadcast %44 : vector<8x1xf32> to vector<8x128xf32>
    %46 = arith.mulf %45, %40 : vector<8x128xf32>
    %cst_18 = arith.constant 1.000000e+00 : f32
    %47 = vector.broadcast %cst_18 : f32 to vector<8x1xf32>
    %48 = arith.subf %47, %44 : vector<8x1xf32>
    %49 = vector.broadcast %48 : vector<8x1xf32> to vector<8x128xf32>
    %50 = arith.mulf %49, %10 : vector<8x128xf32>
    %51 = arith.addf %46, %50 : vector<8x128xf32>
    %52 = vector.broadcast %44 : vector<8x1xf32> to vector<8x128xf32>
    %53 = arith.mulf %52, %40 : vector<8x128xf32>
    %c0_19 = arith.constant 0 : index
    %c0_20 = arith.constant 0 : index
    %54 = vector.load %arg14[%c0_19, %c0_20] : memref<64x128xf32, #tpu.memory_space<vmem>>, vector<8x128xf32>
    tpu.vector_store %arg14[%c0_19, %c0_20], %53 {strides = array<i32>} : memref<64x128xf32, #tpu.memory_space<vmem>>, vector<8x128xf32>,
    %55 = vector.extract_strided_slice %6 {offsets = [8, 0], sizes = [8, 384], strides = [1, 1]} : vector<64x384xf32> to vector<8x384xf32>
    %cst_21 = arith.constant dense<0.000000e+00> : vector<8x384xf32>
    %56 = tpu.matmul %51, %7, %cst_21 {dimension_numbers = #tpu.dot_dimension_numbers<[1], [0], [0], [1], [0, 0, 1, 1], [], []>} : vector<8x128xf32>, vector<128x384xf32>, vector<8x384xf32> -> vector<8x384xf32>
    %57 = vector.broadcast %8 : vector<1x384xf32> to vector<8x384xf32>
    %58 = arith.addf %56, %57 : vector<8x384xf32>
    %59 = vector.extract_strided_slice %55 {offsets = [0, 0], sizes = [8, 128], strides = [1, 1]} : vector<8x384xf32> to vector<8x128xf32>
    %60 = vector.extract_strided_slice %58 {offsets = [0, 0], sizes = [8, 128], strides = [1, 1]} : vector<8x384xf32> to vector<8x128xf32>
    %61 = arith.addf %59, %60 : vector<8x128xf32>
    %62 = arith.negf %61 : vector<8x128xf32>
    %63 = math.exp %62 : vector<8x128xf32>
    %cst_22 = arith.constant 1.000000e+00 : f32
    %64 = vector.broadcast %cst_22 : f32 to vector<8x128xf32>
    %65 = arith.addf %64, %63 : vector<8x128xf32>
    %66 = arith.divf %64, %65 : vector<8x128xf32>
    %67 = vector.extract_strided_slice %55 {offsets = [0, 128], sizes = [8, 128], strides = [1, 1]} : vector<8x384xf32> to vector<8x128xf32>
    %68 = vector.extract_strided_slice %58 {offsets = [0, 128], sizes = [8, 128], strides = [1, 1]} : vector<8x384xf32> to vector<8x128xf32>
    %69 = arith.addf %67, %68 : vector<8x128xf32>
    %70 = arith.negf %69 : vector<8x128xf32>
    %71 = math.exp %70 : vector<8x128xf32>
    %cst_23 = arith.constant 1.000000e+00 : f32
    %72 = vector.broadcast %cst_23 : f32 to vector<8x128xf32>
    %73 = arith.addf %72, %71 : vector<8x128xf32>
    %74 = arith.divf %72, %73 : vector<8x128xf32>
    %75 = vector.extract_strided_slice %55 {offsets = [0, 256], sizes = [8, 128], strides = [1, 1]} : vector<8x384xf32> to vector<8x128xf32>
    %76 = vector.extract_strided_slice %58 {offsets = [0, 256], sizes = [8, 128], strides = [1, 1]} : vector<8x384xf32> to vector<8x128xf32>
    %77 = arith.mulf %66, %76 : vector<8x128xf32>
    %78 = arith.addf %75, %77 : vector<8x128xf32>
    %79 = math.tanh %78 : vector<8x128xf32>
    %cst_24 = arith.constant 1.000000e+00 : f32
    %80 = vector.broadcast %cst_24 : f32 to vector<8x128xf32>
    %81 = arith.subf %80, %74 : vector<8x128xf32>
    %82 = arith.mulf %81, %79 : vector<8x128xf32>
    %83 = arith.mulf %74, %51 : vector<8x128xf32>
    %84 = arith.addf %82, %83 : vector<8x128xf32>
    %cst_25 = arith.constant 1.000000e+00 : f32
    %85 = vector.broadcast %cst_25 : f32 to vector<8x1xf32>
    %86 = arith.cmpf ogt, %9, %85 : vector<8x1xf32>
    %87 = arith.extui %86 : vector<8x1xi1> to vector<8x1xi32>
    %88 = arith.sitofp %87 : vector<8x1xi32> to vector<8x1xf32>
    %89 = vector.broadcast %88 : vector<8x1xf32> to vector<8x128xf32>
    %90 = arith.mulf %89, %84 : vector<8x128xf32>
    %cst_26 = arith.constant 1.000000e+00 : f32
    %91 = vector.broadcast %cst_26 : f32 to vector<8x1xf32>
    %92 = arith.subf %91, %88 : vector<8x1xf32>
    %93 = vector.broadcast %92 : vector<8x1xf32> to vector<8x128xf32>
    %94 = arith.mulf %93, %51 : vector<8x128xf32>
    %95 = arith.addf %90, %94 : vector<8x128xf32>
    %96 = vector.broadcast %88 : vector<8x1xf32> to vector<8x128xf32>
    %97 = arith.mulf %96, %84 : vector<8x128xf32>
    %c8 = arith.constant 8 : index
    %c0_27 = arith.constant 0 : index
    %98 = vector.load %arg14[%c8, %c0_27] : memref<64x128xf32, #tpu.memory_space<vmem>>, vector<8x128xf32>
    tpu.vector_store %arg14[%c8, %c0_27], %97 {strides = array<i32>} : memref<64x128xf32, #tpu.memory_space<vmem>>, vector<8x128xf32>,
    %99 = vector.extract_strided_slice %6 {offsets = [16, 0], sizes = [8, 384], strides = [1, 1]} : vector<64x384xf32> to vector<8x384xf32>
    %cst_28 = arith.constant dense<0.000000e+00> : vector<8x384xf32>
    %100 = tpu.matmul %95, %7, %cst_28 {dimension_numbers = #tpu.dot_dimension_numbers<[1], [0], [0], [1], [0, 0, 1, 1], [], []>} : vector<8x128xf32>, vector<128x384xf32>, vector<8x384xf32> -> vector<8x384xf32>
    %101 = vector.broadcast %8 : vector<1x384xf32> to vector<8x384xf32>
    %102 = arith.addf %100, %101 : vector<8x384xf32>
    %103 = vector.extract_strided_slice %99 {offsets = [0, 0], sizes = [8, 128], strides = [1, 1]} : vector<8x384xf32> to vector<8x128xf32>
    %104 = vector.extract_strided_slice %102 {offsets = [0, 0], sizes = [8, 128], strides = [1, 1]} : vector<8x384xf32> to vector<8x128xf32>
    %105 = arith.addf %103, %104 : vector<8x128xf32>
    %106 = arith.negf %105 : vector<8x128xf32>
    %107 = math.exp %106 : vector<8x128xf32>
    %cst_29 = arith.constant 1.000000e+00 : f32
    %108 = vector.broadcast %cst_29 : f32 to vector<8x128xf32>
    %109 = arith.addf %108, %107 : vector<8x128xf32>
    %110 = arith.divf %108, %109 : vector<8x128xf32>
    %111 = vector.extract_strided_slice %99 {offsets = [0, 128], sizes = [8, 128], strides = [1, 1]} : vector<8x384xf32> to vector<8x128xf32>
    %112 = vector.extract_strided_slice %102 {offsets = [0, 128], sizes = [8, 128], strides = [1, 1]} : vector<8x384xf32> to vector<8x128xf32>
    %113 = arith.addf %111, %112 : vector<8x128xf32>
    %114 = arith.negf %113 : vector<8x128xf32>
    %115 = math.exp %114 : vector<8x128xf32>
    %cst_30 = arith.constant 1.000000e+00 : f32
    %116 = vector.broadcast %cst_30 : f32 to vector<8x128xf32>
    %117 = arith.addf %116, %115 : vector<8x128xf32>
    %118 = arith.divf %116, %117 : vector<8x128xf32>
    %119 = vector.extract_strided_slice %99 {offsets = [0, 256], sizes = [8, 128], strides = [1, 1]} : vector<8x384xf32> to vector<8x128xf32>
    %120 = vector.extract_strided_slice %102 {offsets = [0, 256], sizes = [8, 128], strides = [1, 1]} : vector<8x384xf32> to vector<8x128xf32>
    %121 = arith.mulf %110, %120 : vector<8x128xf32>
    %122 = arith.addf %119, %121 : vector<8x128xf32>
    %123 = math.tanh %122 : vector<8x128xf32>
    %cst_31 = arith.constant 1.000000e+00 : f32
    %124 = vector.broadcast %cst_31 : f32 to vector<8x128xf32>
    %125 = arith.subf %124, %118 : vector<8x128xf32>
    %126 = arith.mulf %125, %123 : vector<8x128xf32>
    %127 = arith.mulf %118, %95 : vector<8x128xf32>
    %128 = arith.addf %126, %127 : vector<8x128xf32>
    %cst_32 = arith.constant 2.000000e+00 : f32
    %129 = vector.broadcast %cst_32 : f32 to vector<8x1xf32>
    %130 = arith.cmpf ogt, %9, %129 : vector<8x1xf32>
    %131 = arith.extui %130 : vector<8x1xi1> to vector<8x1xi32>
    %132 = arith.sitofp %131 : vector<8x1xi32> to vector<8x1xf32>
    %133 = vector.broadcast %132 : vector<8x1xf32> to vector<8x128xf32>
    %134 = arith.mulf %133, %128 : vector<8x128xf32>
    %cst_33 = arith.constant 1.000000e+00 : f32
    %135 = vector.broadcast %cst_33 : f32 to vector<8x1xf32>
    %136 = arith.subf %135, %132 : vector<8x1xf32>
    %137 = vector.broadcast %136 : vector<8x1xf32> to vector<8x128xf32>
    %138 = arith.mulf %137, %95 : vector<8x128xf32>
    %139 = arith.addf %134, %138 : vector<8x128xf32>
    %140 = vector.broadcast %132 : vector<8x1xf32> to vector<8x128xf32>
    %141 = arith.mulf %140, %128 : vector<8x128xf32>
    %c16 = arith.constant 16 : index
    %c0_34 = arith.constant 0 : index
    %142 = vector.load %arg14[%c16, %c0_34] : memref<64x128xf32, #tpu.memory_space<vmem>>, vector<8x128xf32>
    tpu.vector_store %arg14[%c16, %c0_34], %141 {strides = array<i32>} : memref<64x128xf32, #tpu.memory_space<vmem>>, vector<8x128xf32>,
    %143 = vector.extract_strided_slice %6 {offsets = [24, 0], sizes = [8, 384], strides = [1, 1]} : vector<64x384xf32> to vector<8x384xf32>
    %cst_35 = arith.constant dense<0.000000e+00> : vector<8x384xf32>
    %144 = tpu.matmul %139, %7, %cst_35 {dimension_numbers = #tpu.dot_dimension_numbers<[1], [0], [0], [1], [0, 0, 1, 1], [], []>} : vector<8x128xf32>, vector<128x384xf32>, vector<8x384xf32> -> vector<8x384xf32>
    %145 = vector.broadcast %8 : vector<1x384xf32> to vector<8x384xf32>
    %146 = arith.addf %144, %145 : vector<8x384xf32>
    %147 = vector.extract_strided_slice %143 {offsets = [0, 0], sizes = [8, 128], strides = [1, 1]} : vector<8x384xf32> to vector<8x128xf32>
    %148 = vector.extract_strided_slice %146 {offsets = [0, 0], sizes = [8, 128], strides = [1, 1]} : vector<8x384xf32> to vector<8x128xf32>
    %149 = arith.addf %147, %148 : vector<8x128xf32>
    %150 = arith.negf %149 : vector<8x128xf32>
    %151 = math.exp %150 : vector<8x128xf32>
    %cst_36 = arith.constant 1.000000e+00 : f32
    %152 = vector.broadcast %cst_36 : f32 to vector<8x128xf32>
    %153 = arith.addf %152, %151 : vector<8x128xf32>
    %154 = arith.divf %152, %153 : vector<8x128xf32>
    %155 = vector.extract_strided_slice %143 {offsets = [0, 128], sizes = [8, 128], strides = [1, 1]} : vector<8x384xf32> to vector<8x128xf32>
    %156 = vector.extract_strided_slice %146 {offsets = [0, 128], sizes = [8, 128], strides = [1, 1]} : vector<8x384xf32> to vector<8x128xf32>
    %157 = arith.addf %155, %156 : vector<8x128xf32>
    %158 = arith.negf %157 : vector<8x128xf32>
    %159 = math.exp %158 : vector<8x128xf32>
    %cst_37 = arith.constant 1.000000e+00 : f32
    %160 = vector.broadcast %cst_37 : f32 to vector<8x128xf32>
    %161 = arith.addf %160, %159 : vector<8x128xf32>
    %162 = arith.divf %160, %161 : vector<8x128xf32>
    %163 = vector.extract_strided_slice %143 {offsets = [0, 256], sizes = [8, 128], strides = [1, 1]} : vector<8x384xf32> to vector<8x128xf32>
    %164 = vector.extract_strided_slice %146 {offsets = [0, 256], sizes = [8, 128], strides = [1, 1]} : vector<8x384xf32> to vector<8x128xf32>
    %165 = arith.mulf %154, %164 : vector<8x128xf32>
    %166 = arith.addf %163, %165 : vector<8x128xf32>
    %167 = math.tanh %166 : vector<8x128xf32>
    %cst_38 = arith.constant 1.000000e+00 : f32
    %168 = vector.broadcast %cst_38 : f32 to vector<8x128xf32>
    %169 = arith.subf %168, %162 : vector<8x128xf32>
    %170 = arith.mulf %169, %167 : vector<8x128xf32>
    %171 = arith.mulf %162, %139 : vector<8x128xf32>
    %172 = arith.addf %170, %171 : vector<8x128xf32>
    %cst_39 = arith.constant 3.000000e+00 : f32
    %173 = vector.broadcast %cst_39 : f32 to vector<8x1xf32>
    %174 = arith.cmpf ogt, %9, %173 : vector<8x1xf32>
    %175 = arith.extui %174 : vector<8x1xi1> to vector<8x1xi32>
    %176 = arith.sitofp %175 : vector<8x1xi32> to vector<8x1xf32>
    %177 = vector.broadcast %176 : vector<8x1xf32> to vector<8x128xf32>
    %178 = arith.mulf %177, %172 : vector<8x128xf32>
    %cst_40 = arith.constant 1.000000e+00 : f32
    %179 = vector.broadcast %cst_40 : f32 to vector<8x1xf32>
    %180 = arith.subf %179, %176 : vector<8x1xf32>
    %181 = vector.broadcast %180 : vector<8x1xf32> to vector<8x128xf32>
    %182 = arith.mulf %181, %139 : vector<8x128xf32>
    %183 = arith.addf %178, %182 : vector<8x128xf32>
    %184 = vector.broadcast %176 : vector<8x1xf32> to vector<8x128xf32>
    %185 = arith.mulf %184, %172 : vector<8x128xf32>
    %c24 = arith.constant 24 : index
    %c0_41 = arith.constant 0 : index
    %186 = vector.load %arg14[%c24, %c0_41] : memref<64x128xf32, #tpu.memory_space<vmem>>, vector<8x128xf32>
    tpu.vector_store %arg14[%c24, %c0_41], %185 {strides = array<i32>} : memref<64x128xf32, #tpu.memory_space<vmem>>, vector<8x128xf32>,
    %187 = vector.extract_strided_slice %6 {offsets = [32, 0], sizes = [8, 384], strides = [1, 1]} : vector<64x384xf32> to vector<8x384xf32>
    %cst_42 = arith.constant dense<0.000000e+00> : vector<8x384xf32>
    %188 = tpu.matmul %183, %7, %cst_42 {dimension_numbers = #tpu.dot_dimension_numbers<[1], [0], [0], [1], [0, 0, 1, 1], [], []>} : vector<8x128xf32>, vector<128x384xf32>, vector<8x384xf32> -> vector<8x384xf32>
    %189 = vector.broadcast %8 : vector<1x384xf32> to vector<8x384xf32>
    %190 = arith.addf %188, %189 : vector<8x384xf32>
    %191 = vector.extract_strided_slice %187 {offsets = [0, 0], sizes = [8, 128], strides = [1, 1]} : vector<8x384xf32> to vector<8x128xf32>
    %192 = vector.extract_strided_slice %190 {offsets = [0, 0], sizes = [8, 128], strides = [1, 1]} : vector<8x384xf32> to vector<8x128xf32>
    %193 = arith.addf %191, %192 : vector<8x128xf32>
    %194 = arith.negf %193 : vector<8x128xf32>
    %195 = math.exp %194 : vector<8x128xf32>
    %cst_43 = arith.constant 1.000000e+00 : f32
    %196 = vector.broadcast %cst_43 : f32 to vector<8x128xf32>
    %197 = arith.addf %196, %195 : vector<8x128xf32>
    %198 = arith.divf %196, %197 : vector<8x128xf32>
    %199 = vector.extract_strided_slice %187 {offsets = [0, 128], sizes = [8, 128], strides = [1, 1]} : vector<8x384xf32> to vector<8x128xf32>
    %200 = vector.extract_strided_slice %190 {offsets = [0, 128], sizes = [8, 128], strides = [1, 1]} : vector<8x384xf32> to vector<8x128xf32>
    %201 = arith.addf %199, %200 : vector<8x128xf32>
    %202 = arith.negf %201 : vector<8x128xf32>
    %203 = math.exp %202 : vector<8x128xf32>
    %cst_44 = arith.constant 1.000000e+00 : f32
    %204 = vector.broadcast %cst_44 : f32 to vector<8x128xf32>
    %205 = arith.addf %204, %203 : vector<8x128xf32>
    %206 = arith.divf %204, %205 : vector<8x128xf32>
    %207 = vector.extract_strided_slice %187 {offsets = [0, 256], sizes = [8, 128], strides = [1, 1]} : vector<8x384xf32> to vector<8x128xf32>
    %208 = vector.extract_strided_slice %190 {offsets = [0, 256], sizes = [8, 128], strides = [1, 1]} : vector<8x384xf32> to vector<8x128xf32>
    %209 = arith.mulf %198, %208 : vector<8x128xf32>
    %210 = arith.addf %207, %209 : vector<8x128xf32>
    %211 = math.tanh %210 : vector<8x128xf32>
    %cst_45 = arith.constant 1.000000e+00 : f32
    %212 = vector.broadcast %cst_45 : f32 to vector<8x128xf32>
    %213 = arith.subf %212, %206 : vector<8x128xf32>
    %214 = arith.mulf %213, %211 : vector<8x128xf32>
    %215 = arith.mulf %206, %183 : vector<8x128xf32>
    %216 = arith.addf %214, %215 : vector<8x128xf32>
    %cst_46 = arith.constant 4.000000e+00 : f32
    %217 = vector.broadcast %cst_46 : f32 to vector<8x1xf32>
    %218 = arith.cmpf ogt, %9, %217 : vector<8x1xf32>
    %219 = arith.extui %218 : vector<8x1xi1> to vector<8x1xi32>
    %220 = arith.sitofp %219 : vector<8x1xi32> to vector<8x1xf32>
    %221 = vector.broadcast %220 : vector<8x1xf32> to vector<8x128xf32>
    %222 = arith.mulf %221, %216 : vector<8x128xf32>
    %cst_47 = arith.constant 1.000000e+00 : f32
    %223 = vector.broadcast %cst_47 : f32 to vector<8x1xf32>
    %224 = arith.subf %223, %220 : vector<8x1xf32>
    %225 = vector.broadcast %224 : vector<8x1xf32> to vector<8x128xf32>
    %226 = arith.mulf %225, %183 : vector<8x128xf32>
    %227 = arith.addf %222, %226 : vector<8x128xf32>
    %228 = vector.broadcast %220 : vector<8x1xf32> to vector<8x128xf32>
    %229 = arith.mulf %228, %216 : vector<8x128xf32>
    %c32 = arith.constant 32 : index
    %c0_48 = arith.constant 0 : index
    %230 = vector.load %arg14[%c32, %c0_48] : memref<64x128xf32, #tpu.memory_space<vmem>>, vector<8x128xf32>
    tpu.vector_store %arg14[%c32, %c0_48], %229 {strides = array<i32>} : memref<64x128xf32, #tpu.memory_space<vmem>>, vector<8x128xf32>,
    %231 = vector.extract_strided_slice %6 {offsets = [40, 0], sizes = [8, 384], strides = [1, 1]} : vector<64x384xf32> to vector<8x384xf32>
    %cst_49 = arith.constant dense<0.000000e+00> : vector<8x384xf32>
    %232 = tpu.matmul %227, %7, %cst_49 {dimension_numbers = #tpu.dot_dimension_numbers<[1], [0], [0], [1], [0, 0, 1, 1], [], []>} : vector<8x128xf32>, vector<128x384xf32>, vector<8x384xf32> -> vector<8x384xf32>
    %233 = vector.broadcast %8 : vector<1x384xf32> to vector<8x384xf32>
    %234 = arith.addf %232, %233 : vector<8x384xf32>
    %235 = vector.extract_strided_slice %231 {offsets = [0, 0], sizes = [8, 128], strides = [1, 1]} : vector<8x384xf32> to vector<8x128xf32>
    %236 = vector.extract_strided_slice %234 {offsets = [0, 0], sizes = [8, 128], strides = [1, 1]} : vector<8x384xf32> to vector<8x128xf32>
    %237 = arith.addf %235, %236 : vector<8x128xf32>
    %238 = arith.negf %237 : vector<8x128xf32>
    %239 = math.exp %238 : vector<8x128xf32>
    %cst_50 = arith.constant 1.000000e+00 : f32
    %240 = vector.broadcast %cst_50 : f32 to vector<8x128xf32>
    %241 = arith.addf %240, %239 : vector<8x128xf32>
    %242 = arith.divf %240, %241 : vector<8x128xf32>
    %243 = vector.extract_strided_slice %231 {offsets = [0, 128], sizes = [8, 128], strides = [1, 1]} : vector<8x384xf32> to vector<8x128xf32>
    %244 = vector.extract_strided_slice %234 {offsets = [0, 128], sizes = [8, 128], strides = [1, 1]} : vector<8x384xf32> to vector<8x128xf32>
    %245 = arith.addf %243, %244 : vector<8x128xf32>
    %246 = arith.negf %245 : vector<8x128xf32>
    %247 = math.exp %246 : vector<8x128xf32>
    %cst_51 = arith.constant 1.000000e+00 : f32
    %248 = vector.broadcast %cst_51 : f32 to vector<8x128xf32>
    %249 = arith.addf %248, %247 : vector<8x128xf32>
    %250 = arith.divf %248, %249 : vector<8x128xf32>
    %251 = vector.extract_strided_slice %231 {offsets = [0, 256], sizes = [8, 128], strides = [1, 1]} : vector<8x384xf32> to vector<8x128xf32>
    %252 = vector.extract_strided_slice %234 {offsets = [0, 256], sizes = [8, 128], strides = [1, 1]} : vector<8x384xf32> to vector<8x128xf32>
    %253 = arith.mulf %242, %252 : vector<8x128xf32>
    %254 = arith.addf %251, %253 : vector<8x128xf32>
    %255 = math.tanh %254 : vector<8x128xf32>
    %cst_52 = arith.constant 1.000000e+00 : f32
    %256 = vector.broadcast %cst_52 : f32 to vector<8x128xf32>
    %257 = arith.subf %256, %250 : vector<8x128xf32>
    %258 = arith.mulf %257, %255 : vector<8x128xf32>
    %259 = arith.mulf %250, %227 : vector<8x128xf32>
    %260 = arith.addf %258, %259 : vector<8x128xf32>
    %cst_53 = arith.constant 5.000000e+00 : f32
    %261 = vector.broadcast %cst_53 : f32 to vector<8x1xf32>
    %262 = arith.cmpf ogt, %9, %261 : vector<8x1xf32>
    %263 = arith.extui %262 : vector<8x1xi1> to vector<8x1xi32>
    %264 = arith.sitofp %263 : vector<8x1xi32> to vector<8x1xf32>
    %265 = vector.broadcast %264 : vector<8x1xf32> to vector<8x128xf32>
    %266 = arith.mulf %265, %260 : vector<8x128xf32>
    %cst_54 = arith.constant 1.000000e+00 : f32
    %267 = vector.broadcast %cst_54 : f32 to vector<8x1xf32>
    %268 = arith.subf %267, %264 : vector<8x1xf32>
    %269 = vector.broadcast %268 : vector<8x1xf32> to vector<8x128xf32>
    %270 = arith.mulf %269, %227 : vector<8x128xf32>
    %271 = arith.addf %266, %270 : vector<8x128xf32>
    %272 = vector.broadcast %264 : vector<8x1xf32> to vector<8x128xf32>
    %273 = arith.mulf %272, %260 : vector<8x128xf32>
    %c40 = arith.constant 40 : index
    %c0_55 = arith.constant 0 : index
    %274 = vector.load %arg14[%c40, %c0_55] : memref<64x128xf32, #tpu.memory_space<vmem>>, vector<8x128xf32>
    tpu.vector_store %arg14[%c40, %c0_55], %273 {strides = array<i32>} : memref<64x128xf32, #tpu.memory_space<vmem>>, vector<8x128xf32>,
    %275 = vector.extract_strided_slice %6 {offsets = [48, 0], sizes = [8, 384], strides = [1, 1]} : vector<64x384xf32> to vector<8x384xf32>
    %cst_56 = arith.constant dense<0.000000e+00> : vector<8x384xf32>
    %276 = tpu.matmul %271, %7, %cst_56 {dimension_numbers = #tpu.dot_dimension_numbers<[1], [0], [0], [1], [0, 0, 1, 1], [], []>} : vector<8x128xf32>, vector<128x384xf32>, vector<8x384xf32> -> vector<8x384xf32>
    %277 = vector.broadcast %8 : vector<1x384xf32> to vector<8x384xf32>
    %278 = arith.addf %276, %277 : vector<8x384xf32>
    %279 = vector.extract_strided_slice %275 {offsets = [0, 0], sizes = [8, 128], strides = [1, 1]} : vector<8x384xf32> to vector<8x128xf32>
    %280 = vector.extract_strided_slice %278 {offsets = [0, 0], sizes = [8, 128], strides = [1, 1]} : vector<8x384xf32> to vector<8x128xf32>
    %281 = arith.addf %279, %280 : vector<8x128xf32>
    %282 = arith.negf %281 : vector<8x128xf32>
    %283 = math.exp %282 : vector<8x128xf32>
    %cst_57 = arith.constant 1.000000e+00 : f32
    %284 = vector.broadcast %cst_57 : f32 to vector<8x128xf32>
    %285 = arith.addf %284, %283 : vector<8x128xf32>
    %286 = arith.divf %284, %285 : vector<8x128xf32>
    %287 = vector.extract_strided_slice %275 {offsets = [0, 128], sizes = [8, 128], strides = [1, 1]} : vector<8x384xf32> to vector<8x128xf32>
    %288 = vector.extract_strided_slice %278 {offsets = [0, 128], sizes = [8, 128], strides = [1, 1]} : vector<8x384xf32> to vector<8x128xf32>
    %289 = arith.addf %287, %288 : vector<8x128xf32>
    %290 = arith.negf %289 : vector<8x128xf32>
    %291 = math.exp %290 : vector<8x128xf32>
    %cst_58 = arith.constant 1.000000e+00 : f32
    %292 = vector.broadcast %cst_58 : f32 to vector<8x128xf32>
    %293 = arith.addf %292, %291 : vector<8x128xf32>
    %294 = arith.divf %292, %293 : vector<8x128xf32>
    %295 = vector.extract_strided_slice %275 {offsets = [0, 256], sizes = [8, 128], strides = [1, 1]} : vector<8x384xf32> to vector<8x128xf32>
    %296 = vector.extract_strided_slice %278 {offsets = [0, 256], sizes = [8, 128], strides = [1, 1]} : vector<8x384xf32> to vector<8x128xf32>
    %297 = arith.mulf %286, %296 : vector<8x128xf32>
    %298 = arith.addf %295, %297 : vector<8x128xf32>
    %299 = math.tanh %298 : vector<8x128xf32>
    %cst_59 = arith.constant 1.000000e+00 : f32
    %300 = vector.broadcast %cst_59 : f32 to vector<8x128xf32>
    %301 = arith.subf %300, %294 : vector<8x128xf32>
    %302 = arith.mulf %301, %299 : vector<8x128xf32>
    %303 = arith.mulf %294, %271 : vector<8x128xf32>
    %304 = arith.addf %302, %303 : vector<8x128xf32>
    %cst_60 = arith.constant 6.000000e+00 : f32
    %305 = vector.broadcast %cst_60 : f32 to vector<8x1xf32>
    %306 = arith.cmpf ogt, %9, %305 : vector<8x1xf32>
    %307 = arith.extui %306 : vector<8x1xi1> to vector<8x1xi32>
    %308 = arith.sitofp %307 : vector<8x1xi32> to vector<8x1xf32>
    %309 = vector.broadcast %308 : vector<8x1xf32> to vector<8x128xf32>
    %310 = arith.mulf %309, %304 : vector<8x128xf32>
    %cst_61 = arith.constant 1.000000e+00 : f32
    %311 = vector.broadcast %cst_61 : f32 to vector<8x1xf32>
    %312 = arith.subf %311, %308 : vector<8x1xf32>
    %313 = vector.broadcast %312 : vector<8x1xf32> to vector<8x128xf32>
    %314 = arith.mulf %313, %271 : vector<8x128xf32>
    %315 = arith.addf %310, %314 : vector<8x128xf32>
    %316 = vector.broadcast %308 : vector<8x1xf32> to vector<8x128xf32>
    %317 = arith.mulf %316, %304 : vector<8x128xf32>
    %c48 = arith.constant 48 : index
    %c0_62 = arith.constant 0 : index
    %318 = vector.load %arg14[%c48, %c0_62] : memref<64x128xf32, #tpu.memory_space<vmem>>, vector<8x128xf32>
    tpu.vector_store %arg14[%c48, %c0_62], %317 {strides = array<i32>} : memref<64x128xf32, #tpu.memory_space<vmem>>, vector<8x128xf32>,
    %319 = vector.extract_strided_slice %6 {offsets = [56, 0], sizes = [8, 384], strides = [1, 1]} : vector<64x384xf32> to vector<8x384xf32>
    %cst_63 = arith.constant dense<0.000000e+00> : vector<8x384xf32>
    %320 = tpu.matmul %315, %7, %cst_63 {dimension_numbers = #tpu.dot_dimension_numbers<[1], [0], [0], [1], [0, 0, 1, 1], [], []>} : vector<8x128xf32>, vector<128x384xf32>, vector<8x384xf32> -> vector<8x384xf32>
    %321 = vector.broadcast %8 : vector<1x384xf32> to vector<8x384xf32>
    %322 = arith.addf %320, %321 : vector<8x384xf32>
    %323 = vector.extract_strided_slice %319 {offsets = [0, 0], sizes = [8, 128], strides = [1, 1]} : vector<8x384xf32> to vector<8x128xf32>
    %324 = vector.extract_strided_slice %322 {offsets = [0, 0], sizes = [8, 128], strides = [1, 1]} : vector<8x384xf32> to vector<8x128xf32>
    %325 = arith.addf %323, %324 : vector<8x128xf32>
    %326 = arith.negf %325 : vector<8x128xf32>
    %327 = math.exp %326 : vector<8x128xf32>
    %cst_64 = arith.constant 1.000000e+00 : f32
    %328 = vector.broadcast %cst_64 : f32 to vector<8x128xf32>
    %329 = arith.addf %328, %327 : vector<8x128xf32>
    %330 = arith.divf %328, %329 : vector<8x128xf32>
    %331 = vector.extract_strided_slice %319 {offsets = [0, 128], sizes = [8, 128], strides = [1, 1]} : vector<8x384xf32> to vector<8x128xf32>
    %332 = vector.extract_strided_slice %322 {offsets = [0, 128], sizes = [8, 128], strides = [1, 1]} : vector<8x384xf32> to vector<8x128xf32>
    %333 = arith.addf %331, %332 : vector<8x128xf32>
    %334 = arith.negf %333 : vector<8x128xf32>
    %335 = math.exp %334 : vector<8x128xf32>
    %cst_65 = arith.constant 1.000000e+00 : f32
    %336 = vector.broadcast %cst_65 : f32 to vector<8x128xf32>
    %337 = arith.addf %336, %335 : vector<8x128xf32>
    %338 = arith.divf %336, %337 : vector<8x128xf32>
    %339 = vector.extract_strided_slice %319 {offsets = [0, 256], sizes = [8, 128], strides = [1, 1]} : vector<8x384xf32> to vector<8x128xf32>
    %340 = vector.extract_strided_slice %322 {offsets = [0, 256], sizes = [8, 128], strides = [1, 1]} : vector<8x384xf32> to vector<8x128xf32>
    %341 = arith.mulf %330, %340 : vector<8x128xf32>
    %342 = arith.addf %339, %341 : vector<8x128xf32>
    %343 = math.tanh %342 : vector<8x128xf32>
    %cst_66 = arith.constant 1.000000e+00 : f32
    %344 = vector.broadcast %cst_66 : f32 to vector<8x128xf32>
    %345 = arith.subf %344, %338 : vector<8x128xf32>
    %346 = arith.mulf %345, %343 : vector<8x128xf32>
    %347 = arith.mulf %338, %315 : vector<8x128xf32>
    %348 = arith.addf %346, %347 : vector<8x128xf32>
    %cst_67 = arith.constant 7.000000e+00 : f32
    %349 = vector.broadcast %cst_67 : f32 to vector<8x1xf32>
    %350 = arith.cmpf ogt, %9, %349 : vector<8x1xf32>
    %351 = arith.extui %350 : vector<8x1xi1> to vector<8x1xi32>
    %352 = arith.sitofp %351 : vector<8x1xi32> to vector<8x1xf32>
    %353 = vector.broadcast %352 : vector<8x1xf32> to vector<8x128xf32>
    %354 = arith.mulf %353, %348 : vector<8x128xf32>
    %cst_68 = arith.constant 1.000000e+00 : f32
    %355 = vector.broadcast %cst_68 : f32 to vector<8x1xf32>
    %356 = arith.subf %355, %352 : vector<8x1xf32>
    %357 = vector.broadcast %356 : vector<8x1xf32> to vector<8x128xf32>
    %358 = arith.mulf %357, %315 : vector<8x128xf32>
    %359 = arith.addf %354, %358 : vector<8x128xf32>
    %360 = vector.broadcast %352 : vector<8x1xf32> to vector<8x128xf32>
    %361 = arith.mulf %360, %348 : vector<8x128xf32>
    %c56 = arith.constant 56 : index
    %c0_69 = arith.constant 0 : index
    %362 = vector.load %arg14[%c56, %c0_69] : memref<64x128xf32, #tpu.memory_space<vmem>>, vector<8x128xf32>
    tpu.vector_store %arg14[%c56, %c0_69], %361 {strides = array<i32>} : memref<64x128xf32, #tpu.memory_space<vmem>>, vector<8x128xf32>,
    %c0_70 = arith.constant 0 : index
    %c0_71 = arith.constant 0 : index
    %363 = vector.load %arg14[%c0_70, %c0_71] : memref<64x128xf32, #tpu.memory_space<vmem>>, vector<64x128xf32>
    %c0_72 = arith.constant 0 : index
    %c0_73 = arith.constant 0 : index
    %364 = vector.load %arg8[%c0_72, %c0_73] : memref<128x128xf32, #tpu.memory_space<vmem>>, vector<128x128xf32>
    %cst_74 = arith.constant dense<0.000000e+00> : vector<64x128xf32>
    %365 = tpu.matmul %363, %364, %cst_74 {dimension_numbers = #tpu.dot_dimension_numbers<[1], [0], [0], [1], [0, 0, 1, 1], [], []>} : vector<64x128xf32>, vector<128x128xf32>, vector<64x128xf32> -> vector<64x128xf32>
    %c0_75 = arith.constant 0 : index
    %c0_76 = arith.constant 0 : index
    %366 = vector.load %arg9[%c0_75, %c0_76] : memref<128x128xf32, #tpu.memory_space<vmem>>, vector<128x128xf32>
    %cst_77 = arith.constant dense<0.000000e+00> : vector<8x128xf32>
    %367 = tpu.matmul %359, %366, %cst_77 {dimension_numbers = #tpu.dot_dimension_numbers<[1], [0], [0], [1], [0, 0, 1, 1], [], []>} : vector<8x128xf32>, vector<128x128xf32>, vector<8x128xf32> -> vector<8x128xf32>
    %c0_78 = arith.constant 0 : index
    %c0_79 = arith.constant 0 : index
    %368 = vector.load %arg10[%c0_78, %c0_79] : memref<1x128xf32, #tpu.memory_space<vmem>>, vector<1x128xf32>
    %c0_80 = arith.constant 0 : index
    %c0_81 = arith.constant 0 : index
    %369 = vector.load %arg3[%c0_80, %c0_81] : memref<8x8xf32, #tpu.memory_space<vmem>>, vector<8x8xf32>
    %cst_82 = arith.constant 0.000000e+00 : f32
    %370 = vector.broadcast %cst_82 : f32 to vector<8x128xf32>
    %371 = vector.extract_strided_slice %369 {offsets = [0, 0], sizes = [8, 1], strides = [1, 1]} : vector<8x8xf32> to vector<8x1xf32>
    %372 = vector.extract_strided_slice %365 {offsets = [0, 0], sizes = [8, 128], strides = [1, 1]} : vector<64x128xf32> to vector<8x128xf32>
    %373 = vector.broadcast %371 : vector<8x1xf32> to vector<8x128xf32>
    %374 = arith.mulf %373, %367 : vector<8x128xf32>
    %375 = arith.addf %372, %374 : vector<8x128xf32>
    %376 = arith.negf %375 : vector<8x128xf32>
    %377 = math.exp %376 : vector<8x128xf32>
    %cst_83 = arith.constant 1.000000e+00 : f32
    %378 = vector.broadcast %cst_83 : f32 to vector<8x128xf32>
    %379 = arith.addf %378, %377 : vector<8x128xf32>
    %380 = arith.divf %378, %379 : vector<8x128xf32>
    %381 = vector.broadcast %368 : vector<1x128xf32> to vector<8x128xf32>
    %382 = arith.mulf %380, %381 : vector<8x128xf32>
    %cst_84 = arith.constant dense<0.000000e+00> : vector<8xf32>
    %383 = vector.multi_reduction <add>, %382, %cst_84 [1] : vector<8x128xf32> to vector<8xf32>
    %384 = vector.shape_cast %383 : vector<8xf32> to vector<8x1xf32>
    %c0_85 = arith.constant 0 : index
    %c0_86 = arith.constant 0 : index
    %385 = vector.load %arg14[%c0_85, %c0_86] : memref<64x128xf32, #tpu.memory_space<vmem>>, vector<8x128xf32>
    %386 = vector.broadcast %384 : vector<8x1xf32> to vector<8x128xf32>
    %387 = arith.mulf %386, %385 : vector<8x128xf32>
    %388 = arith.addf %370, %387 : vector<8x128xf32>
    %389 = vector.extract_strided_slice %369 {offsets = [0, 1], sizes = [8, 1], strides = [1, 1]} : vector<8x8xf32> to vector<8x1xf32>
    %390 = vector.extract_strided_slice %365 {offsets = [8, 0], sizes = [8, 128], strides = [1, 1]} : vector<64x128xf32> to vector<8x128xf32>
    %391 = vector.broadcast %389 : vector<8x1xf32> to vector<8x128xf32>
    %392 = arith.mulf %391, %367 : vector<8x128xf32>
    %393 = arith.addf %390, %392 : vector<8x128xf32>
    %394 = arith.negf %393 : vector<8x128xf32>
    %395 = math.exp %394 : vector<8x128xf32>
    %cst_87 = arith.constant 1.000000e+00 : f32
    %396 = vector.broadcast %cst_87 : f32 to vector<8x128xf32>
    %397 = arith.addf %396, %395 : vector<8x128xf32>
    %398 = arith.divf %396, %397 : vector<8x128xf32>
    %399 = vector.broadcast %368 : vector<1x128xf32> to vector<8x128xf32>
    %400 = arith.mulf %398, %399 : vector<8x128xf32>
    %cst_88 = arith.constant dense<0.000000e+00> : vector<8xf32>
    %401 = vector.multi_reduction <add>, %400, %cst_88 [1] : vector<8x128xf32> to vector<8xf32>
    %402 = vector.shape_cast %401 : vector<8xf32> to vector<8x1xf32>
    %c8_89 = arith.constant 8 : index
    %c0_90 = arith.constant 0 : index
    %403 = vector.load %arg14[%c8_89, %c0_90] : memref<64x128xf32, #tpu.memory_space<vmem>>, vector<8x128xf32>
    %404 = vector.broadcast %402 : vector<8x1xf32> to vector<8x128xf32>
    %405 = arith.mulf %404, %403 : vector<8x128xf32>
    %406 = arith.addf %388, %405 : vector<8x128xf32>
    %407 = vector.extract_strided_slice %369 {offsets = [0, 2], sizes = [8, 1], strides = [1, 1]} : vector<8x8xf32> to vector<8x1xf32>
    %408 = vector.extract_strided_slice %365 {offsets = [16, 0], sizes = [8, 128], strides = [1, 1]} : vector<64x128xf32> to vector<8x128xf32>
    %409 = vector.broadcast %407 : vector<8x1xf32> to vector<8x128xf32>
    %410 = arith.mulf %409, %367 : vector<8x128xf32>
    %411 = arith.addf %408, %410 : vector<8x128xf32>
    %412 = arith.negf %411 : vector<8x128xf32>
    %413 = math.exp %412 : vector<8x128xf32>
    %cst_91 = arith.constant 1.000000e+00 : f32
    %414 = vector.broadcast %cst_91 : f32 to vector<8x128xf32>
    %415 = arith.addf %414, %413 : vector<8x128xf32>
    %416 = arith.divf %414, %415 : vector<8x128xf32>
    %417 = vector.broadcast %368 : vector<1x128xf32> to vector<8x128xf32>
    %418 = arith.mulf %416, %417 : vector<8x128xf32>
    %cst_92 = arith.constant dense<0.000000e+00> : vector<8xf32>
    %419 = vector.multi_reduction <add>, %418, %cst_92 [1] : vector<8x128xf32> to vector<8xf32>
    %420 = vector.shape_cast %419 : vector<8xf32> to vector<8x1xf32>
    %c16_93 = arith.constant 16 : index
    %c0_94 = arith.constant 0 : index
    %421 = vector.load %arg14[%c16_93, %c0_94] : memref<64x128xf32, #tpu.memory_space<vmem>>, vector<8x128xf32>
    %422 = vector.broadcast %420 : vector<8x1xf32> to vector<8x128xf32>
    %423 = arith.mulf %422, %421 : vector<8x128xf32>
    %424 = arith.addf %406, %423 : vector<8x128xf32>
    %425 = vector.extract_strided_slice %369 {offsets = [0, 3], sizes = [8, 1], strides = [1, 1]} : vector<8x8xf32> to vector<8x1xf32>
    %426 = vector.extract_strided_slice %365 {offsets = [24, 0], sizes = [8, 128], strides = [1, 1]} : vector<64x128xf32> to vector<8x128xf32>
    %427 = vector.broadcast %425 : vector<8x1xf32> to vector<8x128xf32>
    %428 = arith.mulf %427, %367 : vector<8x128xf32>
    %429 = arith.addf %426, %428 : vector<8x128xf32>
    %430 = arith.negf %429 : vector<8x128xf32>
    %431 = math.exp %430 : vector<8x128xf32>
    %cst_95 = arith.constant 1.000000e+00 : f32
    %432 = vector.broadcast %cst_95 : f32 to vector<8x128xf32>
    %433 = arith.addf %432, %431 : vector<8x128xf32>
    %434 = arith.divf %432, %433 : vector<8x128xf32>
    %435 = vector.broadcast %368 : vector<1x128xf32> to vector<8x128xf32>
    %436 = arith.mulf %434, %435 : vector<8x128xf32>
    %cst_96 = arith.constant dense<0.000000e+00> : vector<8xf32>
    %437 = vector.multi_reduction <add>, %436, %cst_96 [1] : vector<8x128xf32> to vector<8xf32>
    %438 = vector.shape_cast %437 : vector<8xf32> to vector<8x1xf32>
    %c24_97 = arith.constant 24 : index
    %c0_98 = arith.constant 0 : index
    %439 = vector.load %arg14[%c24_97, %c0_98] : memref<64x128xf32, #tpu.memory_space<vmem>>, vector<8x128xf32>
    %440 = vector.broadcast %438 : vector<8x1xf32> to vector<8x128xf32>
    %441 = arith.mulf %440, %439 : vector<8x128xf32>
    %442 = arith.addf %424, %441 : vector<8x128xf32>
    %443 = vector.extract_strided_slice %369 {offsets = [0, 4], sizes = [8, 1], strides = [1, 1]} : vector<8x8xf32> to vector<8x1xf32>
    %444 = vector.extract_strided_slice %365 {offsets = [32, 0], sizes = [8, 128], strides = [1, 1]} : vector<64x128xf32> to vector<8x128xf32>
    %445 = vector.broadcast %443 : vector<8x1xf32> to vector<8x128xf32>
    %446 = arith.mulf %445, %367 : vector<8x128xf32>
    %447 = arith.addf %444, %446 : vector<8x128xf32>
    %448 = arith.negf %447 : vector<8x128xf32>
    %449 = math.exp %448 : vector<8x128xf32>
    %cst_99 = arith.constant 1.000000e+00 : f32
    %450 = vector.broadcast %cst_99 : f32 to vector<8x128xf32>
    %451 = arith.addf %450, %449 : vector<8x128xf32>
    %452 = arith.divf %450, %451 : vector<8x128xf32>
    %453 = vector.broadcast %368 : vector<1x128xf32> to vector<8x128xf32>
    %454 = arith.mulf %452, %453 : vector<8x128xf32>
    %cst_100 = arith.constant dense<0.000000e+00> : vector<8xf32>
    %455 = vector.multi_reduction <add>, %454, %cst_100 [1] : vector<8x128xf32> to vector<8xf32>
    %456 = vector.shape_cast %455 : vector<8xf32> to vector<8x1xf32>
    %c32_101 = arith.constant 32 : index
    %c0_102 = arith.constant 0 : index
    %457 = vector.load %arg14[%c32_101, %c0_102] : memref<64x128xf32, #tpu.memory_space<vmem>>, vector<8x128xf32>
    %458 = vector.broadcast %456 : vector<8x1xf32> to vector<8x128xf32>
    %459 = arith.mulf %458, %457 : vector<8x128xf32>
    %460 = arith.addf %442, %459 : vector<8x128xf32>
    %461 = vector.extract_strided_slice %369 {offsets = [0, 5], sizes = [8, 1], strides = [1, 1]} : vector<8x8xf32> to vector<8x1xf32>
    %462 = vector.extract_strided_slice %365 {offsets = [40, 0], sizes = [8, 128], strides = [1, 1]} : vector<64x128xf32> to vector<8x128xf32>
    %463 = vector.broadcast %461 : vector<8x1xf32> to vector<8x128xf32>
    %464 = arith.mulf %463, %367 : vector<8x128xf32>
    %465 = arith.addf %462, %464 : vector<8x128xf32>
    %466 = arith.negf %465 : vector<8x128xf32>
    %467 = math.exp %466 : vector<8x128xf32>
    %cst_103 = arith.constant 1.000000e+00 : f32
    %468 = vector.broadcast %cst_103 : f32 to vector<8x128xf32>
    %469 = arith.addf %468, %467 : vector<8x128xf32>
    %470 = arith.divf %468, %469 : vector<8x128xf32>
    %471 = vector.broadcast %368 : vector<1x128xf32> to vector<8x128xf32>
    %472 = arith.mulf %470, %471 : vector<8x128xf32>
    %cst_104 = arith.constant dense<0.000000e+00> : vector<8xf32>
    %473 = vector.multi_reduction <add>, %472, %cst_104 [1] : vector<8x128xf32> to vector<8xf32>
    %474 = vector.shape_cast %473 : vector<8xf32> to vector<8x1xf32>
    %c40_105 = arith.constant 40 : index
    %c0_106 = arith.constant 0 : index
    %475 = vector.load %arg14[%c40_105, %c0_106] : memref<64x128xf32, #tpu.memory_space<vmem>>, vector<8x128xf32>
    %476 = vector.broadcast %474 : vector<8x1xf32> to vector<8x128xf32>
    %477 = arith.mulf %476, %475 : vector<8x128xf32>
    %478 = arith.addf %460, %477 : vector<8x128xf32>
    %479 = vector.extract_strided_slice %369 {offsets = [0, 6], sizes = [8, 1], strides = [1, 1]} : vector<8x8xf32> to vector<8x1xf32>
    %480 = vector.extract_strided_slice %365 {offsets = [48, 0], sizes = [8, 128], strides = [1, 1]} : vector<64x128xf32> to vector<8x128xf32>
    %481 = vector.broadcast %479 : vector<8x1xf32> to vector<8x128xf32>
    %482 = arith.mulf %481, %367 : vector<8x128xf32>
    %483 = arith.addf %480, %482 : vector<8x128xf32>
    %484 = arith.negf %483 : vector<8x128xf32>
    %485 = math.exp %484 : vector<8x128xf32>
    %cst_107 = arith.constant 1.000000e+00 : f32
    %486 = vector.broadcast %cst_107 : f32 to vector<8x128xf32>
    %487 = arith.addf %486, %485 : vector<8x128xf32>
    %488 = arith.divf %486, %487 : vector<8x128xf32>
    %489 = vector.broadcast %368 : vector<1x128xf32> to vector<8x128xf32>
    %490 = arith.mulf %488, %489 : vector<8x128xf32>
    %cst_108 = arith.constant dense<0.000000e+00> : vector<8xf32>
    %491 = vector.multi_reduction <add>, %490, %cst_108 [1] : vector<8x128xf32> to vector<8xf32>
    %492 = vector.shape_cast %491 : vector<8xf32> to vector<8x1xf32>
    %c48_109 = arith.constant 48 : index
    %c0_110 = arith.constant 0 : index
    %493 = vector.load %arg14[%c48_109, %c0_110] : memref<64x128xf32, #tpu.memory_space<vmem>>, vector<8x128xf32>
    %494 = vector.broadcast %492 : vector<8x1xf32> to vector<8x128xf32>
    %495 = arith.mulf %494, %493 : vector<8x128xf32>
    %496 = arith.addf %478, %495 : vector<8x128xf32>
    %497 = vector.extract_strided_slice %369 {offsets = [0, 7], sizes = [8, 1], strides = [1, 1]} : vector<8x8xf32> to vector<8x1xf32>
    %498 = vector.extract_strided_slice %365 {offsets = [56, 0], sizes = [8, 128], strides = [1, 1]} : vector<64x128xf32> to vector<8x128xf32>
    %499 = vector.broadcast %497 : vector<8x1xf32> to vector<8x128xf32>
    %500 = arith.mulf %499, %367 : vector<8x128xf32>
    %501 = arith.addf %498, %500 : vector<8x128xf32>
    %502 = arith.negf %501 : vector<8x128xf32>
    %503 = math.exp %502 : vector<8x128xf32>
    %cst_111 = arith.constant 1.000000e+00 : f32
    %504 = vector.broadcast %cst_111 : f32 to vector<8x128xf32>
    %505 = arith.addf %504, %503 : vector<8x128xf32>
    %506 = arith.divf %504, %505 : vector<8x128xf32>
    %507 = vector.broadcast %368 : vector<1x128xf32> to vector<8x128xf32>
    %508 = arith.mulf %506, %507 : vector<8x128xf32>
    %cst_112 = arith.constant dense<0.000000e+00> : vector<8xf32>
    %509 = vector.multi_reduction <add>, %508, %cst_112 [1] : vector<8x128xf32> to vector<8xf32>
    %510 = vector.shape_cast %509 : vector<8xf32> to vector<8x1xf32>
    %c56_113 = arith.constant 56 : index
    %c0_114 = arith.constant 0 : index
    %511 = vector.load %arg14[%c56_113, %c0_114] : memref<64x128xf32, #tpu.memory_space<vmem>>, vector<8x128xf32>
    %512 = vector.broadcast %510 : vector<8x1xf32> to vector<8x128xf32>
    %513 = arith.mulf %512, %511 : vector<8x128xf32>
    %514 = arith.addf %496, %513 : vector<8x128xf32>
    %c0_115 = arith.constant 0 : index
    %c0_116 = arith.constant 0 : index
    %515 = vector.load %arg11[%c0_115, %c0_116] : memref<128x32xf32, #tpu.memory_space<vmem>>, vector<128x32xf32>
    %cst_117 = arith.constant dense<0.000000e+00> : vector<8x32xf32>
    %516 = tpu.matmul %514, %515, %cst_117 {dimension_numbers = #tpu.dot_dimension_numbers<[1], [0], [0], [1], [0, 0, 1, 1], [], []>} : vector<8x128xf32>, vector<128x32xf32>, vector<8x32xf32> -> vector<8x32xf32>
    %c0_118 = arith.constant 0 : index
    %c0_119 = arith.constant 0 : index
    %517 = vector.load %arg12[%c0_118, %c0_119] : memref<128x32xf32, #tpu.memory_space<vmem>>, vector<128x32xf32>
    %cst_120 = arith.constant dense<0.000000e+00> : vector<8x32xf32>
    %518 = tpu.matmul %359, %517, %cst_120 {dimension_numbers = #tpu.dot_dimension_numbers<[1], [0], [0], [1], [0, 0, 1, 1], [], []>} : vector<8x128xf32>, vector<128x32xf32>, vector<8x32xf32> -> vector<8x32xf32>
    %519 = arith.addf %516, %518 : vector<8x32xf32>
    %c0_121 = arith.constant 0 : index
    %c0_122 = arith.constant 0 : index
    %520 = vector.load %arg13[%c0_121, %c0_122] : memref<8x32xf32, #tpu.memory_space<vmem>>, vector<8x32xf32>
    tpu.vector_store %arg13[%c0_121, %c0_122], %519 {strides = array<i32>} : memref<8x32xf32, #tpu.memory_space<vmem>>, vector<8x32xf32>,
    return
  }
  func.func @transform_0(%arg0: i32) -> (i32, i32, i32) {
    %c0_i32 = arith.constant 0 : i32
    %c0_i32_0 = arith.constant 0 : i32
    %c0_i32_1 = arith.constant 0 : i32
    return %arg0, %c0_i32, %c0_i32_0 : i32, i32, i32
  }
  func.func @transform_1(%arg0: i32) -> (i32, i32) {
    %c0_i32 = arith.constant 0 : i32
    %c0_i32_0 = arith.constant 0 : i32
    return %arg0, %c0_i32 : i32, i32
  }
  func.func @transform_2(%arg0: i32) -> (i32, i32) {
    %c0_i32 = arith.constant 0 : i32
    %c0_i32_0 = arith.constant 0 : i32
    return %arg0, %c0_i32 : i32, i32
  }
  func.func @transform_3(%arg0: i32) -> (i32, i32) {
    %c0_i32 = arith.constant 0 : i32
    %c0_i32_0 = arith.constant 0 : i32
    %c0_i32_1 = arith.constant 0 : i32
    return %c0_i32, %c0_i32_0 : i32, i32
  }
  func.func @transform_4(%arg0: i32) -> (i32, i32) {
    %c0_i32 = arith.constant 0 : i32
    %c0_i32_0 = arith.constant 0 : i32
    %c0_i32_1 = arith.constant 0 : i32
    return %c0_i32, %c0_i32_0 : i32, i32
  }
  func.func @transform_5(%arg0: i32) -> (i32, i32) {
    %c0_i32 = arith.constant 0 : i32
    %c0_i32_0 = arith.constant 0 : i32
    %c0_i32_1 = arith.constant 0 : i32
    return %c0_i32, %c0_i32_0 : i32, i32
  }
  func.func @transform_6(%arg0: i32) -> (i32, i32) {
    %c0_i32 = arith.constant 0 : i32
    %c0_i32_0 = arith.constant 0 : i32
    %c0_i32_1 = arith.constant 0 : i32
    return %c0_i32, %c0_i32_0 : i32, i32
  }
  func.func @transform_7(%arg0: i32) -> (i32, i32) {
    %c0_i32 = arith.constant 0 : i32
    %c0_i32_0 = arith.constant 0 : i32
    %c0_i32_1 = arith.constant 0 : i32
    return %c0_i32, %c0_i32_0 : i32, i32
  }
  func.func @transform_8(%arg0: i32) -> (i32, i32) {
    %c0_i32 = arith.constant 0 : i32
    %c0_i32_0 = arith.constant 0 : i32
    %c0_i32_1 = arith.constant 0 : i32
    return %c0_i32, %c0_i32_0 : i32, i32
  }
  func.func @transform_9(%arg0: i32) -> (i32, i32) {
    %c0_i32 = arith.constant 0 : i32
    %c0_i32_0 = arith.constant 0 : i32
    %c0_i32_1 = arith.constant 0 : i32
    return %c0_i32, %c0_i32_0 : i32, i32
  }
  func.func @transform_10(%arg0: i32) -> (i32, i32) {
    %c0_i32 = arith.constant 0 : i32
    %c0_i32_0 = arith.constant 0 : i32
    %c0_i32_1 = arith.constant 0 : i32
    return %c0_i32, %c0_i32_0 : i32, i32
  }
  func.func @transform_11(%arg0: i32) -> (i32, i32) {
    %c0_i32 = arith.constant 0 : i32
    %c0_i32_0 = arith.constant 0 : i32
    %c0_i32_1 = arith.constant 0 : i32
    return %c0_i32, %c0_i32_0 : i32, i32
  }
  func.func @transform_12(%arg0: i32) -> (i32, i32) {
    %c0_i32 = arith.constant 0 : i32
    %c0_i32_0 = arith.constant 0 : i32
    return %arg0, %c0_i32 : i32, i32
  }
}

</mosaic_0001>

<llo_original>
// kernel: tpu_custom_call.1
$region0: #{tpu_custom_call.1}
  #allocation0 [shape = 'u32[]', space=smem, size = 0x4, offset = 0x4, fixed_abs, tag = 'smem constant byte address 0x4 - core index']
  #allocation1 [shape = 'u32[144,128]{1,0:T(1,128)}', space=vmem, size = 0x12000, scoped, tag = 'internal scratch']
  #allocation2 [shape = 'f32[64,128]{1,0:T(8,128)}', space=vmem, size = 0x8000, scoped, tag = 'scratch operand']
  %s0 = inlined_call_operand.vmem [shape: f32[1,64,32], index: 0, kind: input, shape index: {}]
  %s1 = inlined_call_operand.vmem [shape: f32[8,1], index: 1, kind: input, shape index: {}]
  %s2 = inlined_call_operand.vmem [shape: f32[8,8], index: 2, kind: input, shape index: {}]
  %s3 = inlined_call_operand.hbm [shape: f32[32,384], index: 3, kind: input, shape index: {}]
  %s4 = inlined_call_operand.vmem [shape: f32[128,384], index: 4, kind: input, shape index: {}]
  %s5 = inlined_call_operand.vmem [shape: f32[1,384], index: 5, kind: input, shape index: {}]
  %s6 = inlined_call_operand.vmem [shape: f32[1,384], index: 6, kind: input, shape index: {}]
  %s7 = inlined_call_operand.hbm [shape: f32[128,128], index: 7, kind: input, shape index: {}]
  %s8 = inlined_call_operand.hbm [shape: f32[128,128], index: 8, kind: input, shape index: {}]
  %s9 = inlined_call_operand.vmem [shape: f32[1,128], index: 9, kind: input, shape index: {}]
  %s10 = inlined_call_operand.vmem [shape: f32[128,32], index: 10, kind: input, shape index: {}]
  %s11 = inlined_call_operand.vmem [shape: f32[128,32], index: 11, kind: input, shape index: {}]
  %s12 = inlined_call_operand.hbm [shape: f32[8,32], index: 12, kind: output, shape index: {}]
  %s13 = sld [smem:[#allocation0]]
  $region70: #{tpu_custom_call.1} parent=0
    _
  %s15 = ssub.s32 1, %s13
  %s16 = scalar_select 0, %s15, %s13
  $region1: #{tpu_custom_call.1} parent=0
    #allocation3 [shape = 'u8[49152]{0}', space=vmem, size = 0xc000, scoped, tag = 'input window, operand 3, single buffered']
    #allocation4 [shape = 's32[1]{0}', space=sflag, size = 0x4, scoped, tag = 'scoped memory for tpu_custom_call.1']
    #allocation5 [shape = 's32[1]{0}', space=sflag, size = 0x4, scoped, tag = 'scoped memory for tpu_custom_call.1']
    #allocation6 [shape = 'u8[65536]{0}', space=vmem, size = 0x10000, scoped, tag = 'input window, operand 7, single buffered']
    #allocation7 [shape = 's32[1]{0}', space=sflag, size = 0x4, scoped, tag = 'scoped memory for tpu_custom_call.1']
    #allocation8 [shape = 'u8[65536]{0}', space=vmem, size = 0x10000, scoped, tag = 'input window, operand 8, single buffered']
    #allocation9 [shape = 'u8[4096]{0}', space=vmem, size = 0x1000, scoped, tag = 'output window, operand 0, single buffered']
    %17 = vsyncpa [#allocation4], 0
    %18 = vsyncpa [#allocation7], 0
    %19 = vsyncpa [#allocation5], 0
    // Predicated region
    $region2: #{tpu_custom_call.1} parent=1 // pred_check
      _
    $region3: #{tpu_custom_call.1} parent=1 // pred_check_branch
      %21 = sbr.rel (0) target = $region5
    $region4: #{tpu_custom_call.1} parent=1 // pred_region
      _
    $region5: #{tpu_custom_call.1} parent=1 // pred_fallthru
      _
    // Predicated region
    $region6: #{tpu_custom_call.1} parent=1 // pred_check
      _
    $region7: #{tpu_custom_call.1} parent=1 // pred_check_branch
      %23 = sbr.rel (0) target = $region9
    $region8: #{tpu_custom_call.1} parent=1 // pred_region
      _
    $region9: #{tpu_custom_call.1} parent=1 // pred_fallthru
      _
    // Predicated region
    $region10: #{tpu_custom_call.1} parent=1 // pred_check
      _
    $region11: #{tpu_custom_call.1} parent=1 // pred_check_branch
      %25 = sbr.rel (0) target = $region13
    $region12: #{tpu_custom_call.1} parent=1 // pred_region
      _
    $region13: #{tpu_custom_call.1} parent=1 // pred_fallthru
      _
    // Predicated region
    $region14: #{tpu_custom_call.1} parent=1 // pred_check
      _
    $region15: #{tpu_custom_call.1} parent=1 // pred_check_branch
      %27 = sbr.rel (0) target = $region17
    $region16: #{tpu_custom_call.1} parent=1 // pred_region
      %s29 = ssub.s32 1536, 1536
      %30 = vsyncadd [#allocation4], %s29
      %s31 = sshll.u32 [#allocation3], 4
      %s32 = int_to_ptr.vmem [resolvable:$true] %s31
      %37 = dma.hbm_to_vmem [thread:$0]  %s3, 1536, %s32, [#allocation4], 384, 384, 24
    $region17: #{tpu_custom_call.1} parent=1 // pred_fallthru
      _
    // Predicated region
    $region18: #{tpu_custom_call.1} parent=1 // pred_check
      _
    $region19: #{tpu_custom_call.1} parent=1 // pred_check_branch
      %39 = sbr.rel (0) target = $region21
    $region20: #{tpu_custom_call.1} parent=1 // pred_region
      _
    $region21: #{tpu_custom_call.1} parent=1 // pred_fallthru
      _
    // Predicated region
    $region22: #{tpu_custom_call.1} parent=1 // pred_check
      _
    $region23: #{tpu_custom_call.1} parent=1 // pred_check_branch
      %41 = sbr.rel (0) target = $region25
    $region24: #{tpu_custom_call.1} parent=1 // pred_region
      _
    $region25: #{tpu_custom_call.1} parent=1 // pred_fallthru
      _
    // Predicated region
    $region26: #{tpu_custom_call.1} parent=1 // pred_check
      _
    $region27: #{tpu_custom_call.1} parent=1 // pred_check_branch
      %43 = sbr.rel (0) target = $region29
    $region28: #{tpu_custom_call.1} parent=1 // pred_region
      _
    $region29: #{tpu_custom_call.1} parent=1 // pred_fallthru
      _
    // Predicated region
    $region30: #{tpu_custom_call.1} parent=1 // pred_check
      _
    $region31: #{tpu_custom_call.1} parent=1 // pred_check_branch
      %45 = sbr.rel (0) target = $region33
    $region32: #{tpu_custom_call.1} parent=1 // pred_region
      %s47 = ssub.s32 2048, 2048
      %48 = vsyncadd [#allocation7], %s47
      %s49 = sshll.u32 [#allocation6], 4
      %s50 = int_to_ptr.vmem [resolvable:$true] %s49
      %55 = dma.hbm_to_vmem [thread:$0]  %s7, 2048, %s50, [#allocation7], 128, 128, 8
    $region33: #{tpu_custom_call.1} parent=1 // pred_fallthru
      _
    // Predicated region
    $region34: #{tpu_custom_call.1} parent=1 // pred_check
      _
    $region35: #{tpu_custom_call.1} parent=1 // pred_check_branch
      %57 = sbr.rel (0) target = $region37
    $region36: #{tpu_custom_call.1} parent=1 // pred_region
      %s59 = ssub.s32 2048, 2048
      %60 = vsyncadd [#allocation7], %s59
      %s61 = sshll.u32 [#allocation8], 4
      %s62 = int_to_ptr.vmem [resolvable:$true] %s61
      %67 = dma.hbm_to_vmem [thread:$0]  %s8, 2048, %s62, [#allocation7], 128, 128, 8
    $region37: #{tpu_custom_call.1} parent=1 // pred_fallthru
      _
    // Predicated region
    $region38: #{tpu_custom_call.1} parent=1 // pred_check
      _
    $region39: #{tpu_custom_call.1} parent=1 // pred_check_branch
      %69 = sbr.rel (0) target = $region41
    $region40: #{tpu_custom_call.1} parent=1 // pred_region
      _
    $region41: #{tpu_custom_call.1} parent=1 // pred_fallthru
      _
    // Predicated region
    $region42: #{tpu_custom_call.1} parent=1 // pred_check
      _
    $region43: #{tpu_custom_call.1} parent=1 // pred_check_branch
      %71 = sbr.rel (0) target = $region45
    $region44: #{tpu_custom_call.1} parent=1 // pred_region
      _
    $region45: #{tpu_custom_call.1} parent=1 // pred_fallthru
      _
    // Predicated region
    $region46: #{tpu_custom_call.1} parent=1 // pred_check
      _
    $region47: #{tpu_custom_call.1} parent=1 // pred_check_branch
      %73 = sbr.rel (0) target = $region49
    $region48: #{tpu_custom_call.1} parent=1 // pred_region
      _
    $region49: #{tpu_custom_call.1} parent=1 // pred_fallthru
      _
    // Predicated region
    $region50: #{tpu_custom_call.1} parent=1 // pred_check
      _
    $region51: #{tpu_custom_call.1} parent=1 // pred_check_branch
      %75 = sbr.rel (0) target = $region53
    $region52: #{tpu_custom_call.1} parent=1 // pred_region
      %76 = dma.done [#allocation4], 1536
    $region53: #{tpu_custom_call.1} parent=1 // pred_fallthru
      _
    // Predicated region
    $region54: #{tpu_custom_call.1} parent=1 // pred_check
      _
    $region55: #{tpu_custom_call.1} parent=1 // pred_check_branch
      %78 = sbr.rel (0) target = $region57
    $region56: #{tpu_custom_call.1} parent=1 // pred_region
      %79 = dma.done [#allocation7], 2048
    $region57: #{tpu_custom_call.1} parent=1 // pred_fallthru
      _
    // Predicated region
    $region58: #{tpu_custom_call.1} parent=1 // pred_check
      _
    $region59: #{tpu_custom_call.1} parent=1 // pred_check_branch
      %81 = sbr.rel (0) target = $region61
    $region60: #{tpu_custom_call.1} parent=1 // pred_region
      %82 = dma.done [#allocation7], 2048
    $region61: #{tpu_custom_call.1} parent=1 // pred_fallthru
      _
    %v83 = vld [vmem:[%s0] sm:$0xff]
    %v84 = vld [vmem:[%s0 + $0x8] sm:$0xff]
    %v85 = vld [vmem:[%s0 + $0x10] sm:$0xff]
    %v86 = vld [vmem:[%s0 + $0x18] sm:$0xff]
    %v87 = vld [vmem:[%s0 + $0x20] sm:$0xff]
    %v88 = vld [vmem:[%s0 + $0x28] sm:$0xff]
    %v89 = vld [vmem:[%s0 + $0x30] sm:$0xff]
    %v90 = vld [vmem:[%s0 + $0x38] sm:$0xff]
    %v91 = vld [vmem:[#allocation3] sm:$0xff]
    %v92 = vld [vmem:[#allocation3 + $0x8] sm:$0xff]
    %v93 = vld [vmem:[#allocation3 + $0x10] sm:$0xff]
    %v94 = vld [vmem:[#allocation3 + $0x18] sm:$0xff]
    %v95 = vld [vmem:[#allocation3 + $0x20] sm:$0xff]
    %v96 = vld [vmem:[#allocation3 + $0x28] sm:$0xff]
    %v97 = vld [vmem:[#allocation3 + $0x30] sm:$0xff]
    %v98 = vld [vmem:[#allocation3 + $0x38] sm:$0xff]
    %v99 = vld [vmem:[#allocation3 + $0x40] sm:$0xff]
    %v100 = vld [vmem:[#allocation3 + $0x48] sm:$0xff]
    %v101 = vld [vmem:[#allocation3 + $0x50] sm:$0xff]
    %v102 = vld [vmem:[#allocation3 + $0x58] sm:$0xff]
    %v103 = vld [vmem:[%s5] sm:$0x7]
    %v105 = vlaneseq
    %v106 = vshrl.u32 %v105, 7
    %v107 = vsub.s32 0, %v106
    %v108 = vrot.slane %v103, %v107
    %v109 = vlaneseq
    %v110 = vshrl.u32 %v109, 7
    %v111 = vsub.s32 1, %v110
    %v112 = vrot.slane %v103, %v111
    %v113 = vlaneseq
    %v114 = vshrl.u32 %v113, 7
    %v115 = vsub.s32 2, %v114
    %v116 = vrot.slane %v103, %v115
    %vm120 = vcmask 261120
    %v122 = vsel %vm120, %v83, 0
    %v125 = vsel %vm120, %v84, 0
    %v128 = vsel %vm120, %v85, 0
    %v131 = vsel %vm120, %v86, 0
    %v134 = vsel %vm120, %v87, 0
    %v137 = vsel %vm120, %v88, 0
    %v140 = vsel %vm120, %v89, 0
    %v143 = vsel %vm120, %v90, 0
    %145 = vmatprep.subr.mxu0 0.0
    %146 = vmatpush1.msra.mxu0 0.0
    %147 = vmatprep.subr.mxu0 0.0
    %148 = vmatpush1.msra.mxu0 0.0
    %149 = vmatprep.subr.mxu0 0.0
    %150 = vmatpush1.msra.mxu0 0.0
    %151 = vmatprep.subr.mxu0 0.0
    %152 = vmatpush1.msra.mxu0 0.0
    %153 = vmatprep.subr.mxu0 0.0
    %154 = vmatpush1.msra.mxu0 0.0
    %155 = vmatprep.subr.mxu0 0.0
    %156 = vmatpush1.msra.mxu0 0.0
    %157 = vmatprep.subr.mxu0 0.0
    %158 = vmatpush1.msra.mxu0 0.0
    %159 = vmatprep.subr.mxu0 0.0
    %160 = vmatpush1.msra.mxu0 0.0
    %161 = vmatprep.subr.mxu0 0.0
    %162 = vmatpush1.msra.mxu0 0.0
    %163 = vmatprep.subr.mxu0 0.0
    %164 = vmatpush1.msra.mxu0 0.0
    %165 = vmatprep.subr.mxu0 0.0
    %166 = vmatpush1.msra.mxu0 0.0
    %167 = vmatprep.subr.mxu0 0.0
    %168 = vmatpush1.msra.mxu0 0.0
    %169 = vmatprep.subr.mxu0 %v101
    %170 = vmatpush1.msra.mxu0 %v100
    %171 = vmatprep.subr.mxu0 %v98
    %172 = vmatpush1.msra.mxu0 %v97
    %173 = vmatprep.subr.mxu0 %v95
    %174 = vmatpush1.msra.mxu0 %v94
    %175 = vmatprep.subr.mxu0 %v92
    %176 = vmatpush1.msra.mxu0 %v91
    %177 = vmatprep.subr.mxu0 0.0
    %178 = vmatpush2.msra.mxu0 0.0
    %179 = vmatprep.subr.mxu0 0.0
    %180 = vmatpush2.msra.mxu0 0.0
    %181 = vmatprep.subr.mxu0 0.0
    %182 = vmatpush2.msra.mxu0 0.0
    %183 = vmatprep.subr.mxu0 0.0
    %184 = vmatpush2.msra.mxu0 0.0
    %185 = vmatprep.subr.mxu0 0.0
    %186 = vmatpush2.msra.mxu0 0.0
    %187 = vmatprep.subr.mxu0 0.0
    %188 = vmatpush2.msra.mxu0 0.0
    %189 = vmatprep.subr.mxu0 0.0
    %190 = vmatpush2.msra.mxu0 0.0
    %191 = vmatprep.subr.mxu0 0.0
    %192 = vmatpush2.msra.mxu0 0.0
    %193 = vmatprep.subr.mxu0 0.0
    %194 = vmatpush2.msra.mxu0 0.0
    %195 = vmatprep.subr.mxu0 0.0
    %196 = vmatpush2.msra.mxu0 0.0
    %197 = vmatprep.subr.mxu0 0.0
    %198 = vmatpush2.msra.mxu0 0.0
    %199 = vmatprep.subr.mxu0 0.0
    %200 = vmatpush2.msra.mxu0 0.0
    %201 = vmatprep.subr.mxu0 0.0
    %202 = vmatpush2.msra.mxu0 0.0
    %203 = vmatprep.subr.mxu0 0.0
    %204 = vmatpush2.msra.mxu0 0.0
    %205 = vmatprep.subr.mxu0 0.0
    %206 = vmatpush2.msra.mxu0 0.0
    %207 = vmatprep.subr.mxu0 0.0
    %208 = vmatpush2.msra.mxu0 0.0
    %209 = vmatprep.mubr.f32.mxu0 0.0
    %210 = vmatmul.mubr.f32.gmra.mxu0 %v122
    %v211 = vpop.f32.mrf.mxu0
    %v212 = vadd.f32 %v108, %v211
    %v213 = vpop.f32.mrf.mxu0
    %v214 = vadd.f32 %v112, %v213
    %215 = vmatprep.mubr.f32.mxu0 0.0
    %216 = vmatmul.mubr.f32.gmra.mxu0 %v125
    %v217 = vpop.f32.mrf.mxu0
    %v218 = vadd.f32 %v108, %v217
    %v219 = vpop.f32.mrf.mxu0
    %v220 = vadd.f32 %v112, %v219
    %221 = vmatprep.mubr.f32.mxu0 0.0
    %222 = vmatmul.mubr.f32.gmra.mxu0 %v128
    %v223 = vpop.f32.mrf.mxu0
    %v224 = vadd.f32 %v108, %v223
    %v225 = vpop.f32.mrf.mxu0
    %v226 = vadd.f32 %v112, %v225
    %227 = vmatprep.mubr.f32.mxu0 0.0
    %228 = vmatmul.mubr.f32.gmra.mxu0 %v131
    %v229 = vpop.f32.mrf.mxu0
    %v230 = vadd.f32 %v108, %v229
    %v231 = vpop.f32.mrf.mxu0
    %v232 = vadd.f32 %v112, %v231
    %233 = vmatprep.mubr.f32.mxu0 0.0
    %234 = vmatmul.mubr.f32.gmra.mxu0 %v134
    %v235 = vpop.f32.mrf.mxu0
    %v236 = vadd.f32 %v108, %v235
    %v237 = vpop.f32.mrf.mxu0
    %v238 = vadd.f32 %v112, %v237
    %239 = vmatprep.mubr.f32.mxu0 0.0
    %240 = vmatmul.mubr.f32.gmra.mxu0 %v137
    %v241 = vpop.f32.mrf.mxu0
    %v242 = vadd.f32 %v108, %v241
    %v243 = vpop.f32.mrf.mxu0
    %v244 = vadd.f32 %v112, %v243
    %245 = vmatprep.mubr.f32.mxu0 0.0
    %246 = vmatmul.mubr.f32.gmra.mxu0 %v140
    %v247 = vpop.f32.mrf.mxu0
    %v248 = vadd.f32 %v108, %v247
    %v249 = vpop.f32.mrf.mxu0
    %v250 = vadd.f32 %v112, %v249
    %251 = vmatprep.mubr.f32.mxu0 0.0
    %252 = vmatmul.mubr.f32.gmra.mxu0 %v143
    %v253 = vpop.f32.mrf.mxu0
    %v254 = vadd.f32 %v108, %v253
    %v255 = vpop.f32.mrf.mxu0
    %v256 = vadd.f32 %v112, %v255
    %257 = vdwg.mxu0
    %258 = vmatprep.subr.mxu0 0.0
    %259 = vmatpush1.msra.mxu0 0.0
    %260 = vmatprep.subr.mxu0 0.0
    %261 = vmatpush1.msra.mxu0 0.0
    %262 = vmatprep.subr.mxu0 0.0
    %263 = vmatpush1.msra.mxu0 0.0
    %264 = vmatprep.subr.mxu0 0.0
    %265 = vmatpush1.msra.mxu0 0.0
    %266 = vmatprep.subr.mxu0 0.0
    %267 = vmatpush1.msra.mxu0 0.0
    %268 = vmatprep.subr.mxu0 0.0
    %269 = vmatpush1.msra.mxu0 0.0
    %270 = vmatprep.subr.mxu0 0.0
    %271 = vmatpush1.msra.mxu0 0.0
    %272 = vmatprep.subr.mxu0 0.0
    %273 = vmatpush1.msra.mxu0 0.0
    %274 = vmatprep.subr.mxu0 0.0
    %275 = vmatpush1.msra.mxu0 0.0
    %276 = vmatprep.subr.mxu0 0.0
    %277 = vmatpush1.msra.mxu0 0.0
    %278 = vmatprep.subr.mxu0 0.0
    %279 = vmatpush1.msra.mxu0 0.0
    %280 = vmatprep.subr.mxu0 0.0
    %281 = vmatpush1.msra.mxu0 0.0
    %282 = vmatprep.subr.mxu0 0.0
    %283 = vmatpush1.msra.mxu0 %v102
    %284 = vmatprep.subr.mxu0 0.0
    %285 = vmatpush1.msra.mxu0 %v99
    %286 = vmatprep.subr.mxu0 0.0
    %287 = vmatpush1.msra.mxu0 %v96
    %288 = vmatprep.subr.mxu0 0.0
    %289 = vmatpush1.msra.mxu0 %v93
    %290 = vmatprep.subr.mxu0 0.0
    %291 = vmatpush2.msra.mxu0 0.0
    %292 = vmatprep.subr.mxu0 0.0
    %293 = vmatpush2.msra.mxu0 0.0
    %294 = vmatprep.subr.mxu0 0.0
    %295 = vmatpush2.msra.mxu0 0.0
    %296 = vmatprep.subr.mxu0 0.0
    %297 = vmatpush2.msra.mxu0 0.0
    %298 = vmatprep.subr.mxu0 0.0
    %299 = vmatpush2.msra.mxu0 0.0
    %300 = vmatprep.subr.mxu0 0.0
    %301 = vmatpush2.msra.mxu0 0.0
    %302 = vmatprep.subr.mxu0 0.0
    %303 = vmatpush2.msra.mxu0 0.0
    %304 = vmatprep.subr.mxu0 0.0
    %305 = vmatpush2.msra.mxu0 0.0
    %306 = vmatprep.subr.mxu0 0.0
    %307 = vmatpush2.msra.mxu0 0.0
    %308 = vmatprep.subr.mxu0 0.0
    %309 = vmatpush2.msra.mxu0 0.0
    %310 = vmatprep.subr.mxu0 0.0
    %311 = vmatpush2.msra.mxu0 0.0
    %312 = vmatprep.subr.mxu0 0.0
    %313 = vmatpush2.msra.mxu0 0.0
    %314 = vmatprep.subr.mxu0 0.0
    %315 = vmatpush2.msra.mxu0 0.0
    %316 = vmatprep.subr.mxu0 0.0
    %317 = vmatpush2.msra.mxu0 0.0
    %318 = vmatprep.subr.mxu0 0.0
    %319 = vmatpush2.msra.mxu0 0.0
    %320 = vmatprep.subr.mxu0 0.0
    %321 = vmatpush2.msra.mxu0 0.0
    %322 = vmatprep.mubr.f32.mxu0 0.0
    %323 = vmatmul.mubr.f32.gmra.mxu0 %v122
    %v324 = vpop.f32.mrf.mxu0
    %v325 = vadd.f32 %v116, %v324
    %v326 = vpop.f32.mrf.mxu0
    %327 = vmatprep.mubr.f32.mxu0 0.0
    %328 = vmatmul.mubr.f32.gmra.mxu0 %v125
    %v329 = vpop.f32.mrf.mxu0
    %v330 = vadd.f32 %v116, %v329
    %v331 = vpop.f32.mrf.mxu0
    %332 = vmatprep.mubr.f32.mxu0 0.0
    %333 = vmatmul.mubr.f32.gmra.mxu0 %v128
    %v334 = vpop.f32.mrf.mxu0
    %v335 = vadd.f32 %v116, %v334
    %v336 = vpop.f32.mrf.mxu0
    %337 = vmatprep.mubr.f32.mxu0 0.0
    %338 = vmatmul.mubr.f32.gmra.mxu0 %v131
    %v339 = vpop.f32.mrf.mxu0
    %v340 = vadd.f32 %v116, %v339
    %v341 = vpop.f32.mrf.mxu0
    %342 = vmatprep.mubr.f32.mxu0 0.0
    %343 = vmatmul.mubr.f32.gmra.mxu0 %v134
    %v344 = vpop.f32.mrf.mxu0
    %v345 = vadd.f32 %v116, %v344
    %v346 = vpop.f32.mrf.mxu0
    %347 = vmatprep.mubr.f32.mxu0 0.0
    %348 = vmatmul.mubr.f32.gmra.mxu0 %v137
    %v349 = vpop.f32.mrf.mxu0
    %v350 = vadd.f32 %v116, %v349
    %v351 = vpop.f32.mrf.mxu0
    %352 = vmatprep.mubr.f32.mxu0 0.0
    %353 = vmatmul.mubr.f32.gmra.mxu0 %v140
    %v354 = vpop.f32.mrf.mxu0
    %v355 = vadd.f32 %v116, %v354
    %v356 = vpop.f32.mrf.mxu0
    %357 = vmatprep.mubr.f32.mxu0 0.0
    %358 = vmatmul.mubr.f32.gmra.mxu0 %v143
    %v359 = vpop.f32.mrf.mxu0
    %v360 = vadd.f32 %v116, %v359
    %v361 = vpop.f32.mrf.mxu0
    %362 = vdwg.mxu0
    %v363 = vld [vmem:[%s4] sm:$0xff]
    %v364 = vld [vmem:[%s4 + $0x8] sm:$0xff]
    %v365 = vld [vmem:[%s4 + $0x10] sm:$0xff]
    %v366 = vld [vmem:[%s4 + $0x18] sm:$0xff]
    %v367 = vld [vmem:[%s4 + $0x20] sm:$0xff]
    %v368 = vld [vmem:[%s4 + $0x28] sm:$0xff]
    %v369 = vld [vmem:[%s4 + $0x30] sm:$0xff]
    %v370 = vld [vmem:[%s4 + $0x38] sm:$0xff]
    %v371 = vld [vmem:[%s4 + $0x40] sm:$0xff]
    %v372 = vld [vmem:[%s4 + $0x48] sm:$0xff]
    %v373 = vld [vmem:[%s4 + $0x50] sm:$0xff]
    %v374 = vld [vmem:[%s4 + $0x58] sm:$0xff]
    %v375 = vld [vmem:[%s4 + $0x60] sm:$0xff]
    %v376 = vld [vmem:[%s4 + $0x68] sm:$0xff]
    %v377 = vld [vmem:[%s4 + $0x70] sm:$0xff]
    %v378 = vld [vmem:[%s4 + $0x78] sm:$0xff]
    %v379 = vld [vmem:[%s4 + $0x80] sm:$0xff]
    %v380 = vld [vmem:[%s4 + $0x88] sm:$0xff]
    %v381 = vld [vmem:[%s4 + $0x90] sm:$0xff]
    %v382 = vld [vmem:[%s4 + $0x98] sm:$0xff]
    %v383 = vld [vmem:[%s4 + $0xa0] sm:$0xff]
    %v384 = vld [vmem:[%s4 + $0xa8] sm:$0xff]
    %v385 = vld [vmem:[%s4 + $0xb0] sm:$0xff]
    %v386 = vld [vmem:[%s4 + $0xb8] sm:$0xff]
    %v387 = vld [vmem:[%s4 + $0xc0] sm:$0xff]
    %v388 = vld [vmem:[%s4 + $0xc8] sm:$0xff]
    %v389 = vld [vmem:[%s4 + $0xd0] sm:$0xff]
    %v390 = vld [vmem:[%s4 + $0xd8] sm:$0xff]
    %v391 = vld [vmem:[%s4 + $0xe0] sm:$0xff]
    %v392 = vld [vmem:[%s4 + $0xe8] sm:$0xff]
    %v393 = vld [vmem:[%s4 + $0xf0] sm:$0xff]
    %v394 = vld [vmem:[%s4 + $0xf8] sm:$0xff]
    %v395 = vld [vmem:[%s4 + $0x100] sm:$0xff]
    %v396 = vld [vmem:[%s4 + $0x108] sm:$0xff]
    %v397 = vld [vmem:[%s4 + $0x110] sm:$0xff]
    %v398 = vld [vmem:[%s4 + $0x118] sm:$0xff]
    %v399 = vld [vmem:[%s4 + $0x120] sm:$0xff]
    %v400 = vld [vmem:[%s4 + $0x128] sm:$0xff]
    %v401 = vld [vmem:[%s4 + $0x130] sm:$0xff]
    %v402 = vld [vmem:[%s4 + $0x138] sm:$0xff]
    %v403 = vld [vmem:[%s4 + $0x140] sm:$0xff]
    %v404 = vld [vmem:[%s4 + $0x148] sm:$0xff]
    %v405 = vld [vmem:[%s4 + $0x150] sm:$0xff]
    %v406 = vld [vmem:[%s4 + $0x158] sm:$0xff]
    %v407 = vld [vmem:[%s4 + $0x160] sm:$0xff]
    %v408 = vld [vmem:[%s4 + $0x168] sm:$0xff]
    %v409 = vld [vmem:[%s4 + $0x170] sm:$0xff]
    %v410 = vld [vmem:[%s4 + $0x178] sm:$0xff]
    %v411 = vld [vmem:[%s6] sm:$0x7]
    %v412 = vld [vmem:[%s1] sm:$0xff]
    %v414 = vlaneseq
    %v415 = vshrl.u32 %v414, 7
    %v416 = vsub.s32 0, %v415
    %v417 = vrot.slane %v411, %v416
    %v418 = vlaneseq
    %v419 = vshrl.u32 %v418, 7
    %v420 = vsub.s32 1, %v419
    %v421 = vrot.slane %v411, %v420
    %v422 = vlaneseq
    %v423 = vshrl.u32 %v422, 7
    %v424 = vsub.s32 2, %v423
    %v425 = vrot.slane %v411, %v424
    %429 = vmatprep.subr.mxu0 %v409
    %430 = vmatpush1.msra.mxu0 %v408
    %431 = vmatprep.subr.mxu0 %v406
    %432 = vmatpush1.msra.mxu0 %v405
    %433 = vmatprep.subr.mxu0 %v403
    %434 = vmatpush1.msra.mxu0 %v402
    %435 = vmatprep.subr.mxu0 %v400
    %436 = vmatpush1.msra.mxu0 %v399
    %437 = vmatprep.subr.mxu0 %v397
    %438 = vmatpush1.msra.mxu0 %v396
    %439 = vmatprep.subr.mxu0 %v394
    %440 = vmatpush1.msra.mxu0 %v393
    %441 = vmatprep.subr.mxu0 %v391
    %442 = vmatpush1.msra.mxu0 %v390
    %443 = vmatprep.subr.mxu0 %v388
    %444 = vmatpush1.msra.mxu0 %v387
    %445 = vmatprep.subr.mxu0 %v385
    %446 = vmatpush1.msra.mxu0 %v384
    %447 = vmatprep.subr.mxu0 %v382
    %448 = vmatpush1.msra.mxu0 %v381
    %449 = vmatprep.subr.mxu0 %v379
    %450 = vmatpush1.msra.mxu0 %v378
    %451 = vmatprep.subr.mxu0 %v376
    %452 = vmatpush1.msra.mxu0 %v375
    %453 = vmatprep.subr.mxu0 %v373
    %454 = vmatpush1.msra.mxu0 %v372
    %455 = vmatprep.subr.mxu0 %v370
    %456 = vmatpush1.msra.mxu0 %v369
    %457 = vmatprep.subr.mxu0 %v367
    %458 = vmatpush1.msra.mxu0 %v366
    %459 = vmatprep.subr.mxu0 %v364
    %460 = vmatpush1.msra.mxu0 %v363
    %461 = vmatprep.subr.mxu0 0.0
    %462 = vmatpush2.msra.mxu0 0.0
    %463 = vmatprep.subr.mxu0 0.0
    %464 = vmatpush2.msra.mxu0 0.0
    %465 = vmatprep.subr.mxu0 0.0
    %466 = vmatpush2.msra.mxu0 0.0
    %467 = vmatprep.subr.mxu0 0.0
    %468 = vmatpush2.msra.mxu0 0.0
    %469 = vmatprep.subr.mxu0 0.0
    %470 = vmatpush2.msra.mxu0 0.0
    %471 = vmatprep.subr.mxu0 0.0
    %472 = vmatpush2.msra.mxu0 0.0
    %473 = vmatprep.subr.mxu0 0.0
    %474 = vmatpush2.msra.mxu0 0.0
    %475 = vmatprep.subr.mxu0 0.0
    %476 = vmatpush2.msra.mxu0 0.0
    %477 = vmatprep.subr.mxu0 0.0
    %478 = vmatpush2.msra.mxu0 0.0
    %479 = vmatprep.subr.mxu0 0.0
    %480 = vmatpush2.msra.mxu0 0.0
    %481 = vmatprep.subr.mxu0 0.0
    %482 = vmatpush2.msra.mxu0 0.0
    %483 = vmatprep.subr.mxu0 0.0
    %484 = vmatpush2.msra.mxu0 0.0
    %485 = vmatprep.subr.mxu0 0.0
    %486 = vmatpush2.msra.mxu0 0.0
    %487 = vmatprep.subr.mxu0 0.0
    %488 = vmatpush2.msra.mxu0 0.0
    %489 = vmatprep.subr.mxu0 0.0
    %490 = vmatpush2.msra.mxu0 0.0
    %491 = vmatprep.subr.mxu0 0.0
    %492 = vmatpush2.msra.mxu0 0.0
    %493 = vmatprep.mubr.f32.mxu0 0.0
    %494 = vmatmul.mubr.f32.gmra.mxu0 0.0
    %v495 = vpop.f32.mrf.mxu0
    %v496 = vadd.f32 %v417, %v495
    %v497 = vpop.f32.mrf.mxu0
    %v498 = vadd.f32 %v421, %v497
    %499 = vdwg.mxu0
    %500 = vmatprep.subr.mxu0 0.0
    %501 = vmatpush1.msra.mxu0 %v410
    %502 = vmatprep.subr.mxu0 0.0
    %503 = vmatpush1.msra.mxu0 %v407
    %504 = vmatprep.subr.mxu0 0.0
    %505 = vmatpush1.msra.mxu0 %v404
    %506 = vmatprep.subr.mxu0 0.0
    %507 = vmatpush1.msra.mxu0 %v401
    %508 = vmatprep.subr.mxu0 0.0
    %509 = vmatpush1.msra.mxu0 %v398
    %510 = vmatprep.subr.mxu0 0.0
    %511 = vmatpush1.msra.mxu0 %v395
    %512 = vmatprep.subr.mxu0 0.0
    %513 = vmatpush1.msra.mxu0 %v392
    %514 = vmatprep.subr.mxu0 0.0
    %515 = vmatpush1.msra.mxu0 %v389
    %516 = vmatprep.subr.mxu0 0.0
    %517 = vmatpush1.msra.mxu0 %v386
    %518 = vmatprep.subr.mxu0 0.0
    %519 = vmatpush1.msra.mxu0 %v383
    %520 = vmatprep.subr.mxu0 0.0
    %521 = vmatpush1.msra.mxu0 %v380
    %522 = vmatprep.subr.mxu0 0.0
    %523 = vmatpush1.msra.mxu0 %v377
    %524 = vmatprep.subr.mxu0 0.0
    %525 = vmatpush1.msra.mxu0 %v374
    %526 = vmatprep.subr.mxu0 0.0
    %527 = vmatpush1.msra.mxu0 %v371
    %528 = vmatprep.subr.mxu0 0.0
    %529 = vmatpush1.msra.mxu0 %v368
    %530 = vmatprep.subr.mxu0 0.0
    %531 = vmatpush1.msra.mxu0 %v365
    %532 = vmatprep.subr.mxu0 0.0
    %533 = vmatpush2.msra.mxu0 0.0
    %534 = vmatprep.subr.mxu0 0.0
    %535 = vmatpush2.msra.mxu0 0.0
    %536 = vmatprep.subr.mxu0 0.0
    %537 = vmatpush2.msra.mxu0 0.0
    %538 = vmatprep.subr.mxu0 0.0
    %539 = vmatpush2.msra.mxu0 0.0
    %540 = vmatprep.subr.mxu0 0.0
    %541 = vmatpush2.msra.mxu0 0.0
    %542 = vmatprep.subr.mxu0 0.0
    %543 = vmatpush2.msra.mxu0 0.0
    %544 = vmatprep.subr.mxu0 0.0
    %545 = vmatpush2.msra.mxu0 0.0
    %546 = vmatprep.subr.mxu0 0.0
    %547 = vmatpush2.msra.mxu0 0.0
    %548 = vmatprep.subr.mxu0 0.0
    %549 = vmatpush2.msra.mxu0 0.0
    %550 = vmatprep.subr.mxu0 0.0
    %551 = vmatpush2.msra.mxu0 0.0
    %552 = vmatprep.subr.mxu0 0.0
    %553 = vmatpush2.msra.mxu0 0.0
    %554 = vmatprep.subr.mxu0 0.0
    %555 = vmatpush2.msra.mxu0 0.0
    %556 = vmatprep.subr.mxu0 0.0
    %557 = vmatpush2.msra.mxu0 0.0
    %558 = vmatprep.subr.mxu0 0.0
    %559 = vmatpush2.msra.mxu0 0.0
    %560 = vmatprep.subr.mxu0 0.0
    %561 = vmatpush2.msra.mxu0 0.0
    %562 = vmatprep.subr.mxu0 0.0
    %563 = vmatpush2.msra.mxu0 0.0
    %564 = vmatprep.mubr.f32.mxu0 0.0
    %565 = vmatmul.mubr.f32.gmra.mxu0 0.0
    %v566 = vpop.f32.mrf.mxu0
    %v567 = vadd.f32 %v425, %v566
    %v568 = vpop.f32.mrf.mxu0
    %569 = vdwg.mxu0
    %v570 = vadd.f32 %v212, %v496
    %v571 = vxor.u32 %v570, 2147483648
    %v572 = vmul.f32 %v571, 1.442695
    %v573 = vpow.pop %v572
    %v574 = vadd.f32 %v573, 1.0
    %v575 = vrcp.pop %v574
    %v576 = vmul.f32 1.0, %v575
    %v577 = vadd.f32 %v214, %v498
    %v578 = vxor.u32 %v577, 2147483648
    %v579 = vmul.f32 %v578, 1.442695
    %v580 = vpow.pop %v579
    %v581 = vadd.f32 %v580, 1.0
    %v582 = vrcp.pop %v581
    %v583 = vmul.f32 1.0, %v582
    %v584 = vmul.f32 %v576, %v567
    %v585 = vadd.f32 %v325, %v584
    %v586 = vtanh.pop %v585
    %v587 = vsub.f32 1.0, %v583
    %v588 = vmul.f32 %v587, %v586
    %v589 = vmul.f32 %v583, 0.0
    %v590 = vadd.f32 %v588, %v589
    %vm591 = vcmp.gt.f32.partialorder %v412, 0.0
    %v592 = vsel %vm591, 1, 0
    %v593 = vcvt.s32.f32 %v592
    %595 = vset.pattern.permute.xlu0 0
    %596 = vperm.xlu0 %595, %v593
    %v597 = vpop.permute.xlu0 %596
    %v599 = vmul.f32 %v597, %v590
    %v600 = vsub.f32 1.0, %v593
    %602 = vset.pattern.permute.xlu0 0
    %603 = vperm.xlu0 %602, %v600
    %v604 = vpop.permute.xlu0 %603
    %v606 = vmul.f32 %v604, 0.0
    %v607 = vadd.f32 %v599, %v606
    %608 = vst [vmem:[#allocation2] sm:$0xff] %v599
    %609 = vmatprep.subr.mxu0 %v409
    %610 = vmatpush1.msra.mxu0 %v408
    %611 = vmatprep.subr.mxu0 %v406
    %612 = vmatpush1.msra.mxu0 %v405
    %613 = vmatprep.subr.mxu0 %v403
    %614 = vmatpush1.msra.mxu0 %v402
    %615 = vmatprep.subr.mxu0 %v400
    %616 = vmatpush1.msra.mxu0 %v399
    %617 = vmatprep.subr.mxu0 %v397
    %618 = vmatpush1.msra.mxu0 %v396
    %619 = vmatprep.subr.mxu0 %v394
    %620 = vmatpush1.msra.mxu0 %v393
    %621 = vmatprep.subr.mxu0 %v391
    %622 = vmatpush1.msra.mxu0 %v390
    %623 = vmatprep.subr.mxu0 %v388
    %624 = vmatpush1.msra.mxu0 %v387
    %625 = vmatprep.subr.mxu0 %v385
    %626 = vmatpush1.msra.mxu0 %v384
    %627 = vmatprep.subr.mxu0 %v382
    %628 = vmatpush1.msra.mxu0 %v381
    %629 = vmatprep.subr.mxu0 %v379
    %630 = vmatpush1.msra.mxu0 %v378
    %631 = vmatprep.subr.mxu0 %v376
    %632 = vmatpush1.msra.mxu0 %v375
    %633 = vmatprep.subr.mxu0 %v373
    %634 = vmatpush1.msra.mxu0 %v372
    %635 = vmatprep.subr.mxu0 %v370
    %636 = vmatpush1.msra.mxu0 %v369
    %637 = vmatprep.subr.mxu0 %v367
    %638 = vmatpush1.msra.mxu0 %v366
    %639 = vmatprep.subr.mxu0 %v364
    %640 = vmatpush1.msra.mxu0 %v363
    %641 = vmatprep.subr.mxu0 0.0
    %642 = vmatpush2.msra.mxu0 0.0
    %643 = vmatprep.subr.mxu0 0.0
    %644 = vmatpush2.msra.mxu0 0.0
    %645 = vmatprep.subr.mxu0 0.0
    %646 = vmatpush2.msra.mxu0 0.0
    %647 = vmatprep.subr.mxu0 0.0
    %648 = vmatpush2.msra.mxu0 0.0
    %649 = vmatprep.subr.mxu0 0.0
    %650 = vmatpush2.msra.mxu0 0.0
    %651 = vmatprep.subr.mxu0 0.0
    %652 = vmatpush2.msra.mxu0 0.0
    %653 = vmatprep.subr.mxu0 0.0
    %654 = vmatpush2.msra.mxu0 0.0
    %655 = vmatprep.subr.mxu0 0.0
    %656 = vmatpush2.msra.mxu0 0.0
    %657 = vmatprep.subr.mxu0 0.0
    %658 = vmatpush2.msra.mxu0 0.0
    %659 = vmatprep.subr.mxu0 0.0
    %660 = vmatpush2.msra.mxu0 0.0
    %661 = vmatprep.subr.mxu0 0.0
    %662 = vmatpush2.msra.mxu0 0.0
    %663 = vmatprep.subr.mxu0 0.0
    %664 = vmatpush2.msra.mxu0 0.0
    %665 = vmatprep.subr.mxu0 0.0
    %666 = vmatpush2.msra.mxu0 0.0
    %667 = vmatprep.subr.mxu0 0.0
    %668 = vmatpush2.msra.mxu0 0.0
    %669 = vmatprep.subr.mxu0 0.0
    %670 = vmatpush2.msra.mxu0 0.0
    %671 = vmatprep.subr.mxu0 0.0
    %672 = vmatpush2.msra.mxu0 0.0
    %673 = vmatprep.mubr.f32.mxu0 0.0
    %674 = vmatmul.mubr.f32.gmra.mxu0 %v607
    %v675 = vpop.f32.mrf.mxu0
    %v676 = vadd.f32 %v417, %v675
    %v677 = vpop.f32.mrf.mxu0
    %v678 = vadd.f32 %v421, %v677
    %679 = vdwg.mxu0
    %680 = vmatprep.subr.mxu0 0.0
    %681 = vmatpush1.msra.mxu0 %v410
    %682 = vmatprep.subr.mxu0 0.0
    %683 = vmatpush1.msra.mxu0 %v407
    %684 = vmatprep.subr.mxu0 0.0
    %685 = vmatpush1.msra.mxu0 %v404
    %686 = vmatprep.subr.mxu0 0.0
    %687 = vmatpush1.msra.mxu0 %v401
    %688 = vmatprep.subr.mxu0 0.0
    %689 = vmatpush1.msra.mxu0 %v398
    %690 = vmatprep.subr.mxu0 0.0
    %691 = vmatpush1.msra.mxu0 %v395
    %692 = vmatprep.subr.mxu0 0.0
    %693 = vmatpush1.msra.mxu0 %v392
    %694 = vmatprep.subr.mxu0 0.0
    %695 = vmatpush1.msra.mxu0 %v389
    %696 = vmatprep.subr.mxu0 0.0
    %697 = vmatpush1.msra.mxu0 %v386
    %698 = vmatprep.subr.mxu0 0.0
    %699 = vmatpush1.msra.mxu0 %v383
    %700 = vmatprep.subr.mxu0 0.0
    %701 = vmatpush1.msra.mxu0 %v380
    %702 = vmatprep.subr.mxu0 0.0
    %703 = vmatpush1.msra.mxu0 %v377
    %704 = vmatprep.subr.mxu0 0.0
    %705 = vmatpush1.msra.mxu0 %v374
    %706 = vmatprep.subr.mxu0 0.0
    %707 = vmatpush1.msra.mxu0 %v371
    %708 = vmatprep.subr.mxu0 0.0
    %709 = vmatpush1.msra.mxu0 %v368
    %710 = vmatprep.subr.mxu0 0.0
    %711 = vmatpush1.msra.mxu0 %v365
    %712 = vmatprep.subr.mxu0 0.0
    %713 = vmatpush2.msra.mxu0 0.0
    %714 = vmatprep.subr.mxu0 0.0
    %715 = vmatpush2.msra.mxu0 0.0
    %716 = vmatprep.subr.mxu0 0.0
    %717 = vmatpush2.msra.mxu0 0.0
    %718 = vmatprep.subr.mxu0 0.0
    %719 = vmatpush2.msra.mxu0 0.0
    %720 = vmatprep.subr.mxu0 0.0
    %721 = vmatpush2.msra.mxu0 0.0
    %722 = vmatprep.subr.mxu0 0.0
    %723 = vmatpush2.msra.mxu0 0.0
    %724 = vmatprep.subr.mxu0 0.0
    %725 = vmatpush2.msra.mxu0 0.0
    %726 = vmatprep.subr.mxu0 0.0
    %727 = vmatpush2.msra.mxu0 0.0
    %728 = vmatprep.subr.mxu0 0.0
    %729 = vmatpush2.msra.mxu0 0.0
    %730 = vmatprep.subr.mxu0 0.0
    %731 = vmatpush2.msra.mxu0 0.0
    %732 = vmatprep.subr.mxu0 0.0
    %733 = vmatpush2.msra.mxu0 0.0
    %734 = vmatprep.subr.mxu0 0.0
    %735 = vmatpush2.msra.mxu0 0.0
    %736 = vmatprep.subr.mxu0 0.0
    %737 = vmatpush2.msra.mxu0 0.0
    %738 = vmatprep.subr.mxu0 0.0
    %739 = vmatpush2.msra.mxu0 0.0
    %740 = vmatprep.subr.mxu0 0.0
    %741 = vmatpush2.msra.mxu0 0.0
    %742 = vmatprep.subr.mxu0 0.0
    %743 = vmatpush2.msra.mxu0 0.0
    %744 = vmatprep.mubr.f32.mxu0 0.0
    %745 = vmatmul.mubr.f32.gmra.mxu0 %v607
    %v746 = vpop.f32.mrf.mxu0
    %v747 = vadd.f32 %v425, %v746
    %v748 = vpop.f32.mrf.mxu0
    %749 = vdwg.mxu0
    %v750 = vadd.f32 %v218, %v676
    %v751 = vxor.u32 %v750, 2147483648
    %v752 = vmul.f32 %v751, 1.442695
    %v753 = vpow.pop %v752
    %v754 = vadd.f32 %v753, 1.0
    %v755 = vrcp.pop %v754
    %v756 = vmul.f32 1.0, %v755
    %v757 = vadd.f32 %v220, %v678
    %v758 = vxor.u32 %v757, 2147483648
    %v759 = vmul.f32 %v758, 1.442695
    %v760 = vpow.pop %v759
    %v761 = vadd.f32 %v760, 1.0
    %v762 = vrcp.pop %v761
    %v763 = vmul.f32 1.0, %v762
    %v764 = vmul.f32 %v756, %v747
    %v765 = vadd.f32 %v330, %v764
    %v766 = vtanh.pop %v765
    %v767 = vsub.f32 1.0, %v763
    %v768 = vmul.f32 %v767, %v766
    %v769 = vmul.f32 %v763, %v607
    %v770 = vadd.f32 %v768, %v769
    %vm771 = vcmp.gt.f32.partialorder %v412, 1.0
    %v772 = vsel %vm771, 1, 0
    %v773 = vcvt.s32.f32 %v772
    %775 = vset.pattern.permute.xlu0 0
    %776 = vperm.xlu0 %775, %v773
    %v777 = vpop.permute.xlu0 %776
    %v779 = vmul.f32 %v777, %v770
    %v780 = vsub.f32 1.0, %v773
    %782 = vset.pattern.permute.xlu0 0
    %783 = vperm.xlu0 %782, %v780
    %v784 = vpop.permute.xlu0 %783
    %v786 = vmul.f32 %v784, %v607
    %v787 = vadd.f32 %v779, %v786
    %788 = vst [vmem:[#allocation2 + $0x8] sm:$0xff] %v779
    %789 = vmatprep.subr.mxu0 %v409
    %790 = vmatpush1.msra.mxu0 %v408
    %791 = vmatprep.subr.mxu0 %v406
    %792 = vmatpush1.msra.mxu0 %v405
    %793 = vmatprep.subr.mxu0 %v403
    %794 = vmatpush1.msra.mxu0 %v402
    %795 = vmatprep.subr.mxu0 %v400
    %796 = vmatpush1.msra.mxu0 %v399
    %797 = vmatprep.subr.mxu0 %v397
    %798 = vmatpush1.msra.mxu0 %v396
    %799 = vmatprep.subr.mxu0 %v394
    %800 = vmatpush1.msra.mxu0 %v393
    %801 = vmatprep.subr.mxu0 %v391
    %802 = vmatpush1.msra.mxu0 %v390
    %803 = vmatprep.subr.mxu0 %v388
    %804 = vmatpush1.msra.mxu0 %v387
    %805 = vmatprep.subr.mxu0 %v385
    %806 = vmatpush1.msra.mxu0 %v384
    %807 = vmatprep.subr.mxu0 %v382
    %808 = vmatpush1.msra.mxu0 %v381
    %809 = vmatprep.subr.mxu0 %v379
    %810 = vmatpush1.msra.mxu0 %v378
    %811 = vmatprep.subr.mxu0 %v376
    %812 = vmatpush1.msra.mxu0 %v375
    %813 = vmatprep.subr.mxu0 %v373
    %814 = vmatpush1.msra.mxu0 %v372
    %815 = vmatprep.subr.mxu0 %v370
    %816 = vmatpush1.msra.mxu0 %v369
    %817 = vmatprep.subr.mxu0 %v367
    %818 = vmatpush1.msra.mxu0 %v366
    %819 = vmatprep.subr.mxu0 %v364
    %820 = vmatpush1.msra.mxu0 %v363
    %821 = vmatprep.subr.mxu0 0.0
    %822 = vmatpush2.msra.mxu0 0.0
    %823 = vmatprep.subr.mxu0 0.0
    %824 = vmatpush2.msra.mxu0 0.0
    %825 = vmatprep.subr.mxu0 0.0
    %826 = vmatpush2.msra.mxu0 0.0
    %827 = vmatprep.subr.mxu0 0.0
    %828 = vmatpush2.msra.mxu0 0.0
    %829 = vmatprep.subr.mxu0 0.0
    %830 = vmatpush2.msra.mxu0 0.0
    %831 = vmatprep.subr.mxu0 0.0
    %832 = vmatpush2.msra.mxu0 0.0
    %833 = vmatprep.subr.mxu0 0.0
    %834 = vmatpush2.msra.mxu0 0.0
    %835 = vmatprep.subr.mxu0 0.0
    %836 = vmatpush2.msra.mxu0 0.0
    %837 = vmatprep.subr.mxu0 0.0
    %838 = vmatpush2.msra.mxu0 0.0
    %839 = vmatprep.subr.mxu0 0.0
    %840 = vmatpush2.msra.mxu0 0.0
    %841 = vmatprep.subr.mxu0 0.0
    %842 = vmatpush2.msra.mxu0 0.0
    %843 = vmatprep.subr.mxu0 0.0
    %844 = vmatpush2.msra.mxu0 0.0
    %845 = vmatprep.subr.mxu0 0.0
    %846 = vmatpush2.msra.mxu0 0.0
    %847 = vmatprep.subr.mxu0 0.0
    %848 = vmatpush2.msra.mxu0 0.0
    %849 = vmatprep.subr.mxu0 0.0
    %850 = vmatpush2.msra.mxu0 0.0
    %851 = vmatprep.subr.mxu0 0.0
    %852 = vmatpush2.msra.mxu0 0.0
    %853 = vmatprep.mubr.f32.mxu0 0.0
    %854 = vmatmul.mubr.f32.gmra.mxu0 %v787
    %v855 = vpop.f32.mrf.mxu0
    %v856 = vadd.f32 %v417, %v855
    %v857 = vpop.f32.mrf.mxu0
    %v858 = vadd.f32 %v421, %v857
    %859 = vdwg.mxu0
    %860 = vmatprep.subr.mxu0 0.0
    %861 = vmatpush1.msra.mxu0 %v410
    %862 = vmatprep.subr.mxu0 0.0
    %863 = vmatpush1.msra.mxu0 %v407
    %864 = vmatprep.subr.mxu0 0.0
    %865 = vmatpush1.msra.mxu0 %v404
    %866 = vmatprep.subr.mxu0 0.0
    %867 = vmatpush1.msra.mxu0 %v401
    %868 = vmatprep.subr.mxu0 0.0
    %869 = vmatpush1.msra.mxu0 %v398
    %870 = vmatprep.subr.mxu0 0.0
    %871 = vmatpush1.msra.mxu0 %v395
    %872 = vmatprep.subr.mxu0 0.0
    %873 = vmatpush1.msra.mxu0 %v392
    %874 = vmatprep.subr.mxu0 0.0
    %875 = vmatpush1.msra.mxu0 %v389
    %876 = vmatprep.subr.mxu0 0.0
    %877 = vmatpush1.msra.mxu0 %v386
    %878 = vmatprep.subr.mxu0 0.0
    %879 = vmatpush1.msra.mxu0 %v383
    %880 = vmatprep.subr.mxu0 0.0
    %881 = vmatpush1.msra.mxu0 %v380
    %882 = vmatprep.subr.mxu0 0.0
    %883 = vmatpush1.msra.mxu0 %v377
    %884 = vmatprep.subr.mxu0 0.0
    %885 = vmatpush1.msra.mxu0 %v374
    %886 = vmatprep.subr.mxu0 0.0
    %887 = vmatpush1.msra.mxu0 %v371
    %888 = vmatprep.subr.mxu0 0.0
    %889 = vmatpush1.msra.mxu0 %v368
    %890 = vmatprep.subr.mxu0 0.0
    %891 = vmatpush1.msra.mxu0 %v365
    %892 = vmatprep.subr.mxu0 0.0
    %893 = vmatpush2.msra.mxu0 0.0
    %894 = vmatprep.subr.mxu0 0.0
    %895 = vmatpush2.msra.mxu0 0.0
    %896 = vmatprep.subr.mxu0 0.0
    %897 = vmatpush2.msra.mxu0 0.0
    %898 = vmatprep.subr.mxu0 0.0
    %899 = vmatpush2.msra.mxu0 0.0
    %900 = vmatprep.subr.mxu0 0.0
    %901 = vmatpush2.msra.mxu0 0.0
    %902 = vmatprep.subr.mxu0 0.0
    %903 = vmatpush2.msra.mxu0 0.0
    %904 = vmatprep.subr.mxu0 0.0
    %905 = vmatpush2.msra.mxu0 0.0
    %906 = vmatprep.subr.mxu0 0.0
    %907 = vmatpush2.msra.mxu0 0.0
    %908 = vmatprep.subr.mxu0 0.0
    %909 = vmatpush2.msra.mxu0 0.0
    %910 = vmatprep.subr.mxu0 0.0
    %911 = vmatpush2.msra.mxu0 0.0
    %912 = vmatprep.subr.mxu0 0.0
    %913 = vmatpush2.msra.mxu0 0.0
    %914 = vmatprep.subr.mxu0 0.0
    %915 = vmatpush2.msra.mxu0 0.0
    %916 = vmatprep.subr.mxu0 0.0
    %917 = vmatpush2.msra.mxu0 0.0
    %918 = vmatprep.subr.mxu0 0.0
    %919 = vmatpush2.msra.mxu0 0.0
    %920 = vmatprep.subr.mxu0 0.0
    %921 = vmatpush2.msra.mxu0 0.0
    %922 = vmatprep.subr.mxu0 0.0
    %923 = vmatpush2.msra.mxu0 0.0
    %924 = vmatprep.mubr.f32.mxu0 0.0
    %925 = vmatmul.mubr.f32.gmra.mxu0 %v787
    %v926 = vpop.f32.mrf.mxu0
    %v927 = vadd.f32 %v425, %v926
    %v928 = vpop.f32.mrf.mxu0
    %929 = vdwg.mxu0
    %v930 = vadd.f32 %v224, %v856
    %v931 = vxor.u32 %v930, 2147483648
    %v932 = vmul.f32 %v931, 1.442695
    %v933 = vpow.pop %v932
    %v934 = vadd.f32 %v933, 1.0
    %v935 = vrcp.pop %v934
    %v936 = vmul.f32 1.0, %v935
    %v937 = vadd.f32 %v226, %v858
    %v938 = vxor.u32 %v937, 2147483648
    %v939 = vmul.f32 %v938, 1.442695
    %v940 = vpow.pop %v939
    %v941 = vadd.f32 %v940, 1.0
    %v942 = vrcp.pop %v941
    %v943 = vmul.f32 1.0, %v942
    %v944 = vmul.f32 %v936, %v927
    %v945 = vadd.f32 %v335, %v944
    %v946 = vtanh.pop %v945
    %v947 = vsub.f32 1.0, %v943
    %v948 = vmul.f32 %v947, %v946
    %v949 = vmul.f32 %v943, %v787
    %v950 = vadd.f32 %v948, %v949
    %vm951 = vcmp.gt.f32.partialorder %v412, 2.0
    %v952 = vsel %vm951, 1, 0
    %v953 = vcvt.s32.f32 %v952
    %955 = vset.pattern.permute.xlu0 0
    %956 = vperm.xlu0 %955, %v953
    %v957 = vpop.permute.xlu0 %956
    %v959 = vmul.f32 %v957, %v950
    %v960 = vsub.f32 1.0, %v953
    %962 = vset.pattern.permute.xlu0 0
    %963 = vperm.xlu0 %962, %v960
    %v964 = vpop.permute.xlu0 %963
    %v966 = vmul.f32 %v964, %v787
    %v967 = vadd.f32 %v959, %v966
    %968 = vst [vmem:[#allocation2 + $0x10] sm:$0xff] %v959
    %969 = vmatprep.subr.mxu0 %v409
    %970 = vmatpush1.msra.mxu0 %v408
    %971 = vmatprep.subr.mxu0 %v406
    %972 = vmatpush1.msra.mxu0 %v405
    %973 = vmatprep.subr.mxu0 %v403
    %974 = vmatpush1.msra.mxu0 %v402
    %975 = vmatprep.subr.mxu0 %v400
    %976 = vmatpush1.msra.mxu0 %v399
    %977 = vmatprep.subr.mxu0 %v397
    %978 = vmatpush1.msra.mxu0 %v396
    %979 = vmatprep.subr.mxu0 %v394
    %980 = vmatpush1.msra.mxu0 %v393
    %981 = vmatprep.subr.mxu0 %v391
    %982 = vmatpush1.msra.mxu0 %v390
    %983 = vmatprep.subr.mxu0 %v388
    %984 = vmatpush1.msra.mxu0 %v387
    %985 = vmatprep.subr.mxu0 %v385
    %986 = vmatpush1.msra.mxu0 %v384
    %987 = vmatprep.subr.mxu0 %v382
    %988 = vmatpush1.msra.mxu0 %v381
    %989 = vmatprep.subr.mxu0 %v379
    %990 = vmatpush1.msra.mxu0 %v378
    %991 = vmatprep.subr.mxu0 %v376
    %992 = vmatpush1.msra.mxu0 %v375
    %993 = vmatprep.subr.mxu0 %v373
    %994 = vmatpush1.msra.mxu0 %v372
    %995 = vmatprep.subr.mxu0 %v370
    %996 = vmatpush1.msra.mxu0 %v369
    %997 = vmatprep.subr.mxu0 %v367
    %998 = vmatpush1.msra.mxu0 %v366
    %999 = vmatprep.subr.mxu0 %v364
    %1000 = vmatpush1.msra.mxu0 %v363
    %1001 = vmatprep.subr.mxu0 0.0
    %1002 = vmatpush2.msra.mxu0 0.0
    %1003 = vmatprep.subr.mxu0 0.0
    %1004 = vmatpush2.msra.mxu0 0.0
    %1005 = vmatprep.subr.mxu0 0.0
    %1006 = vmatpush2.msra.mxu0 0.0
    %1007 = vmatprep.subr.mxu0 0.0
    %1008 = vmatpush2.msra.mxu0 0.0
    %1009 = vmatprep.subr.mxu0 0.0
    %1010 = vmatpush2.msra.mxu0 0.0
    %1011 = vmatprep.subr.mxu0 0.0
    %1012 = vmatpush2.msra.mxu0 0.0
    %1013 = vmatprep.subr.mxu0 0.0
    %1014 = vmatpush2.msra.mxu0 0.0
    %1015 = vmatprep.subr.mxu0 0.0
    %1016 = vmatpush2.msra.mxu0 0.0
    %1017 = vmatprep.subr.mxu0 0.0
    %1018 = vmatpush2.msra.mxu0 0.0
    %1019 = vmatprep.subr.mxu0 0.0
    %1020 = vmatpush2.msra.mxu0 0.0
    %1021 = vmatprep.subr.mxu0 0.0
    %1022 = vmatpush2.msra.mxu0 0.0
    %1023 = vmatprep.subr.mxu0 0.0
    %1024 = vmatpush2.msra.mxu0 0.0
    %1025 = vmatprep.subr.mxu0 0.0
    %1026 = vmatpush2.msra.mxu0 0.0
    %1027 = vmatprep.subr.mxu0 0.0
    %1028 = vmatpush2.msra.mxu0 0.0
    %1029 = vmatprep.subr.mxu0 0.0
    %1030 = vmatpush2.msra.mxu0 0.0
    %1031 = vmatprep.subr.mxu0 0.0
    %1032 = vmatpush2.msra.mxu0 0.0
    %1033 = vmatprep.mubr.f32.mxu0 0.0
    %1034 = vmatmul.mubr.f32.gmra.mxu0 %v967
    %v1035 = vpop.f32.mrf.mxu0
    %v1036 = vadd.f32 %v417, %v1035
    %v1037 = vpop.f32.mrf.mxu0
    %v1038 = vadd.f32 %v421, %v1037
    %1039 = vdwg.mxu0
    %1040 = vmatprep.subr.mxu0 0.0
    %1041 = vmatpush1.msra.mxu0 %v410
    %1042 = vmatprep.subr.mxu0 0.0
    %1043 = vmatpush1.msra.mxu0 %v407
    %1044 = vmatprep.subr.mxu0 0.0
    %1045 = vmatpush1.msra.mxu0 %v404
    %1046 = vmatprep.subr.mxu0 0.0
    %1047 = vmatpush1.msra.mxu0 %v401
    %1048 = vmatprep.subr.mxu0 0.0
    %1049 = vmatpush1.msra.mxu0 %v398
    %1050 = vmatprep.subr.mxu0 0.0
    %1051 = vmatpush1.msra.mxu0 %v395
    %1052 = vmatprep.subr.mxu0 0.0
    %1053 = vmatpush1.msra.mxu0 %v392
    %1054 = vmatprep.subr.mxu0 0.0
    %1055 = vmatpush1.msra.mxu0 %v389
    %1056 = vmatprep.subr.mxu0 0.0
    %1057 = vmatpush1.msra.mxu0 %v386
    %1058 = vmatprep.subr.mxu0 0.0
    %1059 = vmatpush1.msra.mxu0 %v383
    %1060 = vmatprep.subr.mxu0 0.0
    %1061 = vmatpush1.msra.mxu0 %v380
    %1062 = vmatprep.subr.mxu0 0.0
    %1063 = vmatpush1.msra.mxu0 %v377
    %1064 = vmatprep.subr.mxu0 0.0
    %1065 = vmatpush1.msra.mxu0 %v374
    %1066 = vmatprep.subr.mxu0 0.0
    %1067 = vmatpush1.msra.mxu0 %v371
    %1068 = vmatprep.subr.mxu0 0.0
    %1069 = vmatpush1.msra.mxu0 %v368
    %1070 = vmatprep.subr.mxu0 0.0
    %1071 = vmatpush1.msra.mxu0 %v365
    %1072 = vmatprep.subr.mxu0 0.0
    %1073 = vmatpush2.msra.mxu0 0.0
    %1074 = vmatprep.subr.mxu0 0.0
    %1075 = vmatpush2.msra.mxu0 0.0
    %1076 = vmatprep.subr.mxu0 0.0
    %1077 = vmatpush2.msra.mxu0 0.0
    %1078 = vmatprep.subr.mxu0 0.0
    %1079 = vmatpush2.msra.mxu0 0.0
    %1080 = vmatprep.subr.mxu0 0.0
    %1081 = vmatpush2.msra.mxu0 0.0
    %1082 = vmatprep.subr.mxu0 0.0
    %1083 = vmatpush2.msra.mxu0 0.0
    %1084 = vmatprep.subr.mxu0 0.0
    %1085 = vmatpush2.msra.mxu0 0.0
    %1086 = vmatprep.subr.mxu0 0.0
    %1087 = vmatpush2.msra.mxu0 0.0
    %1088 = vmatprep.subr.mxu0 0.0
    %1089 = vmatpush2.msra.mxu0 0.0
    %1090 = vmatprep.subr.mxu0 0.0
    %1091 = vmatpush2.msra.mxu0 0.0
    %1092 = vmatprep.subr.mxu0 0.0
    %1093 = vmatpush2.msra.mxu0 0.0
    %1094 = vmatprep.subr.mxu0 0.0
    %1095 = vmatpush2.msra.mxu0 0.0
    %1096 = vmatprep.subr.mxu0 0.0
    %1097 = vmatpush2.msra.mxu0 0.0
    %1098 = vmatprep.subr.mxu0 0.0
    %1099 = vmatpush2.msra.mxu0 0.0
    %1100 = vmatprep.subr.mxu0 0.0
    %1101 = vmatpush2.msra.mxu0 0.0
    %1102 = vmatprep.subr.mxu0 0.0
    %1103 = vmatpush2.msra.mxu0 0.0
    %1104 = vmatprep.mubr.f32.mxu0 0.0
    %1105 = vmatmul.mubr.f32.gmra.mxu0 %v967
    %v1106 = vpop.f32.mrf.mxu0
    %v1107 = vadd.f32 %v425, %v1106
    %v1108 = vpop.f32.mrf.mxu0
    %1109 = vdwg.mxu0
    %v1110 = vadd.f32 %v230, %v1036
    %v1111 = vxor.u32 %v1110, 2147483648
    %v1112 = vmul.f32 %v1111, 1.442695
    %v1113 = vpow.pop %v1112
    %v1114 = vadd.f32 %v1113, 1.0
    %v1115 = vrcp.pop %v1114
    %v1116 = vmul.f32 1.0, %v1115
    %v1117 = vadd.f32 %v232, %v1038
    %v1118 = vxor.u32 %v1117, 2147483648
    %v1119 = vmul.f32 %v1118, 1.442695
    %v1120 = vpow.pop %v1119
    %v1121 = vadd.f32 %v1120, 1.0
    %v1122 = vrcp.pop %v1121
    %v1123 = vmul.f32 1.0, %v1122
    %v1124 = vmul.f32 %v1116, %v1107
    %v1125 = vadd.f32 %v340, %v1124
    %v1126 = vtanh.pop %v1125
    %v1127 = vsub.f32 1.0, %v1123
    %v1128 = vmul.f32 %v1127, %v1126
    %v1129 = vmul.f32 %v1123, %v967
    %v1130 = vadd.f32 %v1128, %v1129
    %vm1131 = vcmp.gt.f32.partialorder %v412, 3.0
    %v1132 = vsel %vm1131, 1, 0
    %v1133 = vcvt.s32.f32 %v1132
    %1135 = vset.pattern.permute.xlu0 0
    %1136 = vperm.xlu0 %1135, %v1133
    %v1137 = vpop.permute.xlu0 %1136
    %v1139 = vmul.f32 %v1137, %v1130
    %v1140 = vsub.f32 1.0, %v1133
    %1142 = vset.pattern.permute.xlu0 0
    %1143 = vperm.xlu0 %1142, %v1140
    %v1144 = vpop.permute.xlu0 %1143
    %v1146 = vmul.f32 %v1144, %v967
    %v1147 = vadd.f32 %v1139, %v1146
    %1148 = vst [vmem:[#allocation2 + $0x18] sm:$0xff] %v1139
    %1149 = vmatprep.subr.mxu0 %v409
    %1150 = vmatpush1.msra.mxu0 %v408
    %1151 = vmatprep.subr.mxu0 %v406
    %1152 = vmatpush1.msra.mxu0 %v405
    %1153 = vmatprep.subr.mxu0 %v403
    %1154 = vmatpush1.msra.mxu0 %v402
    %1155 = vmatprep.subr.mxu0 %v400
    %1156 = vmatpush1.msra.mxu0 %v399
    %1157 = vmatprep.subr.mxu0 %v397
    %1158 = vmatpush1.msra.mxu0 %v396
    %1159 = vmatprep.subr.mxu0 %v394
    %1160 = vmatpush1.msra.mxu0 %v393
    %1161 = vmatprep.subr.mxu0 %v391
    %1162 = vmatpush1.msra.mxu0 %v390
    %1163 = vmatprep.subr.mxu0 %v388
    %1164 = vmatpush1.msra.mxu0 %v387
    %1165 = vmatprep.subr.mxu0 %v385
    %1166 = vmatpush1.msra.mxu0 %v384
    %1167 = vmatprep.subr.mxu0 %v382
    %1168 = vmatpush1.msra.mxu0 %v381
    %1169 = vmatprep.subr.mxu0 %v379
    %1170 = vmatpush1.msra.mxu0 %v378
    %1171 = vmatprep.subr.mxu0 %v376
    %1172 = vmatpush1.msra.mxu0 %v375
    %1173 = vmatprep.subr.mxu0 %v373
    %1174 = vmatpush1.msra.mxu0 %v372
    %1175 = vmatprep.subr.mxu0 %v370
    %1176 = vmatpush1.msra.mxu0 %v369
    %1177 = vmatprep.subr.mxu0 %v367
    %1178 = vmatpush1.msra.mxu0 %v366
    %1179 = vmatprep.subr.mxu0 %v364
    %1180 = vmatpush1.msra.mxu0 %v363
    %1181 = vmatprep.subr.mxu0 0.0
    %1182 = vmatpush2.msra.mxu0 0.0
    %1183 = vmatprep.subr.mxu0 0.0
    %1184 = vmatpush2.msra.mxu0 0.0
    %1185 = vmatprep.subr.mxu0 0.0
    %1186 = vmatpush2.msra.mxu0 0.0
    %1187 = vmatprep.subr.mxu0 0.0
    %1188 = vmatpush2.msra.mxu0 0.0
    %1189 = vmatprep.subr.mxu0 0.0
    %1190 = vmatpush2.msra.mxu0 0.0
    %1191 = vmatprep.subr.mxu0 0.0
    %1192 = vmatpush2.msra.mxu0 0.0
    %1193 = vmatprep.subr.mxu0 0.0
    %1194 = vmatpush2.msra.mxu0 0.0
    %1195 = vmatprep.subr.mxu0 0.0
    %1196 = vmatpush2.msra.mxu0 0.0
    %1197 = vmatprep.subr.mxu0 0.0
    %1198 = vmatpush2.msra.mxu0 0.0
    %1199 = vmatprep.subr.mxu0 0.0
    %1200 = vmatpush2.msra.mxu0 0.0
    %1201 = vmatprep.subr.mxu0 0.0
    %1202 = vmatpush2.msra.mxu0 0.0
    %1203 = vmatprep.subr.mxu0 0.0
    %1204 = vmatpush2.msra.mxu0 0.0
    %1205 = vmatprep.subr.mxu0 0.0
    %1206 = vmatpush2.msra.mxu0 0.0
    %1207 = vmatprep.subr.mxu0 0.0
    %1208 = vmatpush2.msra.mxu0 0.0
    %1209 = vmatprep.subr.mxu0 0.0
    %1210 = vmatpush2.msra.mxu0 0.0
    %1211 = vmatprep.subr.mxu0 0.0
    %1212 = vmatpush2.msra.mxu0 0.0
    %1213 = vmatprep.mubr.f32.mxu0 0.0
    %1214 = vmatmul.mubr.f32.gmra.mxu0 %v1147
    %v1215 = vpop.f32.mrf.mxu0
    %v1216 = vadd.f32 %v417, %v1215
    %v1217 = vpop.f32.mrf.mxu0
    %v1218 = vadd.f32 %v421, %v1217
    %1219 = vdwg.mxu0
    %1220 = vmatprep.subr.mxu0 0.0
    %1221 = vmatpush1.msra.mxu0 %v410
    %1222 = vmatprep.subr.mxu0 0.0
    %1223 = vmatpush1.msra.mxu0 %v407
    %1224 = vmatprep.subr.mxu0 0.0
    %1225 = vmatpush1.msra.mxu0 %v404
    %1226 = vmatprep.subr.mxu0 0.0
    %1227 = vmatpush1.msra.mxu0 %v401
    %1228 = vmatprep.subr.mxu0 0.0
    %1229 = vmatpush1.msra.mxu0 %v398
    %1230 = vmatprep.subr.mxu0 0.0
    %1231 = vmatpush1.msra.mxu0 %v395
    %1232 = vmatprep.subr.mxu0 0.0
    %1233 = vmatpush1.msra.mxu0 %v392
    %1234 = vmatprep.subr.mxu0 0.0
    %1235 = vmatpush1.msra.mxu0 %v389
    %1236 = vmatprep.subr.mxu0 0.0
    %1237 = vmatpush1.msra.mxu0 %v386
    %1238 = vmatprep.subr.mxu0 0.0
    %1239 = vmatpush1.msra.mxu0 %v383
    %1240 = vmatprep.subr.mxu0 0.0
    %1241 = vmatpush1.msra.mxu0 %v380
    %1242 = vmatprep.subr.mxu0 0.0
    %1243 = vmatpush1.msra.mxu0 %v377
    %1244 = vmatprep.subr.mxu0 0.0
    %1245 = vmatpush1.msra.mxu0 %v374
    %1246 = vmatprep.subr.mxu0 0.0
    %1247 = vmatpush1.msra.mxu0 %v371
    %1248 = vmatprep.subr.mxu0 0.0
    %1249 = vmatpush1.msra.mxu0 %v368
    %1250 = vmatprep.subr.mxu0 0.0
    %1251 = vmatpush1.msra.mxu0 %v365
    %1252 = vmatprep.subr.mxu0 0.0
    %1253 = vmatpush2.msra.mxu0 0.0
    %1254 = vmatprep.subr.mxu0 0.0
    %1255 = vmatpush2.msra.mxu0 0.0
    %1256 = vmatprep.subr.mxu0 0.0
    %1257 = vmatpush2.msra.mxu0 0.0
    %1258 = vmatprep.subr.mxu0 0.0
    %1259 = vmatpush2.msra.mxu0 0.0
    %1260 = vmatprep.subr.mxu0 0.0
    %1261 = vmatpush2.msra.mxu0 0.0
    %1262 = vmatprep.subr.mxu0 0.0
    %1263 = vmatpush2.msra.mxu0 0.0
    %1264 = vmatprep.subr.mxu0 0.0
    %1265 = vmatpush2.msra.mxu0 0.0
    %1266 = vmatprep.subr.mxu0 0.0
    %1267 = vmatpush2.msra.mxu0 0.0
    %1268 = vmatprep.subr.mxu0 0.0
    %1269 = vmatpush2.msra.mxu0 0.0
    %1270 = vmatprep.subr.mxu0 0.0
    %1271 = vmatpush2.msra.mxu0 0.0
    %1272 = vmatprep.subr.mxu0 0.0
    %1273 = vmatpush2.msra.mxu0 0.0
    %1274 = vmatprep.subr.mxu0 0.0
    %1275 = vmatpush2.msra.mxu0 0.0
    %1276 = vmatprep.subr.mxu0 0.0
    %1277 = vmatpush2.msra.mxu0 0.0
    %1278 = vmatprep.subr.mxu0 0.0
    %1279 = vmatpush2.msra.mxu0 0.0
    %1280 = vmatprep.subr.mxu0 0.0
    %1281 = vmatpush2.msra.mxu0 0.0
    %1282 = vmatprep.subr.mxu0 0.0
    %1283 = vmatpush2.msra.mxu0 0.0
    %1284 = vmatprep.mubr.f32.mxu0 0.0
    %1285 = vmatmul.mubr.f32.gmra.mxu0 %v1147
    %v1286 = vpop.f32.mrf.mxu0
    %v1287 = vadd.f32 %v425, %v1286
    %v1288 = vpop.f32.mrf.mxu0
    %1289 = vdwg.mxu0
    %v1290 = vadd.f32 %v236, %v1216
    %v1291 = vxor.u32 %v1290, 2147483648
    %v1292 = vmul.f32 %v1291, 1.442695
    %v1293 = vpow.pop %v1292
    %v1294 = vadd.f32 %v1293, 1.0
    %v1295 = vrcp.pop %v1294
    %v1296 = vmul.f32 1.0, %v1295
    %v1297 = vadd.f32 %v238, %v1218
    %v1298 = vxor.u32 %v1297, 2147483648
    %v1299 = vmul.f32 %v1298, 1.442695
    %v1300 = vpow.pop %v1299
    %v1301 = vadd.f32 %v1300, 1.0
    %v1302 = vrcp.pop %v1301
    %v1303 = vmul.f32 1.0, %v1302
    %v1304 = vmul.f32 %v1296, %v1287
    %v1305 = vadd.f32 %v345, %v1304
    %v1306 = vtanh.pop %v1305
    %v1307 = vsub.f32 1.0, %v1303
    %v1308 = vmul.f32 %v1307, %v1306
    %v1309 = vmul.f32 %v1303, %v1147
    %v1310 = vadd.f32 %v1308, %v1309
    %vm1311 = vcmp.gt.f32.partialorder %v412, 4.0
    %v1312 = vsel %vm1311, 1, 0
    %v1313 = vcvt.s32.f32 %v1312
    %1315 = vset.pattern.permute.xlu0 0
    %1316 = vperm.xlu0 %1315, %v1313
    %v1317 = vpop.permute.xlu0 %1316
    %v1319 = vmul.f32 %v1317, %v1310
    %v1320 = vsub.f32 1.0, %v1313
    %1322 = vset.pattern.permute.xlu0 0
    %1323 = vperm.xlu0 %1322, %v1320
    %v1324 = vpop.permute.xlu0 %1323
    %v1326 = vmul.f32 %v1324, %v1147
    %v1327 = vadd.f32 %v1319, %v1326
    %1328 = vst [vmem:[#allocation2 + $0x20] sm:$0xff] %v1319
    %1329 = vmatprep.subr.mxu0 %v409
    %1330 = vmatpush1.msra.mxu0 %v408
    %1331 = vmatprep.subr.mxu0 %v406
    %1332 = vmatpush1.msra.mxu0 %v405
    %1333 = vmatprep.subr.mxu0 %v403
    %1334 = vmatpush1.msra.mxu0 %v402
    %1335 = vmatprep.subr.mxu0 %v400
    %1336 = vmatpush1.msra.mxu0 %v399
    %1337 = vmatprep.subr.mxu0 %v397
    %1338 = vmatpush1.msra.mxu0 %v396
    %1339 = vmatprep.subr.mxu0 %v394
    %1340 = vmatpush1.msra.mxu0 %v393
    %1341 = vmatprep.subr.mxu0 %v391
    %1342 = vmatpush1.msra.mxu0 %v390
    %1343 = vmatprep.subr.mxu0 %v388
    %1344 = vmatpush1.msra.mxu0 %v387
    %1345 = vmatprep.subr.mxu0 %v385
    %1346 = vmatpush1.msra.mxu0 %v384
    %1347 = vmatprep.subr.mxu0 %v382
    %1348 = vmatpush1.msra.mxu0 %v381
    %1349 = vmatprep.subr.mxu0 %v379
    %1350 = vmatpush1.msra.mxu0 %v378
    %1351 = vmatprep.subr.mxu0 %v376
    %1352 = vmatpush1.msra.mxu0 %v375
    %1353 = vmatprep.subr.mxu0 %v373
    %1354 = vmatpush1.msra.mxu0 %v372
    %1355 = vmatprep.subr.mxu0 %v370
    %1356 = vmatpush1.msra.mxu0 %v369
    %1357 = vmatprep.subr.mxu0 %v367
    %1358 = vmatpush1.msra.mxu0 %v366
    %1359 = vmatprep.subr.mxu0 %v364
    %1360 = vmatpush1.msra.mxu0 %v363
    %1361 = vmatprep.subr.mxu0 0.0
    %1362 = vmatpush2.msra.mxu0 0.0
    %1363 = vmatprep.subr.mxu0 0.0
    %1364 = vmatpush2.msra.mxu0 0.0
    %1365 = vmatprep.subr.mxu0 0.0
    %1366 = vmatpush2.msra.mxu0 0.0
    %1367 = vmatprep.subr.mxu0 0.0
    %1368 = vmatpush2.msra.mxu0 0.0
    %1369 = vmatprep.subr.mxu0 0.0
    %1370 = vmatpush2.msra.mxu0 0.0
    %1371 = vmatprep.subr.mxu0 0.0
    %1372 = vmatpush2.msra.mxu0 0.0
    %1373 = vmatprep.subr.mxu0 0.0
    %1374 = vmatpush2.msra.mxu0 0.0
    %1375 = vmatprep.subr.mxu0 0.0
    %1376 = vmatpush2.msra.mxu0 0.0
    %1377 = vmatprep.subr.mxu0 0.0
    %1378 = vmatpush2.msra.mxu0 0.0
    %1379 = vmatprep.subr.mxu0 0.0
    %1380 = vmatpush2.msra.mxu0 0.0
    %1381 = vmatprep.subr.mxu0 0.0
    %1382 = vmatpush2.msra.mxu0 0.0
    %1383 = vmatprep.subr.mxu0 0.0
    %1384 = vmatpush2.msra.mxu0 0.0
    %1385 = vmatprep.subr.mxu0 0.0
    %1386 = vmatpush2.msra.mxu0 0.0
    %1387 = vmatprep.subr.mxu0 0.0
    %1388 = vmatpush2.msra.mxu0 0.0
    %1389 = vmatprep.subr.mxu0 0.0
    %1390 = vmatpush2.msra.mxu0 0.0
    %1391 = vmatprep.subr.mxu0 0.0
    %1392 = vmatpush2.msra.mxu0 0.0
    %1393 = vmatprep.mubr.f32.mxu0 0.0
    %1394 = vmatmul.mubr.f32.gmra.mxu0 %v1327
    %v1395 = vpop.f32.mrf.mxu0
    %v1396 = vadd.f32 %v417, %v1395
    %v1397 = vpop.f32.mrf.mxu0
    %v1398 = vadd.f32 %v421, %v1397
    %1399 = vdwg.mxu0
    %1400 = vmatprep.subr.mxu0 0.0
    %1401 = vmatpush1.msra.mxu0 %v410
    %1402 = vmatprep.subr.mxu0 0.0
    %1403 = vmatpush1.msra.mxu0 %v407
    %1404 = vmatprep.subr.mxu0 0.0
    %1405 = vmatpush1.msra.mxu0 %v404
    %1406 = vmatprep.subr.mxu0 0.0
    %1407 = vmatpush1.msra.mxu0 %v401
    %1408 = vmatprep.subr.mxu0 0.0
    %1409 = vmatpush1.msra.mxu0 %v398
    %1410 = vmatprep.subr.mxu0 0.0
    %1411 = vmatpush1.msra.mxu0 %v395
    %1412 = vmatprep.subr.mxu0 0.0
    %1413 = vmatpush1.msra.mxu0 %v392
    %1414 = vmatprep.subr.mxu0 0.0
    %1415 = vmatpush1.msra.mxu0 %v389
    %1416 = vmatprep.subr.mxu0 0.0
    %1417 = vmatpush1.msra.mxu0 %v386
    %1418 = vmatprep.subr.mxu0 0.0
    %1419 = vmatpush1.msra.mxu0 %v383
    %1420 = vmatprep.subr.mxu0 0.0
    %1421 = vmatpush1.msra.mxu0 %v380
    %1422 = vmatprep.subr.mxu0 0.0
    %1423 = vmatpush1.msra.mxu0 %v377
    %1424 = vmatprep.subr.mxu0 0.0
    %1425 = vmatpush1.msra.mxu0 %v374
    %1426 = vmatprep.subr.mxu0 0.0
    %1427 = vmatpush1.msra.mxu0 %v371
    %1428 = vmatprep.subr.mxu0 0.0
    %1429 = vmatpush1.msra.mxu0 %v368
    %1430 = vmatprep.subr.mxu0 0.0
    %1431 = vmatpush1.msra.mxu0 %v365
    %1432 = vmatprep.subr.mxu0 0.0
    %1433 = vmatpush2.msra.mxu0 0.0
    %1434 = vmatprep.subr.mxu0 0.0
    %1435 = vmatpush2.msra.mxu0 0.0
    %1436 = vmatprep.subr.mxu0 0.0
    %1437 = vmatpush2.msra.mxu0 0.0
    %1438 = vmatprep.subr.mxu0 0.0
    %1439 = vmatpush2.msra.mxu0 0.0
    %1440 = vmatprep.subr.mxu0 0.0
    %1441 = vmatpush2.msra.mxu0 0.0
    %1442 = vmatprep.subr.mxu0 0.0
    %1443 = vmatpush2.msra.mxu0 0.0
    %1444 = vmatprep.subr.mxu0 0.0
    %1445 = vmatpush2.msra.mxu0 0.0
    %1446 = vmatprep.subr.mxu0 0.0
    %1447 = vmatpush2.msra.mxu0 0.0
    %1448 = vmatprep.subr.mxu0 0.0
    %1449 = vmatpush2.msra.mxu0 0.0
    %1450 = vmatprep.subr.mxu0 0.0
    %1451 = vmatpush2.msra.mxu0 0.0
    %1452 = vmatprep.subr.mxu0 0.0
    %1453 = vmatpush2.msra.mxu0 0.0
    %1454 = vmatprep.subr.mxu0 0.0
    %1455 = vmatpush2.msra.mxu0 0.0
    %1456 = vmatprep.subr.mxu0 0.0
    %1457 = vmatpush2.msra.mxu0 0.0
    %1458 = vmatprep.subr.mxu0 0.0
    %1459 = vmatpush2.msra.mxu0 0.0
    %1460 = vmatprep.subr.mxu0 0.0
    %1461 = vmatpush2.msra.mxu0 0.0
    %1462 = vmatprep.subr.mxu0 0.0
    %1463 = vmatpush2.msra.mxu0 0.0
    %1464 = vmatprep.mubr.f32.mxu0 0.0
    %1465 = vmatmul.mubr.f32.gmra.mxu0 %v1327
    %v1466 = vpop.f32.mrf.mxu0
    %v1467 = vadd.f32 %v425, %v1466
    %v1468 = vpop.f32.mrf.mxu0
    %1469 = vdwg.mxu0
    %v1470 = vadd.f32 %v242, %v1396
    %v1471 = vxor.u32 %v1470, 2147483648
    %v1472 = vmul.f32 %v1471, 1.442695
    %v1473 = vpow.pop %v1472
    %v1474 = vadd.f32 %v1473, 1.0
    %v1475 = vrcp.pop %v1474
    %v1476 = vmul.f32 1.0, %v1475
    %v1477 = vadd.f32 %v244, %v1398
    %v1478 = vxor.u32 %v1477, 2147483648
    %v1479 = vmul.f32 %v1478, 1.442695
    %v1480 = vpow.pop %v1479
    %v1481 = vadd.f32 %v1480, 1.0
    %v1482 = vrcp.pop %v1481
    %v1483 = vmul.f32 1.0, %v1482
    %v1484 = vmul.f32 %v1476, %v1467
    %v1485 = vadd.f32 %v350, %v1484
    %v1486 = vtanh.pop %v1485
    %v1487 = vsub.f32 1.0, %v1483
    %v1488 = vmul.f32 %v1487, %v1486
    %v1489 = vmul.f32 %v1483, %v1327
    %v1490 = vadd.f32 %v1488, %v1489
    %vm1491 = vcmp.gt.f32.partialorder %v412, 5.0
    %v1492 = vsel %vm1491, 1, 0
    %v1493 = vcvt.s32.f32 %v1492
    %1495 = vset.pattern.permute.xlu0 0
    %1496 = vperm.xlu0 %1495, %v1493
    %v1497 = vpop.permute.xlu0 %1496
    %v1499 = vmul.f32 %v1497, %v1490
    %v1500 = vsub.f32 1.0, %v1493
    %1502 = vset.pattern.permute.xlu0 0
    %1503 = vperm.xlu0 %1502, %v1500
    %v1504 = vpop.permute.xlu0 %1503
    %v1506 = vmul.f32 %v1504, %v1327
    %v1507 = vadd.f32 %v1499, %v1506
    %1508 = vst [vmem:[#allocation2 + $0x28] sm:$0xff] %v1499
    %1509 = vmatprep.subr.mxu0 %v409
    %1510 = vmatpush1.msra.mxu0 %v408
    %1511 = vmatprep.subr.mxu0 %v406
    %1512 = vmatpush1.msra.mxu0 %v405
    %1513 = vmatprep.subr.mxu0 %v403
    %1514 = vmatpush1.msra.mxu0 %v402
    %1515 = vmatprep.subr.mxu0 %v400
    %1516 = vmatpush1.msra.mxu0 %v399
    %1517 = vmatprep.subr.mxu0 %v397
    %1518 = vmatpush1.msra.mxu0 %v396
    %1519 = vmatprep.subr.mxu0 %v394
    %1520 = vmatpush1.msra.mxu0 %v393
    %1521 = vmatprep.subr.mxu0 %v391
    %1522 = vmatpush1.msra.mxu0 %v390
    %1523 = vmatprep.subr.mxu0 %v388
    %1524 = vmatpush1.msra.mxu0 %v387
    %1525 = vmatprep.subr.mxu0 %v385
    %1526 = vmatpush1.msra.mxu0 %v384
    %1527 = vmatprep.subr.mxu0 %v382
    %1528 = vmatpush1.msra.mxu0 %v381
    %1529 = vmatprep.subr.mxu0 %v379
    %1530 = vmatpush1.msra.mxu0 %v378
    %1531 = vmatprep.subr.mxu0 %v376
    %1532 = vmatpush1.msra.mxu0 %v375
    %1533 = vmatprep.subr.mxu0 %v373
    %1534 = vmatpush1.msra.mxu0 %v372
    %1535 = vmatprep.subr.mxu0 %v370
    %1536 = vmatpush1.msra.mxu0 %v369
    %1537 = vmatprep.subr.mxu0 %v367
    %1538 = vmatpush1.msra.mxu0 %v366
    %1539 = vmatprep.subr.mxu0 %v364
    %1540 = vmatpush1.msra.mxu0 %v363
    %1541 = vmatprep.subr.mxu0 0.0
    %1542 = vmatpush2.msra.mxu0 0.0
    %1543 = vmatprep.subr.mxu0 0.0
    %1544 = vmatpush2.msra.mxu0 0.0
    %1545 = vmatprep.subr.mxu0 0.0
    %1546 = vmatpush2.msra.mxu0 0.0
    %1547 = vmatprep.subr.mxu0 0.0
    %1548 = vmatpush2.msra.mxu0 0.0
    %1549 = vmatprep.subr.mxu0 0.0
    %1550 = vmatpush2.msra.mxu0 0.0
    %1551 = vmatprep.subr.mxu0 0.0
    %1552 = vmatpush2.msra.mxu0 0.0
    %1553 = vmatprep.subr.mxu0 0.0
    %1554 = vmatpush2.msra.mxu0 0.0
    %1555 = vmatprep.subr.mxu0 0.0
    %1556 = vmatpush2.msra.mxu0 0.0
    %1557 = vmatprep.subr.mxu0 0.0
    %1558 = vmatpush2.msra.mxu0 0.0
    %1559 = vmatprep.subr.mxu0 0.0
    %1560 = vmatpush2.msra.mxu0 0.0
    %1561 = vmatprep.subr.mxu0 0.0
    %1562 = vmatpush2.msra.mxu0 0.0
    %1563 = vmatprep.subr.mxu0 0.0
    %1564 = vmatpush2.msra.mxu0 0.0
    %1565 = vmatprep.subr.mxu0 0.0
    %1566 = vmatpush2.msra.mxu0 0.0
    %1567 = vmatprep.subr.mxu0 0.0
    %1568 = vmatpush2.msra.mxu0 0.0
    %1569 = vmatprep.subr.mxu0 0.0
    %1570 = vmatpush2.msra.mxu0 0.0
    %1571 = vmatprep.subr.mxu0 0.0
    %1572 = vmatpush2.msra.mxu0 0.0
    %1573 = vmatprep.mubr.f32.mxu0 0.0
    %1574 = vmatmul.mubr.f32.gmra.mxu0 %v1507
    %v1575 = vpop.f32.mrf.mxu0
    %v1576 = vadd.f32 %v417, %v1575
    %v1577 = vpop.f32.mrf.mxu0
    %v1578 = vadd.f32 %v421, %v1577
    %1579 = vdwg.mxu0
    %1580 = vmatprep.subr.mxu0 0.0
    %1581 = vmatpush1.msra.mxu0 %v410
    %1582 = vmatprep.subr.mxu0 0.0
    %1583 = vmatpush1.msra.mxu0 %v407
    %1584 = vmatprep.subr.mxu0 0.0
    %1585 = vmatpush1.msra.mxu0 %v404
    %1586 = vmatprep.subr.mxu0 0.0
    %1587 = vmatpush1.msra.mxu0 %v401
    %1588 = vmatprep.subr.mxu0 0.0
    %1589 = vmatpush1.msra.mxu0 %v398
    %1590 = vmatprep.subr.mxu0 0.0
    %1591 = vmatpush1.msra.mxu0 %v395
    %1592 = vmatprep.subr.mxu0 0.0
    %1593 = vmatpush1.msra.mxu0 %v392
    %1594 = vmatprep.subr.mxu0 0.0
    %1595 = vmatpush1.msra.mxu0 %v389
    %1596 = vmatprep.subr.mxu0 0.0
    %1597 = vmatpush1.msra.mxu0 %v386
    %1598 = vmatprep.subr.mxu0 0.0
    %1599 = vmatpush1.msra.mxu0 %v383
    %1600 = vmatprep.subr.mxu0 0.0
    %1601 = vmatpush1.msra.mxu0 %v380
    %1602 = vmatprep.subr.mxu0 0.0
    %1603 = vmatpush1.msra.mxu0 %v377
    %1604 = vmatprep.subr.mxu0 0.0
    %1605 = vmatpush1.msra.mxu0 %v374
    %1606 = vmatprep.subr.mxu0 0.0
    %1607 = vmatpush1.msra.mxu0 %v371
    %1608 = vmatprep.subr.mxu0 0.0
    %1609 = vmatpush1.msra.mxu0 %v368
    %1610 = vmatprep.subr.mxu0 0.0
    %1611 = vmatpush1.msra.mxu0 %v365
    %1612 = vmatprep.subr.mxu0 0.0
    %1613 = vmatpush2.msra.mxu0 0.0
    %1614 = vmatprep.subr.mxu0 0.0
    %1615 = vmatpush2.msra.mxu0 0.0
    %1616 = vmatprep.subr.mxu0 0.0
    %1617 = vmatpush2.msra.mxu0 0.0
    %1618 = vmatprep.subr.mxu0 0.0
    %1619 = vmatpush2.msra.mxu0 0.0
    %1620 = vmatprep.subr.mxu0 0.0
    %1621 = vmatpush2.msra.mxu0 0.0
    %1622 = vmatprep.subr.mxu0 0.0
    %1623 = vmatpush2.msra.mxu0 0.0
    %1624 = vmatprep.subr.mxu0 0.0
    %1625 = vmatpush2.msra.mxu0 0.0
    %1626 = vmatprep.subr.mxu0 0.0
    %1627 = vmatpush2.msra.mxu0 0.0
    %1628 = vmatprep.subr.mxu0 0.0
    %1629 = vmatpush2.msra.mxu0 0.0
    %1630 = vmatprep.subr.mxu0 0.0
    %1631 = vmatpush2.msra.mxu0 0.0
    %1632 = vmatprep.subr.mxu0 0.0
    %1633 = vmatpush2.msra.mxu0 0.0
    %1634 = vmatprep.subr.mxu0 0.0
    %1635 = vmatpush2.msra.mxu0 0.0
    %1636 = vmatprep.subr.mxu0 0.0
    %1637 = vmatpush2.msra.mxu0 0.0
    %1638 = vmatprep.subr.mxu0 0.0
    %1639 = vmatpush2.msra.mxu0 0.0
    %1640 = vmatprep.subr.mxu0 0.0
    %1641 = vmatpush2.msra.mxu0 0.0
    %1642 = vmatprep.subr.mxu0 0.0
    %1643 = vmatpush2.msra.mxu0 0.0
    %1644 = vmatprep.mubr.f32.mxu0 0.0
    %1645 = vmatmul.mubr.f32.gmra.mxu0 %v1507
    %v1646 = vpop.f32.mrf.mxu0
    %v1647 = vadd.f32 %v425, %v1646
    %v1648 = vpop.f32.mrf.mxu0
    %1649 = vdwg.mxu0
    %v1650 = vadd.f32 %v248, %v1576
    %v1651 = vxor.u32 %v1650, 2147483648
    %v1652 = vmul.f32 %v1651, 1.442695
    %v1653 = vpow.pop %v1652
    %v1654 = vadd.f32 %v1653, 1.0
    %v1655 = vrcp.pop %v1654
    %v1656 = vmul.f32 1.0, %v1655
    %v1657 = vadd.f32 %v250, %v1578
    %v1658 = vxor.u32 %v1657, 2147483648
    %v1659 = vmul.f32 %v1658, 1.442695
    %v1660 = vpow.pop %v1659
    %v1661 = vadd.f32 %v1660, 1.0
    %v1662 = vrcp.pop %v1661
    %v1663 = vmul.f32 1.0, %v1662
    %v1664 = vmul.f32 %v1656, %v1647
    %v1665 = vadd.f32 %v355, %v1664
    %v1666 = vtanh.pop %v1665
    %v1667 = vsub.f32 1.0, %v1663
    %v1668 = vmul.f32 %v1667, %v1666
    %v1669 = vmul.f32 %v1663, %v1507
    %v1670 = vadd.f32 %v1668, %v1669
    %vm1671 = vcmp.gt.f32.partialorder %v412, 6.0
    %v1672 = vsel %vm1671, 1, 0
    %v1673 = vcvt.s32.f32 %v1672
    %1675 = vset.pattern.permute.xlu0 0
    %1676 = vperm.xlu0 %1675, %v1673
    %v1677 = vpop.permute.xlu0 %1676
    %v1679 = vmul.f32 %v1677, %v1670
    %v1680 = vsub.f32 1.0, %v1673
    %1682 = vset.pattern.permute.xlu0 0
    %1683 = vperm.xlu0 %1682, %v1680
    %v1684 = vpop.permute.xlu0 %1683
    %v1686 = vmul.f32 %v1684, %v1507
    %v1687 = vadd.f32 %v1679, %v1686
    %1688 = vst [vmem:[#allocation2 + $0x30] sm:$0xff] %v1679
    %1689 = vmatprep.subr.mxu0 %v409
    %1690 = vmatpush1.msra.mxu0 %v408
    %1691 = vmatprep.subr.mxu0 %v406
    %1692 = vmatpush1.msra.mxu0 %v405
    %1693 = vmatprep.subr.mxu0 %v403
    %1694 = vmatpush1.msra.mxu0 %v402
    %1695 = vmatprep.subr.mxu0 %v400
    %1696 = vmatpush1.msra.mxu0 %v399
    %1697 = vmatprep.subr.mxu0 %v397
    %1698 = vmatpush1.msra.mxu0 %v396
    %1699 = vmatprep.subr.mxu0 %v394
    %1700 = vmatpush1.msra.mxu0 %v393
    %1701 = vmatprep.subr.mxu0 %v391
    %1702 = vmatpush1.msra.mxu0 %v390
    %1703 = vmatprep.subr.mxu0 %v388
    %1704 = vmatpush1.msra.mxu0 %v387
    %1705 = vmatprep.subr.mxu0 %v385
    %1706 = vmatpush1.msra.mxu0 %v384
    %1707 = vmatprep.subr.mxu0 %v382
    %1708 = vmatpush1.msra.mxu0 %v381
    %1709 = vmatprep.subr.mxu0 %v379
    %1710 = vmatpush1.msra.mxu0 %v378
    %1711 = vmatprep.subr.mxu0 %v376
    %1712 = vmatpush1.msra.mxu0 %v375
    %1713 = vmatprep.subr.mxu0 %v373
    %1714 = vmatpush1.msra.mxu0 %v372
    %1715 = vmatprep.subr.mxu0 %v370
    %1716 = vmatpush1.msra.mxu0 %v369
    %1717 = vmatprep.subr.mxu0 %v367
    %1718 = vmatpush1.msra.mxu0 %v366
    %1719 = vmatprep.subr.mxu0 %v364
    %1720 = vmatpush1.msra.mxu0 %v363
    %1721 = vmatprep.subr.mxu0 0.0
    %1722 = vmatpush2.msra.mxu0 0.0
    %1723 = vmatprep.subr.mxu0 0.0
    %1724 = vmatpush2.msra.mxu0 0.0
    %1725 = vmatprep.subr.mxu0 0.0
    %1726 = vmatpush2.msra.mxu0 0.0
    %1727 = vmatprep.subr.mxu0 0.0
    %1728 = vmatpush2.msra.mxu0 0.0
    %1729 = vmatprep.subr.mxu0 0.0
    %1730 = vmatpush2.msra.mxu0 0.0
    %1731 = vmatprep.subr.mxu0 0.0
    %1732 = vmatpush2.msra.mxu0 0.0
    %1733 = vmatprep.subr.mxu0 0.0
    %1734 = vmatpush2.msra.mxu0 0.0
    %1735 = vmatprep.subr.mxu0 0.0
    %1736 = vmatpush2.msra.mxu0 0.0
    %1737 = vmatprep.subr.mxu0 0.0
    %1738 = vmatpush2.msra.mxu0 0.0
    %1739 = vmatprep.subr.mxu0 0.0
    %1740 = vmatpush2.msra.mxu0 0.0
    %1741 = vmatprep.subr.mxu0 0.0
    %1742 = vmatpush2.msra.mxu0 0.0
    %1743 = vmatprep.subr.mxu0 0.0
    %1744 = vmatpush2.msra.mxu0 0.0
    %1745 = vmatprep.subr.mxu0 0.0
    %1746 = vmatpush2.msra.mxu0 0.0
    %1747 = vmatprep.subr.mxu0 0.0
    %1748 = vmatpush2.msra.mxu0 0.0
    %1749 = vmatprep.subr.mxu0 0.0
    %1750 = vmatpush2.msra.mxu0 0.0
    %1751 = vmatprep.subr.mxu0 0.0
    %1752 = vmatpush2.msra.mxu0 0.0
    %1753 = vmatprep.mubr.f32.mxu0 0.0
    %1754 = vmatmul.mubr.f32.gmra.mxu0 %v1687
    %v1755 = vpop.f32.mrf.mxu0
    %v1756 = vadd.f32 %v417, %v1755
    %v1757 = vpop.f32.mrf.mxu0
    %v1758 = vadd.f32 %v421, %v1757
    %1759 = vdwg.mxu0
    %1760 = vmatprep.subr.mxu0 0.0
    %1761 = vmatpush1.msra.mxu0 %v410
    %1762 = vmatprep.subr.mxu0 0.0
    %1763 = vmatpush1.msra.mxu0 %v407
    %1764 = vmatprep.subr.mxu0 0.0
    %1765 = vmatpush1.msra.mxu0 %v404
    %1766 = vmatprep.subr.mxu0 0.0
    %1767 = vmatpush1.msra.mxu0 %v401
    %1768 = vmatprep.subr.mxu0 0.0
    %1769 = vmatpush1.msra.mxu0 %v398
    %1770 = vmatprep.subr.mxu0 0.0
    %1771 = vmatpush1.msra.mxu0 %v395
    %1772 = vmatprep.subr.mxu0 0.0
    %1773 = vmatpush1.msra.mxu0 %v392
    %1774 = vmatprep.subr.mxu0 0.0
    %1775 = vmatpush1.msra.mxu0 %v389
    %1776 = vmatprep.subr.mxu0 0.0
    %1777 = vmatpush1.msra.mxu0 %v386
    %1778 = vmatprep.subr.mxu0 0.0
    %1779 = vmatpush1.msra.mxu0 %v383
    %1780 = vmatprep.subr.mxu0 0.0
    %1781 = vmatpush1.msra.mxu0 %v380
    %1782 = vmatprep.subr.mxu0 0.0
    %1783 = vmatpush1.msra.mxu0 %v377
    %1784 = vmatprep.subr.mxu0 0.0
    %1785 = vmatpush1.msra.mxu0 %v374
    %1786 = vmatprep.subr.mxu0 0.0
    %1787 = vmatpush1.msra.mxu0 %v371
    %1788 = vmatprep.subr.mxu0 0.0
    %1789 = vmatpush1.msra.mxu0 %v368
    %1790 = vmatprep.subr.mxu0 0.0
    %1791 = vmatpush1.msra.mxu0 %v365
    %1792 = vmatprep.subr.mxu0 0.0
    %1793 = vmatpush2.msra.mxu0 0.0
    %1794 = vmatprep.subr.mxu0 0.0
    %1795 = vmatpush2.msra.mxu0 0.0
    %1796 = vmatprep.subr.mxu0 0.0
    %1797 = vmatpush2.msra.mxu0 0.0
    %1798 = vmatprep.subr.mxu0 0.0
    %1799 = vmatpush2.msra.mxu0 0.0
    %1800 = vmatprep.subr.mxu0 0.0
    %1801 = vmatpush2.msra.mxu0 0.0
    %1802 = vmatprep.subr.mxu0 0.0
    %1803 = vmatpush2.msra.mxu0 0.0
    %1804 = vmatprep.subr.mxu0 0.0
    %1805 = vmatpush2.msra.mxu0 0.0
    %1806 = vmatprep.subr.mxu0 0.0
    %1807 = vmatpush2.msra.mxu0 0.0
    %1808 = vmatprep.subr.mxu0 0.0
    %1809 = vmatpush2.msra.mxu0 0.0
    %1810 = vmatprep.subr.mxu0 0.0
    %1811 = vmatpush2.msra.mxu0 0.0
    %1812 = vmatprep.subr.mxu0 0.0
    %1813 = vmatpush2.msra.mxu0 0.0
    %1814 = vmatprep.subr.mxu0 0.0
    %1815 = vmatpush2.msra.mxu0 0.0
    %1816 = vmatprep.subr.mxu0 0.0
    %1817 = vmatpush2.msra.mxu0 0.0
    %1818 = vmatprep.subr.mxu0 0.0
    %1819 = vmatpush2.msra.mxu0 0.0
    %1820 = vmatprep.subr.mxu0 0.0
    %1821 = vmatpush2.msra.mxu0 0.0
    %1822 = vmatprep.subr.mxu0 0.0
    %1823 = vmatpush2.msra.mxu0 0.0
    %1824 = vmatprep.mubr.f32.mxu0 0.0
    %1825 = vmatmul.mubr.f32.gmra.mxu0 %v1687
    %v1826 = vpop.f32.mrf.mxu0
    %v1827 = vadd.f32 %v425, %v1826
    %v1828 = vpop.f32.mrf.mxu0
    %1829 = vdwg.mxu0
    %v1830 = vadd.f32 %v254, %v1756
    %v1831 = vxor.u32 %v1830, 2147483648
    %v1832 = vmul.f32 %v1831, 1.442695
    %v1833 = vpow.pop %v1832
    %v1834 = vadd.f32 %v1833, 1.0
    %v1835 = vrcp.pop %v1834
    %v1836 = vmul.f32 1.0, %v1835
    %v1837 = vadd.f32 %v256, %v1758
    %v1838 = vxor.u32 %v1837, 2147483648
    %v1839 = vmul.f32 %v1838, 1.442695
    %v1840 = vpow.pop %v1839
    %v1841 = vadd.f32 %v1840, 1.0
    %v1842 = vrcp.pop %v1841
    %v1843 = vmul.f32 1.0, %v1842
    %v1844 = vmul.f32 %v1836, %v1827
    %v1845 = vadd.f32 %v360, %v1844
    %v1846 = vtanh.pop %v1845
    %v1847 = vsub.f32 1.0, %v1843
    %v1848 = vmul.f32 %v1847, %v1846
    %v1849 = vmul.f32 %v1843, %v1687
    %v1850 = vadd.f32 %v1848, %v1849
    %vm1851 = vcmp.gt.f32.partialorder %v412, 7.0
    %v1852 = vsel %vm1851, 1, 0
    %v1853 = vcvt.s32.f32 %v1852
    %1855 = vset.pattern.permute.xlu0 0
    %1856 = vperm.xlu0 %1855, %v1853
    %v1857 = vpop.permute.xlu0 %1856
    %v1859 = vmul.f32 %v1857, %v1850
    %v1860 = vsub.f32 1.0, %v1853
    %1862 = vset.pattern.permute.xlu0 0
    %1863 = vperm.xlu0 %1862, %v1860
    %v1864 = vpop.permute.xlu0 %1863
    %v1866 = vmul.f32 %v1864, %v1687
    %v1867 = vadd.f32 %v1859, %v1866
    %1868 = vst [vmem:[#allocation2 + $0x38] sm:$0xff] %v1859
    %v1869 = vld [vmem:[#allocation2] sm:$0xff]
    %v1870 = vld [vmem:[#allocation2 + $0x8] sm:$0xff]
    %v1871 = vld [vmem:[#allocation2 + $0x10] sm:$0xff]
    %v1872 = vld [vmem:[#allocation2 + $0x18] sm:$0xff]
    %v1873 = vld [vmem:[#allocation2 + $0x20] sm:$0xff]
    %v1874 = vld [vmem:[#allocation2 + $0x28] sm:$0xff]
    %v1875 = vld [vmem:[#allocation2 + $0x30] sm:$0xff]
    %v1876 = vld [vmem:[#allocation2 + $0x38] sm:$0xff]
    %v1877 = vld [vmem:[#allocation6] sm:$0xff]
    %v1878 = vld [vmem:[#allocation6 + $0x8] sm:$0xff]
    %v1879 = vld [vmem:[#allocation6 + $0x10] sm:$0xff]
    %v1880 = vld [vmem:[#allocation6 + $0x18] sm:$0xff]
    %v1881 = vld [vmem:[#allocation6 + $0x20] sm:$0xff]
    %v1882 = vld [vmem:[#allocation6 + $0x28] sm:$0xff]
    %v1883 = vld [vmem:[#allocation6 + $0x30] sm:$0xff]
    %v1884 = vld [vmem:[#allocation6 + $0x38] sm:$0xff]
    %v1885 = vld [vmem:[#allocation6 + $0x40] sm:$0xff]
    %v1886 = vld [vmem:[#allocation6 + $0x48] sm:$0xff]
    %v1887 = vld [vmem:[#allocation6 + $0x50] sm:$0xff]
    %v1888 = vld [vmem:[#allocation6 + $0x58] sm:$0xff]
    %v1889 = vld [vmem:[#allocation6 + $0x60] sm:$0xff]
    %v1890 = vld [vmem:[#allocation6 + $0x68] sm:$0xff]
    %v1891 = vld [vmem:[#allocation6 + $0x70] sm:$0xff]
    %v1892 = vld [vmem:[#allocation6 + $0x78] sm:$0xff]
    %1893 = vmatprep.subr.mxu0 0.0
    %1894 = vmatpush1.msra.mxu0 %v1892
    %1895 = vmatprep.subr.mxu0 0.0
    %1896 = vmatpush1.msra.mxu0 %v1891
    %1897 = vmatprep.subr.mxu0 0.0
    %1898 = vmatpush1.msra.mxu0 %v1890
    %1899 = vmatprep.subr.mxu0 0.0
    %1900 = vmatpush1.msra.mxu0 %v1889
    %1901 = vmatprep.subr.mxu0 0.0
    %1902 = vmatpush1.msra.mxu0 %v1888
    %1903 = vmatprep.subr.mxu0 0.0
    %1904 = vmatpush1.msra.mxu0 %v1887
    %1905 = vmatprep.subr.mxu0 0.0
    %1906 = vmatpush1.msra.mxu0 %v1886
    %1907 = vmatprep.subr.mxu0 0.0
    %1908 = vmatpush1.msra.mxu0 %v1885
    %1909 = vmatprep.subr.mxu0 0.0
    %1910 = vmatpush1.msra.mxu0 %v1884
    %1911 = vmatprep.subr.mxu0 0.0
    %1912 = vmatpush1.msra.mxu0 %v1883
    %1913 = vmatprep.subr.mxu0 0.0
    %1914 = vmatpush1.msra.mxu0 %v1882
    %1915 = vmatprep.subr.mxu0 0.0
    %1916 = vmatpush1.msra.mxu0 %v1881
    %1917 = vmatprep.subr.mxu0 0.0
    %1918 = vmatpush1.msra.mxu0 %v1880
    %1919 = vmatprep.subr.mxu0 0.0
    %1920 = vmatpush1.msra.mxu0 %v1879
    %1921 = vmatprep.subr.mxu0 0.0
    %1922 = vmatpush1.msra.mxu0 %v1878
    %1923 = vmatprep.subr.mxu0 0.0
    %1924 = vmatpush1.msra.mxu0 %v1877
    %1925 = vmatprep.subr.mxu0 0.0
    %1926 = vmatpush2.msra.mxu0 0.0
    %1927 = vmatprep.subr.mxu0 0.0
    %1928 = vmatpush2.msra.mxu0 0.0
    %1929 = vmatprep.subr.mxu0 0.0
    %1930 = vmatpush2.msra.mxu0 0.0
    %1931 = vmatprep.subr.mxu0 0.0
    %1932 = vmatpush2.msra.mxu0 0.0
    %1933 = vmatprep.subr.mxu0 0.0
    %1934 = vmatpush2.msra.mxu0 0.0
    %1935 = vmatprep.subr.mxu0 0.0
    %1936 = vmatpush2.msra.mxu0 0.0
    %1937 = vmatprep.subr.mxu0 0.0
    %1938 = vmatpush2.msra.mxu0 0.0
    %1939 = vmatprep.subr.mxu0 0.0
    %1940 = vmatpush2.msra.mxu0 0.0
    %1941 = vmatprep.subr.mxu0 0.0
    %1942 = vmatpush2.msra.mxu0 0.0
    %1943 = vmatprep.subr.mxu0 0.0
    %1944 = vmatpush2.msra.mxu0 0.0
    %1945 = vmatprep.subr.mxu0 0.0
    %1946 = vmatpush2.msra.mxu0 0.0
    %1947 = vmatprep.subr.mxu0 0.0
    %1948 = vmatpush2.msra.mxu0 0.0
    %1949 = vmatprep.subr.mxu0 0.0
    %1950 = vmatpush2.msra.mxu0 0.0
    %1951 = vmatprep.subr.mxu0 0.0
    %1952 = vmatpush2.msra.mxu0 0.0
    %1953 = vmatprep.subr.mxu0 0.0
    %1954 = vmatpush2.msra.mxu0 0.0
    %1955 = vmatprep.subr.mxu0 0.0
    %1956 = vmatpush2.msra.mxu0 0.0
    %1957 = vmatprep.mubr.f32.mxu0 0.0
    %1958 = vmatmul.mubr.f32.gmra.mxu0 %v1869
    %v1959 = vpop.f32.mrf.mxu0
    %v1960 = vadd.f32 0.0, %v1959
    %v1961 = vpop.f32.mrf.mxu0
    %1962 = vmatprep.mubr.f32.mxu0 0.0
    %1963 = vmatmul.mubr.f32.gmra.mxu0 %v1870
    %v1964 = vpop.f32.mrf.mxu0
    %v1965 = vadd.f32 0.0, %v1964
    %v1966 = vpop.f32.mrf.mxu0
    %1967 = vmatprep.mubr.f32.mxu0 0.0
    %1968 = vmatmul.mubr.f32.gmra.mxu0 %v1871
    %v1969 = vpop.f32.mrf.mxu0
    %v1970 = vadd.f32 0.0, %v1969
    %v1971 = vpop.f32.mrf.mxu0
    %1972 = vmatprep.mubr.f32.mxu0 0.0
    %1973 = vmatmul.mubr.f32.gmra.mxu0 %v1872
    %v1974 = vpop.f32.mrf.mxu0
    %v1975 = vadd.f32 0.0, %v1974
    %v1976 = vpop.f32.mrf.mxu0
    %1977 = vmatprep.mubr.f32.mxu0 0.0
    %1978 = vmatmul.mubr.f32.gmra.mxu0 %v1873
    %v1979 = vpop.f32.mrf.mxu0
    %v1980 = vadd.f32 0.0, %v1979
    %v1981 = vpop.f32.mrf.mxu0
    %1982 = vmatprep.mubr.f32.mxu0 0.0
    %1983 = vmatmul.mubr.f32.gmra.mxu0 %v1874
    %v1984 = vpop.f32.mrf.mxu0
    %v1985 = vadd.f32 0.0, %v1984
    %v1986 = vpop.f32.mrf.mxu0
    %1987 = vmatprep.mubr.f32.mxu0 0.0
    %1988 = vmatmul.mubr.f32.gmra.mxu0 %v1875
    %v1989 = vpop.f32.mrf.mxu0
    %v1990 = vadd.f32 0.0, %v1989
    %v1991 = vpop.f32.mrf.mxu0
    %1992 = vmatprep.mubr.f32.mxu0 0.0
    %1993 = vmatmul.mubr.f32.gmra.mxu0 %v1876
    %v1994 = vpop.f32.mrf.mxu0
    %v1995 = vadd.f32 0.0, %v1994
    %v1996 = vpop.f32.mrf.mxu0
    %1997 = vdwg.mxu0
    %v1998 = vld [vmem:[#allocation8] sm:$0xff]
    %v1999 = vld [vmem:[#allocation8 + $0x8] sm:$0xff]
    %v2000 = vld [vmem:[#allocation8 + $0x10] sm:$0xff]
    %v2001 = vld [vmem:[#allocation8 + $0x18] sm:$0xff]
    %v2002 = vld [vmem:[#allocation8 + $0x20] sm:$0xff]
    %v2003 = vld [vmem:[#allocation8 + $0x28] sm:$0xff]
    %v2004 = vld [vmem:[#allocation8 + $0x30] sm:$0xff]
    %v2005 = vld [vmem:[#allocation8 + $0x38] sm:$0xff]
    %v2006 = vld [vmem:[#allocation8 + $0x40] sm:$0xff]
    %v2007 = vld [vmem:[#allocation8 + $0x48] sm:$0xff]
    %v2008 = vld [vmem:[#allocation8 + $0x50] sm:$0xff]
    %v2009 = vld [vmem:[#allocation8 + $0x58] sm:$0xff]
    %v2010 = vld [vmem:[#allocation8 + $0x60] sm:$0xff]
    %v2011 = vld [vmem:[#allocation8 + $0x68] sm:$0xff]
    %v2012 = vld [vmem:[#allocation8 + $0x70] sm:$0xff]
    %v2013 = vld [vmem:[#allocation8 + $0x78] sm:$0xff]
    %2014 = vmatprep.subr.mxu0 0.0
    %2015 = vmatpush1.msra.mxu0 %v2013
    %2016 = vmatprep.subr.mxu0 0.0
    %2017 = vmatpush1.msra.mxu0 %v2012
    %2018 = vmatprep.subr.mxu0 0.0
    %2019 = vmatpush1.msra.mxu0 %v2011
    %2020 = vmatprep.subr.mxu0 0.0
    %2021 = vmatpush1.msra.mxu0 %v2010
    %2022 = vmatprep.subr.mxu0 0.0
    %2023 = vmatpush1.msra.mxu0 %v2009
    %2024 = vmatprep.subr.mxu0 0.0
    %2025 = vmatpush1.msra.mxu0 %v2008
    %2026 = vmatprep.subr.mxu0 0.0
    %2027 = vmatpush1.msra.mxu0 %v2007
    %2028 = vmatprep.subr.mxu0 0.0
    %2029 = vmatpush1.msra.mxu0 %v2006
    %2030 = vmatprep.subr.mxu0 0.0
    %2031 = vmatpush1.msra.mxu0 %v2005
    %2032 = vmatprep.subr.mxu0 0.0
    %2033 = vmatpush1.msra.mxu0 %v2004
    %2034 = vmatprep.subr.mxu0 0.0
    %2035 = vmatpush1.msra.mxu0 %v2003
    %2036 = vmatprep.subr.mxu0 0.0
    %2037 = vmatpush1.msra.mxu0 %v2002
    %2038 = vmatprep.subr.mxu0 0.0
    %2039 = vmatpush1.msra.mxu0 %v2001
    %2040 = vmatprep.subr.mxu0 0.0
    %2041 = vmatpush1.msra.mxu0 %v2000
    %2042 = vmatprep.subr.mxu0 0.0
    %2043 = vmatpush1.msra.mxu0 %v1999
    %2044 = vmatprep.subr.mxu0 0.0
    %2045 = vmatpush1.msra.mxu0 %v1998
    %2046 = vmatprep.subr.mxu0 0.0
    %2047 = vmatpush2.msra.mxu0 0.0
    %2048 = vmatprep.subr.mxu0 0.0
    %2049 = vmatpush2.msra.mxu0 0.0
    %2050 = vmatprep.subr.mxu0 0.0
    %2051 = vmatpush2.msra.mxu0 0.0
    %2052 = vmatprep.subr.mxu0 0.0
    %2053 = vmatpush2.msra.mxu0 0.0
    %2054 = vmatprep.subr.mxu0 0.0
    %2055 = vmatpush2.msra.mxu0 0.0
    %2056 = vmatprep.subr.mxu0 0.0
    %2057 = vmatpush2.msra.mxu0 0.0
    %2058 = vmatprep.subr.mxu0 0.0
    %2059 = vmatpush2.msra.mxu0 0.0
    %2060 = vmatprep.subr.mxu0 0.0
    %2061 = vmatpush2.msra.mxu0 0.0
    %2062 = vmatprep.subr.mxu0 0.0
    %2063 = vmatpush2.msra.mxu0 0.0
    %2064 = vmatprep.subr.mxu0 0.0
    %2065 = vmatpush2.msra.mxu0 0.0
    %2066 = vmatprep.subr.mxu0 0.0
    %2067 = vmatpush2.msra.mxu0 0.0
    %2068 = vmatprep.subr.mxu0 0.0
    %2069 = vmatpush2.msra.mxu0 0.0
    %2070 = vmatprep.subr.mxu0 0.0
    %2071 = vmatpush2.msra.mxu0 0.0
    %2072 = vmatprep.subr.mxu0 0.0
    %2073 = vmatpush2.msra.mxu0 0.0
    %2074 = vmatprep.subr.mxu0 0.0
    %2075 = vmatpush2.msra.mxu0 0.0
    %2076 = vmatprep.subr.mxu0 0.0
    %2077 = vmatpush2.msra.mxu0 0.0
    %2078 = vmatprep.mubr.f32.mxu0 0.0
    %2079 = vmatmul.mubr.f32.gmra.mxu0 %v1867
    %v2080 = vpop.f32.mrf.mxu0
    %v2081 = vadd.f32 0.0, %v2080
    %v2082 = vpop.f32.mrf.mxu0
    %2083 = vdwg.mxu0
    %v2084 = vld [vmem:[%s9] sm:$0x1]
    %v2085 = vld [vmem:[%s2] sm:$0xff]
    %2087 = vset.pattern.permute.xlu0 0
    %2088 = vperm.xlu0 %2087, %v2085
    %v2089 = vpop.permute.xlu0 %2088
    %v2091 = vmul.f32 %v2089, %v2081
    %v2092 = vadd.f32 %v1960, %v2091
    %v2093 = vxor.u32 %v2092, 2147483648
    %v2094 = vmul.f32 %v2093, 1.442695
    %v2095 = vpow.pop %v2094
    %v2096 = vadd.f32 %v2095, 1.0
    %v2097 = vrcp.pop %v2096
    %v2098 = vmul.f32 1.0, %v2097
    %v2100 = vlaneseq
    %v2101 = vshrl.u32 %v2100, 7
    %v2102 = vsub.s32 0, %v2101
    %v2103 = vrot.slane %v2084, %v2102
    %v2105 = vmul.f32 %v2098, %v2103
    %2106 = vadd.xlane.f32.xlu0 %v2105
    %v2107 = vpop.xlane.xlu0 %2106
    %v2108 = vld [vmem:[#allocation2] sm:$0xff]
    %v2109 = vmul.f32 %v2107, %v2108
    %v2110 = vadd.f32 %v2109, 0.0
    %2111 = vset.pattern.permute.xlu0 1
    %2112 = vperm.xlu0 %2111, %v2085
    %v2113 = vpop.permute.xlu0 %2112
    %v2115 = vmul.f32 %v2113, %v2081
    %v2116 = vadd.f32 %v1965, %v2115
    %v2117 = vxor.u32 %v2116, 2147483648
    %v2118 = vmul.f32 %v2117, 1.442695
    %v2119 = vpow.pop %v2118
    %v2120 = vadd.f32 %v2119, 1.0
    %v2121 = vrcp.pop %v2120
    %v2122 = vmul.f32 1.0, %v2121
    %v2123 = vmul.f32 %v2122, %v2103
    %2124 = vadd.xlane.f32.xlu0 %v2123
    %v2125 = vpop.xlane.xlu0 %2124
    %v2126 = vld [vmem:[#allocation2 + $0x8] sm:$0xff]
    %v2127 = vmul.f32 %v2125, %v2126
    %v2128 = vadd.f32 %v2110, %v2127
    %2129 = vset.pattern.permute.xlu0 2
    %2130 = vperm.xlu0 %2129, %v2085
    %v2131 = vpop.permute.xlu0 %2130
    %v2133 = vmul.f32 %v2131, %v2081
    %v2134 = vadd.f32 %v1970, %v2133
    %v2135 = vxor.u32 %v2134, 2147483648
    %v2136 = vmul.f32 %v2135, 1.442695
    %v2137 = vpow.pop %v2136
    %v2138 = vadd.f32 %v2137, 1.0
    %v2139 = vrcp.pop %v2138
    %v2140 = vmul.f32 1.0, %v2139
    %v2141 = vmul.f32 %v2140, %v2103
    %2142 = vadd.xlane.f32.xlu0 %v2141
    %v2143 = vpop.xlane.xlu0 %2142
    %v2144 = vld [vmem:[#allocation2 + $0x10] sm:$0xff]
    %v2145 = vmul.f32 %v2143, %v2144
    %v2146 = vadd.f32 %v2128, %v2145
    %2147 = vset.pattern.permute.xlu0 3
    %2148 = vperm.xlu0 %2147, %v2085
    %v2149 = vpop.permute.xlu0 %2148
    %v2151 = vmul.f32 %v2149, %v2081
    %v2152 = vadd.f32 %v1975, %v2151
    %v2153 = vxor.u32 %v2152, 2147483648
    %v2154 = vmul.f32 %v2153, 1.442695
    %v2155 = vpow.pop %v2154
    %v2156 = vadd.f32 %v2155, 1.0
    %v2157 = vrcp.pop %v2156
    %v2158 = vmul.f32 1.0, %v2157
    %v2159 = vmul.f32 %v2158, %v2103
    %2160 = vadd.xlane.f32.xlu0 %v2159
    %v2161 = vpop.xlane.xlu0 %2160
    %v2162 = vld [vmem:[#allocation2 + $0x18] sm:$0xff]
    %v2163 = vmul.f32 %v2161, %v2162
    %v2164 = vadd.f32 %v2146, %v2163
    %2165 = vset.pattern.permute.xlu0 4
    %2166 = vperm.xlu0 %2165, %v2085
    %v2167 = vpop.permute.xlu0 %2166
    %v2169 = vmul.f32 %v2167, %v2081
    %v2170 = vadd.f32 %v1980, %v2169
    %v2171 = vxor.u32 %v2170, 2147483648
    %v2172 = vmul.f32 %v2171, 1.442695
    %v2173 = vpow.pop %v2172
    %v2174 = vadd.f32 %v2173, 1.0
    %v2175 = vrcp.pop %v2174
    %v2176 = vmul.f32 1.0, %v2175
    %v2177 = vmul.f32 %v2176, %v2103
    %2178 = vadd.xlane.f32.xlu0 %v2177
    %v2179 = vpop.xlane.xlu0 %2178
    %v2180 = vld [vmem:[#allocation2 + $0x20] sm:$0xff]
    %v2181 = vmul.f32 %v2179, %v2180
    %v2182 = vadd.f32 %v2164, %v2181
    %2183 = vset.pattern.permute.xlu0 5
    %2184 = vperm.xlu0 %2183, %v2085
    %v2185 = vpop.permute.xlu0 %2184
    %v2187 = vmul.f32 %v2185, %v2081
    %v2188 = vadd.f32 %v1985, %v2187
    %v2189 = vxor.u32 %v2188, 2147483648
    %v2190 = vmul.f32 %v2189, 1.442695
    %v2191 = vpow.pop %v2190
    %v2192 = vadd.f32 %v2191, 1.0
    %v2193 = vrcp.pop %v2192
    %v2194 = vmul.f32 1.0, %v2193
    %v2195 = vmul.f32 %v2194, %v2103
    %2196 = vadd.xlane.f32.xlu0 %v2195
    %v2197 = vpop.xlane.xlu0 %2196
    %v2198 = vld [vmem:[#allocation2 + $0x28] sm:$0xff]
    %v2199 = vmul.f32 %v2197, %v2198
    %v2200 = vadd.f32 %v2182, %v2199
    %2201 = vset.pattern.permute.xlu0 6
    %2202 = vperm.xlu0 %2201, %v2085
    %v2203 = vpop.permute.xlu0 %2202
    %v2205 = vmul.f32 %v2203, %v2081
    %v2206 = vadd.f32 %v1990, %v2205
    %v2207 = vxor.u32 %v2206, 2147483648
    %v2208 = vmul.f32 %v2207, 1.442695
    %v2209 = vpow.pop %v2208
    %v2210 = vadd.f32 %v2209, 1.0
    %v2211 = vrcp.pop %v2210
    %v2212 = vmul.f32 1.0, %v2211
    %v2213 = vmul.f32 %v2212, %v2103
    %2214 = vadd.xlane.f32.xlu0 %v2213
    %v2215 = vpop.xlane.xlu0 %2214
    %v2216 = vld [vmem:[#allocation2 + $0x30] sm:$0xff]
    %v2217 = vmul.f32 %v2215, %v2216
    %v2218 = vadd.f32 %v2200, %v2217
    %2219 = vset.pattern.permute.xlu0 7
    %2220 = vperm.xlu0 %2219, %v2085
    %v2221 = vpop.permute.xlu0 %2220
    %v2223 = vmul.f32 %v2221, %v2081
    %v2224 = vadd.f32 %v1995, %v2223
    %v2225 = vxor.u32 %v2224, 2147483648
    %v2226 = vmul.f32 %v2225, 1.442695
    %v2227 = vpow.pop %v2226
    %v2228 = vadd.f32 %v2227, 1.0
    %v2229 = vrcp.pop %v2228
    %v2230 = vmul.f32 1.0, %v2229
    %v2231 = vmul.f32 %v2230, %v2103
    %2232 = vadd.xlane.f32.xlu0 %v2231
    %v2233 = vpop.xlane.xlu0 %2232
    %v2234 = vmul.f32 %v2233, %v1876
    %v2235 = vadd.f32 %v2218, %v2234
    %v2236 = vld [vmem:[%s10] sm:$0xff]
    %v2237 = vld [vmem:[%s10 + $0x8] sm:$0xff]
    %v2238 = vld [vmem:[%s10 + $0x10] sm:$0xff]
    %v2239 = vld [vmem:[%s10 + $0x18] sm:$0xff]
    %v2240 = vld [vmem:[%s10 + $0x20] sm:$0xff]
    %v2241 = vld [vmem:[%s10 + $0x28] sm:$0xff]
    %v2242 = vld [vmem:[%s10 + $0x30] sm:$0xff]
    %v2243 = vld [vmem:[%s10 + $0x38] sm:$0xff]
    %v2244 = vld [vmem:[%s10 + $0x40] sm:$0xff]
    %v2245 = vld [vmem:[%s10 + $0x48] sm:$0xff]
    %v2246 = vld [vmem:[%s10 + $0x50] sm:$0xff]
    %v2247 = vld [vmem:[%s10 + $0x58] sm:$0xff]
    %v2248 = vld [vmem:[%s10 + $0x60] sm:$0xff]
    %v2249 = vld [vmem:[%s10 + $0x68] sm:$0xff]
    %v2250 = vld [vmem:[%s10 + $0x70] sm:$0xff]
    %v2251 = vld [vmem:[%s10 + $0x78] sm:$0xff]
    %v2252 = vld [vmem:[%s11] sm:$0xff]
    %v2253 = vld [vmem:[%s11 + $0x8] sm:$0xff]
    %v2254 = vld [vmem:[%s11 + $0x10] sm:$0xff]
    %v2255 = vld [vmem:[%s11 + $0x18] sm:$0xff]
    %v2256 = vld [vmem:[%s11 + $0x20] sm:$0xff]
    %v2257 = vld [vmem:[%s11 + $0x28] sm:$0xff]
    %v2258 = vld [vmem:[%s11 + $0x30] sm:$0xff]
    %v2259 = vld [vmem:[%s11 + $0x38] sm:$0xff]
    %v2260 = vld [vmem:[%s11 + $0x40] sm:$0xff]
    %v2261 = vld [vmem:[%s11 + $0x48] sm:$0xff]
    %v2262 = vld [vmem:[%s11 + $0x50] sm:$0xff]
    %v2263 = vld [vmem:[%s11 + $0x58] sm:$0xff]
    %v2264 = vld [vmem:[%s11 + $0x60] sm:$0xff]
    %v2265 = vld [vmem:[%s11 + $0x68] sm:$0xff]
    %v2266 = vld [vmem:[%s11 + $0x70] sm:$0xff]
    %v2267 = vld [vmem:[%s11 + $0x78] sm:$0xff]
    %2268 = vmatprep.subr.mxu0 0.0
    %2269 = vmatpush1.msra.mxu0 %v2267
    %2270 = vmatprep.subr.mxu0 0.0
    %2271 = vmatpush1.msra.mxu0 %v2266
    %2272 = vmatprep.subr.mxu0 0.0
    %2273 = vmatpush1.msra.mxu0 %v2265
    %2274 = vmatprep.subr.mxu0 0.0
    %2275 = vmatpush1.msra.mxu0 %v2264
    %2276 = vmatprep.subr.mxu0 0.0
    %2277 = vmatpush1.msra.mxu0 %v2263
    %2278 = vmatprep.subr.mxu0 0.0
    %2279 = vmatpush1.msra.mxu0 %v2262
    %2280 = vmatprep.subr.mxu0 0.0
    %2281 = vmatpush1.msra.mxu0 %v2261
    %2282 = vmatprep.subr.mxu0 0.0
    %2283 = vmatpush1.msra.mxu0 %v2260
    %2284 = vmatprep.subr.mxu0 0.0
    %2285 = vmatpush1.msra.mxu0 %v2259
    %2286 = vmatprep.subr.mxu0 0.0
    %2287 = vmatpush1.msra.mxu0 %v2258
    %2288 = vmatprep.subr.mxu0 0.0
    %2289 = vmatpush1.msra.mxu0 %v2257
    %2290 = vmatprep.subr.mxu0 0.0
    %2291 = vmatpush1.msra.mxu0 %v2256
    %2292 = vmatprep.subr.mxu0 0.0
    %2293 = vmatpush1.msra.mxu0 %v2255
    %2294 = vmatprep.subr.mxu0 0.0
    %2295 = vmatpush1.msra.mxu0 %v2254
    %2296 = vmatprep.subr.mxu0 0.0
    %2297 = vmatpush1.msra.mxu0 %v2253
    %2298 = vmatprep.subr.mxu0 0.0
    %2299 = vmatpush1.msra.mxu0 %v2252
    %2300 = vmatprep.subr.mxu0 0.0
    %2301 = vmatpush2.msra.mxu0 0.0
    %2302 = vmatprep.subr.mxu0 0.0
    %2303 = vmatpush2.msra.mxu0 0.0
    %2304 = vmatprep.subr.mxu0 0.0
    %2305 = vmatpush2.msra.mxu0 0.0
    %2306 = vmatprep.subr.mxu0 0.0
    %2307 = vmatpush2.msra.mxu0 0.0
    %2308 = vmatprep.subr.mxu0 0.0
    %2309 = vmatpush2.msra.mxu0 0.0
    %2310 = vmatprep.subr.mxu0 0.0
    %2311 = vmatpush2.msra.mxu0 0.0
    %2312 = vmatprep.subr.mxu0 0.0
    %2313 = vmatpush2.msra.mxu0 0.0
    %2314 = vmatprep.subr.mxu0 0.0
    %2315 = vmatpush2.msra.mxu0 0.0
    %2316 = vmatprep.subr.mxu0 0.0
    %2317 = vmatpush2.msra.mxu0 0.0
    %2318 = vmatprep.subr.mxu0 0.0
    %2319 = vmatpush2.msra.mxu0 0.0
    %2320 = vmatprep.subr.mxu0 0.0
    %2321 = vmatpush2.msra.mxu0 0.0
    %2322 = vmatprep.subr.mxu0 0.0
    %2323 = vmatpush2.msra.mxu0 0.0
    %2324 = vmatprep.subr.mxu0 0.0
    %2325 = vmatpush2.msra.mxu0 0.0
    %2326 = vmatprep.subr.mxu0 0.0
    %2327 = vmatpush2.msra.mxu0 0.0
    %2328 = vmatprep.subr.mxu0 0.0
    %2329 = vmatpush2.msra.mxu0 0.0
    %2330 = vmatprep.subr.mxu0 0.0
    %2331 = vmatpush2.msra.mxu0 0.0
    %2332 = vmatprep.mubr.f32.mxu0 0.0
    %2333 = vmatmul.mubr.f32.gmra.mxu0 %v1867
    %v2334 = vpop.f32.mrf.mxu0
    %v2335 = vadd.f32 0.0, %v2334
    %v2336 = vpop.f32.mrf.mxu0
    %2337 = vdwg.mxu0
    %2338 = vmatprep.subr.mxu0 0.0
    %2339 = vmatpush1.msra.mxu0 %v2251
    %2340 = vmatprep.subr.mxu0 0.0
    %2341 = vmatpush1.msra.mxu0 %v2250
    %2342 = vmatprep.subr.mxu0 0.0
    %2343 = vmatpush1.msra.mxu0 %v2249
    %2344 = vmatprep.subr.mxu0 0.0
    %2345 = vmatpush1.msra.mxu0 %v2248
    %2346 = vmatprep.subr.mxu0 0.0
    %2347 = vmatpush1.msra.mxu0 %v2247
    %2348 = vmatprep.subr.mxu0 0.0
    %2349 = vmatpush1.msra.mxu0 %v2246
    %2350 = vmatprep.subr.mxu0 0.0
    %2351 = vmatpush1.msra.mxu0 %v2245
    %2352 = vmatprep.subr.mxu0 0.0
    %2353 = vmatpush1.msra.mxu0 %v2244
    %2354 = vmatprep.subr.mxu0 0.0
    %2355 = vmatpush1.msra.mxu0 %v2243
    %2356 = vmatprep.subr.mxu0 0.0
    %2357 = vmatpush1.msra.mxu0 %v2242
    %2358 = vmatprep.subr.mxu0 0.0
    %2359 = vmatpush1.msra.mxu0 %v2241
    %2360 = vmatprep.subr.mxu0 0.0
    %2361 = vmatpush1.msra.mxu0 %v2240
    %2362 = vmatprep.subr.mxu0 0.0
    %2363 = vmatpush1.msra.mxu0 %v2239
    %2364 = vmatprep.subr.mxu0 0.0
    %2365 = vmatpush1.msra.mxu0 %v2238
    %2366 = vmatprep.subr.mxu0 0.0
    %2367 = vmatpush1.msra.mxu0 %v2237
    %2368 = vmatprep.subr.mxu0 0.0
    %2369 = vmatpush1.msra.mxu0 %v2236
    %2370 = vmatprep.subr.mxu0 0.0
    %2371 = vmatpush2.msra.mxu0 0.0
    %2372 = vmatprep.subr.mxu0 0.0
    %2373 = vmatpush2.msra.mxu0 0.0
    %2374 = vmatprep.subr.mxu0 0.0
    %2375 = vmatpush2.msra.mxu0 0.0
    %2376 = vmatprep.subr.mxu0 0.0
    %2377 = vmatpush2.msra.mxu0 0.0
    %2378 = vmatprep.subr.mxu0 0.0
    %2379 = vmatpush2.msra.mxu0 0.0
    %2380 = vmatprep.subr.mxu0 0.0
    %2381 = vmatpush2.msra.mxu0 0.0
    %2382 = vmatprep.subr.mxu0 0.0
    %2383 = vmatpush2.msra.mxu0 0.0
    %2384 = vmatprep.subr.mxu0 0.0
    %2385 = vmatpush2.msra.mxu0 0.0
    %2386 = vmatprep.subr.mxu0 0.0
    %2387 = vmatpush2.msra.mxu0 0.0
    %2388 = vmatprep.subr.mxu0 0.0
    %2389 = vmatpush2.msra.mxu0 0.0
    %2390 = vmatprep.subr.mxu0 0.0
    %2391 = vmatpush2.msra.mxu0 0.0
    %2392 = vmatprep.subr.mxu0 0.0
    %2393 = vmatpush2.msra.mxu0 0.0
    %2394 = vmatprep.subr.mxu0 0.0
    %2395 = vmatpush2.msra.mxu0 0.0
    %2396 = vmatprep.subr.mxu0 0.0
    %2397 = vmatpush2.msra.mxu0 0.0
    %2398 = vmatprep.subr.mxu0 0.0
    %2399 = vmatpush2.msra.mxu0 0.0
    %2400 = vmatprep.subr.mxu0 0.0
    %2401 = vmatpush2.msra.mxu0 0.0
    %2402 = vmatprep.mubr.f32.mxu0 0.0
    %2403 = vmatmul.mubr.f32.gmra.mxu0 %v2235
    %v2404 = vpop.f32.mrf.mxu0
    %v2405 = vadd.f32 %v2335, %v2404
    %v2406 = vpop.f32.mrf.mxu0
    %2407 = vdwg.mxu0
    %2408 = vst.msk [vmem:[#allocation9] sm:$0xff] %vm120, %v2405
    // Predicated region
    $region62: #{tpu_custom_call.1} parent=1 // pred_check
      _
    $region63: #{tpu_custom_call.1} parent=1 // pred_check_branch
      %2410 = sbr.rel (0) target = $region65
    $region64: #{tpu_custom_call.1} parent=1 // pred_region
      %s2412 = ssub.s32 128, 128
      %2413 = vsyncadd [#allocation5], %s2412
      %s2415 = sshll.u32 [#allocation9], 4
      %s2416 = int_to_ptr.vmem [resolvable:$true] %s2415
      %2418 = dma.vmem_to_hbm [thread:$0]  %s2416, 128, %s12, [#allocation5]
    $region65: #{tpu_custom_call.1} parent=1 // pred_fallthru
      _
    // Predicated region
    $region66: #{tpu_custom_call.1} parent=1 // pred_check
      _
    $region67: #{tpu_custom_call.1} parent=1 // pred_check_branch
      %2420 = sbr.rel (0) target = $region69
    $region68: #{tpu_custom_call.1} parent=1 // pred_region
      %2421 = dma.done [#allocation5], 128
    $region69: #{tpu_custom_call.1} parent=1 // pred_fallthru
      _
    %2422 = vsyncpa [#allocation4], 1
    %2423 = vsyncpa [#allocation7], 1
    %2424 = vsyncpa [#allocation5], 1

</llo_original>
